<compile_context>
chip_gen: v7x
topology: tpu7x:2x2x1
jax: 0.10.0
libtpu: 0.0.40
codegen_flags: <defaults>
</compile_context>

<pallas_src>
import math
from functools import partial

import jax
import jax.numpy as jnp
from jax.experimental import pallas as pl
from jax.experimental.pallas import tpu as pltpu

BN_EPS = 1e-5


def _vmem_capacity_bytes():
    try:
        return int(pltpu.get_tpu_info().vmem_capacity_bytes)
    except Exception:
        return 64 << 20                      # conservative fallback (v7x physical VMEM)


def _divisors_desc(n):
    return [d for d in range(n, 0, -1) if n % d == 0]


def _make_conv_stats_kernel(tr, Wo, KH, KW, Cin, Cout):
    """Pass 1: one row-block of the conv (9 shifted MXU dots) + BN partial stats."""
    tm = tr * Wo

    def kernel(x_ref, w_ref, y_ref, stats_ref):
        # x_ref:     (tr+KH-1, Wp, Cin)   padded input rows incl. halo, compute dtype
        # w_ref:     (KH*KW, Cin, Cout)   per-tap weights, compute dtype
        # y_ref:     (tm, Cout)           conv output (f32)
        # stats_ref: (1, 2, Cout)         per-block sum / sum-of-squares
        acc = jnp.zeros((tm, Cout), jnp.float32)
        for kh in range(KH):
            for kw in range(KW):
                patch = x_ref[kh:kh + tr, kw:kw + Wo, :].reshape(tm, Cin)
                acc = acc + jnp.dot(patch, w_ref[kh * KW + kw],
                                    preferred_element_type=jnp.float32)
        stats_ref[:, 0:1, :] = jnp.sum(acc, axis=0, keepdims=True)[None]
        stats_ref[:, 1:2, :] = jnp.sum(acc * acc, axis=0, keepdims=True)[None]
        y_ref[...] = acc.astype(y_ref.dtype)

    return kernel


def _bn_affine_kernel(y_ref, scale_ref, shift_ref, o_ref):
    """Pass 2: single fused per-channel affine + cast on a lane-dense slab."""
    o_ref[...] = (y_ref[...] * scale_ref[...] + shift_ref[...]).astype(o_ref.dtype)


@partial(jax.jit, static_argnames=("padding", "compute_dtype"))
def conv_bn2d(x_nchw, weight_oihw, gamma, beta, padding=(1, 1),
              compute_dtype=jnp.float32):
    """x_nchw: (N, Cin, H, W); weight_oihw: (Cout, Cin, KH, KW).
    Returns (N, Cout, Ho, Wo), matching ConvBn2d.forward in training mode."""
    N, Cin, H, W = x_nchw.shape
    Cout, _, KH, KW = weight_oihw.shape
    ph, pw = padding
    Ho = H + 2 * ph - KH + 1
    Wo = W + 2 * pw - KW + 1
    Wp = W + 2 * pw
    K = KH * KW * Cin
    M = N * Ho * Wo
    esz_c = jnp.dtype(compute_dtype).itemsize
    out_dtype = x_nchw.dtype
    out_esz = jnp.dtype(out_dtype).itemsize

    vmem_cap = _vmem_capacity_bytes()
    blk_budget = int(0.40 * vmem_cap)        # per-gen budget for double-buffered blocks

    # ---- pass-1 tile selection: largest divisor of Ho whose block fits the budget ----
    def pass1_need(rows):
        tm_r = rows * Wo
        x_b = (rows + KH - 1) * Wp * Cin * esz_c
        w_b = KH * KW * Cin * Cout * esz_c
        y_b = tm_r * Cout * 4
        s_b = 2 * Cout * 4
        live = tm_r * Cout * 4 + tm_r * Cin * esz_c
        return 2 * (x_b + w_b + y_b + s_b) + live

    tr = 1
    for d in _divisors_desc(Ho):
        if pass1_need(d) <= blk_budget:
            tr = d
            break
    NRB = Ho // tr
    num_blocks = N * NRB
    tm = tr * Wo
    # TODO(synk): if tm % 8 != 0 with num_blocks > 1 (odd Wo * odd tr) the (8,128)
    # block rule needs a padded Wo; not required for the shapes used here.

    # ---- data prep (fused by XLA inside this jit) ----
    x_nhwc = jnp.transpose(x_nchw, (0, 2, 3, 1))
    x_pad = jnp.pad(x_nhwc, ((0, 0), (ph, ph), (pw, pw), (0, 0))).astype(compute_dtype)
    if NRB == 1:
        x_blk = x_pad                                     # (N, tr+KH-1, Wp, Cin)
    else:                                                 # duplicate only the halo rows
        x_blk = jnp.stack(
            [x_pad[:, rb * tr: rb * tr + tr + KH - 1] for rb in range(NRB)],
            axis=1).reshape(num_blocks, tr + KH - 1, Wp, Cin)
    w_taps = (jnp.transpose(weight_oihw, (2, 3, 1, 0))    # (KH, KW, Cin, Cout)
              .reshape(KH * KW, Cin, Cout).astype(compute_dtype))

    # ---- pass 1: conv + per-block BN partial statistics ----
    need1 = pass1_need(tr)
    vmem1 = int(min(max(1.4 * need1 + (1 << 20), 8 << 20), 0.8 * vmem_cap))
    kernel1 = _make_conv_stats_kernel(tr, Wo, KH, KW, Cin, Cout)
    y_flat, part = pl.pallas_call(
        kernel1,
        out_shape=(jax.ShapeDtypeStruct((M, Cout), jnp.float32),
                   jax.ShapeDtypeStruct((num_blocks, 2, Cout), jnp.float32)),
        grid=(num_blocks,),
        in_specs=[pl.BlockSpec((None, tr + KH - 1, Wp, Cin), lambda i: (i, 0, 0, 0)),
                  pl.BlockSpec((KH * KW, Cin, Cout), lambda i: (0, 0, 0))],
        out_specs=(pl.BlockSpec((tm, Cout), lambda i: (i, 0)),
                   pl.BlockSpec((1, 2, Cout), lambda i: (i, 0, 0))),
        compiler_params=pltpu.CompilerParams(
            dimension_semantics=("parallel",),
            vmem_limit_bytes=vmem1),
        cost_estimate=pl.CostEstimate(
            flops=2 * M * K * Cout,
            transcendentals=0,
            bytes_accessed=(num_blocks * (tr + KH - 1) * Wp * Cin * esz_c
                            + KH * KW * Cin * Cout * esz_c
                            + M * Cout * 4 + num_blocks * 2 * Cout * 4)),
    )(x_blk, w_taps)

    # ---- fold batch statistics into one per-channel affine (tiny) ----
    cnt = jnp.float32(M)
    mean = jnp.sum(part[:, 0, :], axis=0) / cnt
    var = jnp.maximum(jnp.sum(part[:, 1, :], axis=0) / cnt - mean * mean, 0.0)  # biased
    inv_std = jax.lax.rsqrt(var + BN_EPS)
    g = gamma.astype(jnp.float32)
    b = beta.astype(jnp.float32)
    scale = g * inv_std                      # (Cout,)
    shift = b - mean * scale                 # (Cout,)
    # TODO(synk): running_mean/running_var updates and the cross-device stat sync of
    # SynchronizedBatchNorm2d are training-time side effects not returned by forward().

    # ---- pass 2: lane-dense fused affine + cast ----
    G = 128 // math.gcd(Cout, 128)           # smallest G with (G*Cout) % 128 == 0
    if M % G != 0:
        G = 1                                # fall back to the raw (M, Cout) view
    Cl = G * Cout
    R = M // G

    y_view = y_flat.reshape(R, Cl)           # free row-major reshape (no data movement)
    scale_t = jnp.tile(scale.reshape(1, Cout), (1, G))
    shift_t = jnp.tile(shift.reshape(1, Cout), (1, G))

    def pass2_need(rows):
        return 2 * (rows * Cl * 4 + rows * Cl * out_esz + 2 * Cl * 4)

    cand = [d for d in _divisors_desc(R) if d % 8 == 0 or d == R]
    tr2 = cand[-1]
    for d in cand:
        if pass2_need(d) <= blk_budget:
            tr2 = d
            break
    vmem2 = int(min(max(1.4 * pass2_need(tr2) + (1 << 20), 8 << 20), 0.8 * vmem_cap))

    out_slab = pl.pallas_call(
        _bn_affine_kernel,
        out_shape=jax.ShapeDtypeStruct((R, Cl), out_dtype),
        grid=(R // tr2,),
        in_specs=[pl.BlockSpec((tr2, Cl), lambda i: (i, 0)),
                  pl.BlockSpec((1, Cl), lambda i: (0, 0)),
                  pl.BlockSpec((1, Cl), lambda i: (0, 0))],
        out_specs=pl.BlockSpec((tr2, Cl), lambda i: (i, 0)),
        compiler_params=pltpu.CompilerParams(
            dimension_semantics=("parallel",),
            vmem_limit_bytes=vmem2),
        cost_estimate=pl.CostEstimate(
            flops=2 * M * Cout,
            transcendentals=0,
            bytes_accessed=M * Cout * (4 + out_esz) + 2 * Cl * 4),
    )(y_view, scale_t, shift_t)

    out_nhwc = out_slab.reshape(N, Ho, Wo, Cout)
    # TODO(synk): keep the activations channels-last end-to-end if the surrounding model
    # allows; the transposes here exist only for NCHW I/O parity with the PyTorch module.
    return jnp.transpose(out_nhwc, (0, 3, 1, 2))


def _reference(x_nchw, weight_oihw, gamma, beta, padding=(1, 1)):
    """Pure-JAX reference: lax conv + training-mode batch norm (biased variance)."""
    y = jax.lax.conv_general_dilated(
        x_nchw, weight_oihw, window_strides=(1, 1),
        padding=[(padding[0], padding[0]), (padding[1], padding[1])],
        dimension_numbers=("NCHW", "OIHW", "NCHW"))
    mean = jnp.mean(y, axis=(0, 2, 3), keepdims=True)
    var = jnp.mean((y - mean) ** 2, axis=(0, 2, 3), keepdims=True)
    inv = jax.lax.rsqrt(var + BN_EPS)
    return (y - mean) * inv * gamma.reshape(1, -1, 1, 1) + beta.reshape(1, -1, 1, 1)


if __name__ == "__main__":
    # small shapes consistent with the module
    N, Cin, H, W = 2, 4, 16, 16
    Cout, KH, KW = 8, 3, 3

    key = jax.random.PRNGKey(0)
    kx, kw, kg, kb = jax.random.split(key, 4)

    x = jax.random.normal(kx, (N, Cin, H, W), dtype=jnp.float32)
    fan_in = Cin * KH * KW
    weight = jax.random.normal(kw, (Cout, Cin, KH, KW), dtype=jnp.float32) / jnp.sqrt(fan_in)
    # exercise the affine path (module default init would be gamma=1, beta=0)
    gamma = 1.0 + 0.1 * jax.random.normal(kg, (Cout,), dtype=jnp.float32)
    beta = 0.1 * jax.random.normal(kb, (Cout,), dtype=jnp.float32)

    out = conv_bn2d(x, weight, gamma, beta)
    out = jax.block_until_ready(out)

    ref = _reference(x, weight, gamma, beta)
    assert out.shape == (N, Cout, H, W)
    assert jnp.allclose(out, ref, atol=1e-4, rtol=1e-4), "mismatch vs reference"

    print("KERNEL_OK")
</pallas_src>

<mosaic_0001>
module attributes {stable_mosaic.version = 11 : i64} {
  func.func @kernel(%arg0: i32, %arg1: memref<1x18x18x4xf32, #tpu.memory_space<vmem>>, %arg2: memref<9x4x8xf32, #tpu.memory_space<vmem>>, %arg3: memref<256x8xf32, #tpu.memory_space<vmem>>, %arg4: memref<1x2x8xf32, #tpu.memory_space<vmem>>) attributes {dimension_semantics = [#tpu.dimension_semantics<parallel>], iteration_bounds = array<i64: 2>, scalar_prefetch = 0 : i64, scratch_operands = 0 : i64, tpu.core_type = #tpu.core_type<tc>, window_params = [{transform_indices = @transform_0, window_bounds = array<i64: 1, 18, 18, 4>}, {pipeline_mode = #tpu.pipeline_mode<synchronous>, transform_indices = @transform_1, window_bounds = array<i64: 9, 4, 8>}, {transform_indices = @transform_2, window_bounds = array<i64: 256, 8>}, {transform_indices = @transform_3, window_bounds = array<i64: 1, 2, 8>}]} {
    %cst = arith.constant 0.000000e+00 : f32
    %0 = vector.broadcast %cst : f32 to vector<256x8xf32>
    %c0 = arith.constant 0 : index
    %c0_0 = arith.constant 0 : index
    %c0_1 = arith.constant 0 : index
    %c0_2 = arith.constant 0 : index
    %1 = vector.load %arg1[%c0, %c0_0, %c0_1, %c0_2] : memref<1x18x18x4xf32, #tpu.memory_space<vmem>>, vector<1x16x16x4xf32>
    %2 = vector.shape_cast %1 : vector<1x16x16x4xf32> to vector<16x16x4xf32>
    %3 = vector.shape_cast %2 : vector<16x16x4xf32> to vector<256x4xf32>
    %c0_3 = arith.constant 0 : index
    %c0_4 = arith.constant 0 : index
    %c0_5 = arith.constant 0 : index
    %4 = vector.load %arg2[%c0_3, %c0_4, %c0_5] : memref<9x4x8xf32, #tpu.memory_space<vmem>>, vector<1x4x8xf32>
    %5 = vector.shape_cast %4 : vector<1x4x8xf32> to vector<4x8xf32>
    %cst_6 = arith.constant dense<0.000000e+00> : vector<256x8xf32>
    %6 = tpu.matmul %3, %5, %cst_6 {dimension_numbers = #tpu.dot_dimension_numbers<[1], [0], [0], [1], [0, 0, 1, 1], [], []>} : vector<256x4xf32>, vector<4x8xf32>, vector<256x8xf32> -> vector<256x8xf32>
    %7 = arith.addf %0, %6 : vector<256x8xf32>
    %c0_7 = arith.constant 0 : index
    %c0_8 = arith.constant 0 : index
    %c1 = arith.constant 1 : index
    %c0_9 = arith.constant 0 : index
    %8 = vector.load %arg1[%c0_7, %c0_8, %c1, %c0_9] : memref<1x18x18x4xf32, #tpu.memory_space<vmem>>, vector<1x16x16x4xf32>
    %9 = vector.shape_cast %8 : vector<1x16x16x4xf32> to vector<16x16x4xf32>
    %10 = vector.shape_cast %9 : vector<16x16x4xf32> to vector<256x4xf32>
    %c1_10 = arith.constant 1 : index
    %c0_11 = arith.constant 0 : index
    %c0_12 = arith.constant 0 : index
    %11 = vector.load %arg2[%c1_10, %c0_11, %c0_12] : memref<9x4x8xf32, #tpu.memory_space<vmem>>, vector<1x4x8xf32>
    %12 = vector.shape_cast %11 : vector<1x4x8xf32> to vector<4x8xf32>
    %cst_13 = arith.constant dense<0.000000e+00> : vector<256x8xf32>
    %13 = tpu.matmul %10, %12, %cst_13 {dimension_numbers = #tpu.dot_dimension_numbers<[1], [0], [0], [1], [0, 0, 1, 1], [], []>} : vector<256x4xf32>, vector<4x8xf32>, vector<256x8xf32> -> vector<256x8xf32>
    %14 = arith.addf %7, %13 : vector<256x8xf32>
    %c0_14 = arith.constant 0 : index
    %c0_15 = arith.constant 0 : index
    %c2 = arith.constant 2 : index
    %c0_16 = arith.constant 0 : index
    %15 = vector.load %arg1[%c0_14, %c0_15, %c2, %c0_16] : memref<1x18x18x4xf32, #tpu.memory_space<vmem>>, vector<1x16x16x4xf32>
    %16 = vector.shape_cast %15 : vector<1x16x16x4xf32> to vector<16x16x4xf32>
    %17 = vector.shape_cast %16 : vector<16x16x4xf32> to vector<256x4xf32>
    %c2_17 = arith.constant 2 : index
    %c0_18 = arith.constant 0 : index
    %c0_19 = arith.constant 0 : index
    %18 = vector.load %arg2[%c2_17, %c0_18, %c0_19] : memref<9x4x8xf32, #tpu.memory_space<vmem>>, vector<1x4x8xf32>
    %19 = vector.shape_cast %18 : vector<1x4x8xf32> to vector<4x8xf32>
    %cst_20 = arith.constant dense<0.000000e+00> : vector<256x8xf32>
    %20 = tpu.matmul %17, %19, %cst_20 {dimension_numbers = #tpu.dot_dimension_numbers<[1], [0], [0], [1], [0, 0, 1, 1], [], []>} : vector<256x4xf32>, vector<4x8xf32>, vector<256x8xf32> -> vector<256x8xf32>
    %21 = arith.addf %14, %20 : vector<256x8xf32>
    %c0_21 = arith.constant 0 : index
    %c1_22 = arith.constant 1 : index
    %c0_23 = arith.constant 0 : index
    %c0_24 = arith.constant 0 : index
    %22 = vector.load %arg1[%c0_21, %c1_22, %c0_23, %c0_24] : memref<1x18x18x4xf32, #tpu.memory_space<vmem>>, vector<1x16x16x4xf32>
    %23 = vector.shape_cast %22 : vector<1x16x16x4xf32> to vector<16x16x4xf32>
    %24 = vector.shape_cast %23 : vector<16x16x4xf32> to vector<256x4xf32>
    %c3 = arith.constant 3 : index
    %c0_25 = arith.constant 0 : index
    %c0_26 = arith.constant 0 : index
    %25 = vector.load %arg2[%c3, %c0_25, %c0_26] : memref<9x4x8xf32, #tpu.memory_space<vmem>>, vector<1x4x8xf32>
    %26 = vector.shape_cast %25 : vector<1x4x8xf32> to vector<4x8xf32>
    %cst_27 = arith.constant dense<0.000000e+00> : vector<256x8xf32>
    %27 = tpu.matmul %24, %26, %cst_27 {dimension_numbers = #tpu.dot_dimension_numbers<[1], [0], [0], [1], [0, 0, 1, 1], [], []>} : vector<256x4xf32>, vector<4x8xf32>, vector<256x8xf32> -> vector<256x8xf32>
    %28 = arith.addf %21, %27 : vector<256x8xf32>
    %c0_28 = arith.constant 0 : index
    %c1_29 = arith.constant 1 : index
    %c1_30 = arith.constant 1 : index
    %c0_31 = arith.constant 0 : index
    %29 = vector.load %arg1[%c0_28, %c1_29, %c1_30, %c0_31] : memref<1x18x18x4xf32, #tpu.memory_space<vmem>>, vector<1x16x16x4xf32>
    %30 = vector.shape_cast %29 : vector<1x16x16x4xf32> to vector<16x16x4xf32>
    %31 = vector.shape_cast %30 : vector<16x16x4xf32> to vector<256x4xf32>
    %c4 = arith.constant 4 : index
    %c0_32 = arith.constant 0 : index
    %c0_33 = arith.constant 0 : index
    %32 = vector.load %arg2[%c4, %c0_32, %c0_33] : memref<9x4x8xf32, #tpu.memory_space<vmem>>, vector<1x4x8xf32>
    %33 = vector.shape_cast %32 : vector<1x4x8xf32> to vector<4x8xf32>
    %cst_34 = arith.constant dense<0.000000e+00> : vector<256x8xf32>
    %34 = tpu.matmul %31, %33, %cst_34 {dimension_numbers = #tpu.dot_dimension_numbers<[1], [0], [0], [1], [0, 0, 1, 1], [], []>} : vector<256x4xf32>, vector<4x8xf32>, vector<256x8xf32> -> vector<256x8xf32>
    %35 = arith.addf %28, %34 : vector<256x8xf32>
    %c0_35 = arith.constant 0 : index
    %c1_36 = arith.constant 1 : index
    %c2_37 = arith.constant 2 : index
    %c0_38 = arith.constant 0 : index
    %36 = vector.load %arg1[%c0_35, %c1_36, %c2_37, %c0_38] : memref<1x18x18x4xf32, #tpu.memory_space<vmem>>, vector<1x16x16x4xf32>
    %37 = vector.shape_cast %36 : vector<1x16x16x4xf32> to vector<16x16x4xf32>
    %38 = vector.shape_cast %37 : vector<16x16x4xf32> to vector<256x4xf32>
    %c5 = arith.constant 5 : index
    %c0_39 = arith.constant 0 : index
    %c0_40 = arith.constant 0 : index
    %39 = vector.load %arg2[%c5, %c0_39, %c0_40] : memref<9x4x8xf32, #tpu.memory_space<vmem>>, vector<1x4x8xf32>
    %40 = vector.shape_cast %39 : vector<1x4x8xf32> to vector<4x8xf32>
    %cst_41 = arith.constant dense<0.000000e+00> : vector<256x8xf32>
    %41 = tpu.matmul %38, %40, %cst_41 {dimension_numbers = #tpu.dot_dimension_numbers<[1], [0], [0], [1], [0, 0, 1, 1], [], []>} : vector<256x4xf32>, vector<4x8xf32>, vector<256x8xf32> -> vector<256x8xf32>
    %42 = arith.addf %35, %41 : vector<256x8xf32>
    %c0_42 = arith.constant 0 : index
    %c2_43 = arith.constant 2 : index
    %c0_44 = arith.constant 0 : index
    %c0_45 = arith.constant 0 : index
    %43 = vector.load %arg1[%c0_42, %c2_43, %c0_44, %c0_45] : memref<1x18x18x4xf32, #tpu.memory_space<vmem>>, vector<1x16x16x4xf32>
    %44 = vector.shape_cast %43 : vector<1x16x16x4xf32> to vector<16x16x4xf32>
    %45 = vector.shape_cast %44 : vector<16x16x4xf32> to vector<256x4xf32>
    %c6 = arith.constant 6 : index
    %c0_46 = arith.constant 0 : index
    %c0_47 = arith.constant 0 : index
    %46 = vector.load %arg2[%c6, %c0_46, %c0_47] : memref<9x4x8xf32, #tpu.memory_space<vmem>>, vector<1x4x8xf32>
    %47 = vector.shape_cast %46 : vector<1x4x8xf32> to vector<4x8xf32>
    %cst_48 = arith.constant dense<0.000000e+00> : vector<256x8xf32>
    %48 = tpu.matmul %45, %47, %cst_48 {dimension_numbers = #tpu.dot_dimension_numbers<[1], [0], [0], [1], [0, 0, 1, 1], [], []>} : vector<256x4xf32>, vector<4x8xf32>, vector<256x8xf32> -> vector<256x8xf32>
    %49 = arith.addf %42, %48 : vector<256x8xf32>
    %c0_49 = arith.constant 0 : index
    %c2_50 = arith.constant 2 : index
    %c1_51 = arith.constant 1 : index
    %c0_52 = arith.constant 0 : index
    %50 = vector.load %arg1[%c0_49, %c2_50, %c1_51, %c0_52] : memref<1x18x18x4xf32, #tpu.memory_space<vmem>>, vector<1x16x16x4xf32>
    %51 = vector.shape_cast %50 : vector<1x16x16x4xf32> to vector<16x16x4xf32>
    %52 = vector.shape_cast %51 : vector<16x16x4xf32> to vector<256x4xf32>
    %c7 = arith.constant 7 : index
    %c0_53 = arith.constant 0 : index
    %c0_54 = arith.constant 0 : index
    %53 = vector.load %arg2[%c7, %c0_53, %c0_54] : memref<9x4x8xf32, #tpu.memory_space<vmem>>, vector<1x4x8xf32>
    %54 = vector.shape_cast %53 : vector<1x4x8xf32> to vector<4x8xf32>
    %cst_55 = arith.constant dense<0.000000e+00> : vector<256x8xf32>
    %55 = tpu.matmul %52, %54, %cst_55 {dimension_numbers = #tpu.dot_dimension_numbers<[1], [0], [0], [1], [0, 0, 1, 1], [], []>} : vector<256x4xf32>, vector<4x8xf32>, vector<256x8xf32> -> vector<256x8xf32>
    %56 = arith.addf %49, %55 : vector<256x8xf32>
    %c0_56 = arith.constant 0 : index
    %c2_57 = arith.constant 2 : index
    %c2_58 = arith.constant 2 : index
    %c0_59 = arith.constant 0 : index
    %57 = vector.load %arg1[%c0_56, %c2_57, %c2_58, %c0_59] : memref<1x18x18x4xf32, #tpu.memory_space<vmem>>, vector<1x16x16x4xf32>
    %58 = vector.shape_cast %57 : vector<1x16x16x4xf32> to vector<16x16x4xf32>
    %59 = vector.shape_cast %58 : vector<16x16x4xf32> to vector<256x4xf32>
    %c8 = arith.constant 8 : index
    %c0_60 = arith.constant 0 : index
    %c0_61 = arith.constant 0 : index
    %60 = vector.load %arg2[%c8, %c0_60, %c0_61] : memref<9x4x8xf32, #tpu.memory_space<vmem>>, vector<1x4x8xf32>
    %61 = vector.shape_cast %60 : vector<1x4x8xf32> to vector<4x8xf32>
    %cst_62 = arith.constant dense<0.000000e+00> : vector<256x8xf32>
    %62 = tpu.matmul %59, %61, %cst_62 {dimension_numbers = #tpu.dot_dimension_numbers<[1], [0], [0], [1], [0, 0, 1, 1], [], []>} : vector<256x4xf32>, vector<4x8xf32>, vector<256x8xf32> -> vector<256x8xf32>
    %63 = arith.addf %56, %62 : vector<256x8xf32>
    %cst_63 = arith.constant dense<0.000000e+00> : vector<8xf32>
    %64 = vector.multi_reduction <add>, %63, %cst_63 [0] : vector<256x8xf32> to vector<8xf32>
    %65 = vector.shape_cast %64 : vector<8xf32> to vector<1x8xf32>
    %66 = vector.shape_cast %65 : vector<1x8xf32> to vector<1x1x8xf32>
    %c0_64 = arith.constant 0 : index
    %c0_65 = arith.constant 0 : index
    %c0_66 = arith.constant 0 : index
    %67 = vector.load %arg4[%c0_64, %c0_65, %c0_66] : memref<1x2x8xf32, #tpu.memory_space<vmem>>, vector<1x1x8xf32>
    tpu.vector_store %arg4[%c0_64, %c0_65, %c0_66], %66 {strides = array<i32>} : memref<1x2x8xf32, #tpu.memory_space<vmem>>, vector<1x1x8xf32>,
    %68 = arith.mulf %63, %63 : vector<256x8xf32>
    %cst_67 = arith.constant dense<0.000000e+00> : vector<8xf32>
    %69 = vector.multi_reduction <add>, %68, %cst_67 [0] : vector<256x8xf32> to vector<8xf32>
    %70 = vector.shape_cast %69 : vector<8xf32> to vector<1x8xf32>
    %71 = vector.shape_cast %70 : vector<1x8xf32> to vector<1x1x8xf32>
    %c0_68 = arith.constant 0 : index
    %c1_69 = arith.constant 1 : index
    %c0_70 = arith.constant 0 : index
    %72 = vector.load %arg4[%c0_68, %c1_69, %c0_70] : memref<1x2x8xf32, #tpu.memory_space<vmem>>, vector<1x1x8xf32>
    tpu.vector_store %arg4[%c0_68, %c1_69, %c0_70], %71 {strides = array<i32>} : memref<1x2x8xf32, #tpu.memory_space<vmem>>, vector<1x1x8xf32>,
    %c0_71 = arith.constant 0 : index
    %c0_72 = arith.constant 0 : index
    %73 = vector.load %arg3[%c0_71, %c0_72] : memref<256x8xf32, #tpu.memory_space<vmem>>, vector<256x8xf32>
    tpu.vector_store %arg3[%c0_71, %c0_72], %63 {strides = array<i32>} : memref<256x8xf32, #tpu.memory_space<vmem>>, vector<256x8xf32>,
    return
  }
  func.func @transform_0(%arg0: i32) -> (i32, i32, i32, i32) {
    %c0_i32 = arith.constant 0 : i32
    %c0_i32_0 = arith.constant 0 : i32
    %c0_i32_1 = arith.constant 0 : i32
    %c0_i32_2 = arith.constant 0 : i32
    return %arg0, %c0_i32, %c0_i32_0, %c0_i32_1 : i32, i32, i32, i32
  }
  func.func @transform_1(%arg0: i32) -> (i32, i32, i32) {
    %c0_i32 = arith.constant 0 : i32
    %c0_i32_0 = arith.constant 0 : i32
    %c0_i32_1 = arith.constant 0 : i32
    %c0_i32_2 = arith.constant 0 : i32
    return %c0_i32, %c0_i32_0, %c0_i32_1 : i32, i32, i32
  }
  func.func @transform_2(%arg0: i32) -> (i32, i32) {
    %c0_i32 = arith.constant 0 : i32
    %c0_i32_0 = arith.constant 0 : i32
    return %arg0, %c0_i32 : i32, i32
  }
  func.func @transform_3(%arg0: i32) -> (i32, i32, i32) {
    %c0_i32 = arith.constant 0 : i32
    %c0_i32_0 = arith.constant 0 : i32
    %c0_i32_1 = arith.constant 0 : i32
    return %arg0, %c0_i32, %c0_i32_0 : i32, i32, i32
  }
}

module attributes {stable_mosaic.version = 11 : i64} {
  func.func @_bn_affine_kernel(%arg0: i32, %arg1: memref<32x128xf32, #tpu.memory_space<vmem>>, %arg2: memref<1x128xf32, #tpu.memory_space<vmem>>, %arg3: memref<1x128xf32, #tpu.memory_space<vmem>>, %arg4: memref<32x128xf32, #tpu.memory_space<vmem>>) attributes {dimension_semantics = [#tpu.dimension_semantics<parallel>], iteration_bounds = array<i64: 1>, scalar_prefetch = 0 : i64, scratch_operands = 0 : i64, tpu.core_type = #tpu.core_type<tc>, window_params = [{transform_indices = @transform_0, window_bounds = array<i64: 32, 128>}, {pipeline_mode = #tpu.pipeline_mode<synchronous>, transform_indices = @transform_1, window_bounds = array<i64: 1, 128>}, {pipeline_mode = #tpu.pipeline_mode<synchronous>, transform_indices = @transform_2, window_bounds = array<i64: 1, 128>}, {transform_indices = @transform_3, window_bounds = array<i64: 32, 128>}]} {
    %c0 = arith.constant 0 : index
    %c0_0 = arith.constant 0 : index
    %0 = vector.load %arg1[%c0, %c0_0] : memref<32x128xf32, #tpu.memory_space<vmem>>, vector<32x128xf32>
    %c0_1 = arith.constant 0 : index
    %c0_2 = arith.constant 0 : index
    %1 = vector.load %arg2[%c0_1, %c0_2] : memref<1x128xf32, #tpu.memory_space<vmem>>, vector<1x128xf32>
    %2 = vector.broadcast %1 : vector<1x128xf32> to vector<32x128xf32>
    %3 = arith.mulf %0, %2 : vector<32x128xf32>
    %c0_3 = arith.constant 0 : index
    %c0_4 = arith.constant 0 : index
    %4 = vector.load %arg3[%c0_3, %c0_4] : memref<1x128xf32, #tpu.memory_space<vmem>>, vector<1x128xf32>
    %5 = vector.broadcast %4 : vector<1x128xf32> to vector<32x128xf32>
    %6 = arith.addf %3, %5 : vector<32x128xf32>
    %c0_5 = arith.constant 0 : index
    %c0_6 = arith.constant 0 : index
    %7 = vector.load %arg4[%c0_5, %c0_6] : memref<32x128xf32, #tpu.memory_space<vmem>>, vector<32x128xf32>
    tpu.vector_store %arg4[%c0_5, %c0_6], %6 {strides = array<i32>} : memref<32x128xf32, #tpu.memory_space<vmem>>, vector<32x128xf32>,
    return
  }
  func.func @transform_0(%arg0: i32) -> (i32, i32) {
    %c0_i32 = arith.constant 0 : i32
    %c0_i32_0 = arith.constant 0 : i32
    return %arg0, %c0_i32 : i32, i32
  }
  func.func @transform_1(%arg0: i32) -> (i32, i32) {
    %c0_i32 = arith.constant 0 : i32
    %c0_i32_0 = arith.constant 0 : i32
    %c0_i32_1 = arith.constant 0 : i32
    return %c0_i32, %c0_i32_0 : i32, i32
  }
  func.func @transform_2(%arg0: i32) -> (i32, i32) {
    %c0_i32 = arith.constant 0 : i32
    %c0_i32_0 = arith.constant 0 : i32
    %c0_i32_1 = arith.constant 0 : i32
    return %c0_i32, %c0_i32_0 : i32, i32
  }
  func.func @transform_3(%arg0: i32) -> (i32, i32) {
    %c0_i32 = arith.constant 0 : i32
    %c0_i32_0 = arith.constant 0 : i32
    return %arg0, %c0_i32 : i32, i32
  }
}

</mosaic_0001>

<llo_original>
// kernel: conv_bn2d.3
$region0: #{conv_bn2d.3}
  #allocation0 [shape = 'u32[]', space=smem, size = 0x4, offset = 0x4, fixed_abs, tag = 'smem constant byte address 0x4 - core index']
  #allocation1 [shape = 'u32[144,128]{1,0:T(1,128)}', space=vmem, size = 0x12000, scoped, tag = 'internal scratch']
  %s0 = inlined_call_operand.vmem [shape: f32[32,128], index: 0, kind: input, shape index: {}]
  %s1 = inlined_call_operand.vmem [shape: f32[1,128], index: 1, kind: input, shape index: {}]
  %s2 = inlined_call_operand.vmem [shape: f32[1,128], index: 2, kind: input, shape index: {}]
  %s3 = inlined_call_operand.vmem [shape: f32[32,128], index: 3, kind: output, shape index: {}]
  %s4 = sld [smem:[#allocation0]]
  $region22: #{conv_bn2d.3} parent=0
    _
  %s6 = ssub.s32 1, %s4
  %s7 = scalar_select 0, %s6, %s4
  // Predicated region
  $region2: #{conv_bn2d.3} parent=0 // pred_check
    _
  $region3: #{conv_bn2d.3} parent=0 // pred_check_branch
    %9 = sbr.rel (0) target = $region5
  $region4: #{conv_bn2d.3} parent=0 // pred_region
    _
  $region5: #{conv_bn2d.3} parent=0 // pred_fallthru
    _
  // Predicated region
  $region6: #{conv_bn2d.3} parent=0 // pred_check
    _
  $region7: #{conv_bn2d.3} parent=0 // pred_check_branch
    %11 = sbr.rel (0) target = $region9
  $region8: #{conv_bn2d.3} parent=0 // pred_region
    _
  $region9: #{conv_bn2d.3} parent=0 // pred_fallthru
    _
  // Predicated region
  $region10: #{conv_bn2d.3} parent=0 // pred_check
    _
  $region11: #{conv_bn2d.3} parent=0 // pred_check_branch
    %13 = sbr.rel (0) target = $region13
  $region12: #{conv_bn2d.3} parent=0 // pred_region
    _
  $region13: #{conv_bn2d.3} parent=0 // pred_fallthru
    _
  %v14 = vld [vmem:[%s0] sm:$0xff]
  %v15 = vld [vmem:[%s0 + $0x8] sm:$0xff]
  %v16 = vld [vmem:[%s0 + $0x10] sm:$0xff]
  %v17 = vld [vmem:[%s0 + $0x18] sm:$0xff]
  %v18 = vld [vmem:[%s1] sm:$0x1]
  %v20 = vlaneseq
  %v21 = vshrl.u32 %v20, 7
  %v22 = vsub.s32 0, %v21
  %v23 = vrot.slane %v18, %v22
  %v25 = vmul.f32 %v14, %v23
  %v26 = vmul.f32 %v15, %v23
  %v27 = vmul.f32 %v16, %v23
  %v28 = vmul.f32 %v17, %v23
  %v29 = vld [vmem:[%s2] sm:$0x1]
  %v31 = vlaneseq
  %v32 = vshrl.u32 %v31, 7
  %v33 = vsub.s32 0, %v32
  %v34 = vrot.slane %v29, %v33
  %v36 = vadd.f32 %v25, %v34
  %v37 = vadd.f32 %v26, %v34
  %v38 = vadd.f32 %v27, %v34
  %v39 = vadd.f32 %v28, %v34
  %40 = vst [vmem:[%s3] sm:$0xff] %v36
  %41 = vst [vmem:[%s3 + $0x8] sm:$0xff] %v37
  %42 = vst [vmem:[%s3 + $0x10] sm:$0xff] %v38
  %43 = vst [vmem:[%s3 + $0x18] sm:$0xff] %v39
  // Predicated region
  $region14: #{conv_bn2d.3} parent=0 // pred_check
    _
  $region15: #{conv_bn2d.3} parent=0 // pred_check_branch
    %45 = sbr.rel (0) target = $region17
  $region16: #{conv_bn2d.3} parent=0 // pred_region
    _
  $region17: #{conv_bn2d.3} parent=0 // pred_fallthru
    _
  // Predicated region
  $region18: #{conv_bn2d.3} parent=0 // pred_check
    _
  $region19: #{conv_bn2d.3} parent=0 // pred_check_branch
    %47 = sbr.rel (0) target = $region21
  $region20: #{conv_bn2d.3} parent=0 // pred_region
    _
  $region21: #{conv_bn2d.3} parent=0 // pred_fallthru
    _

// kernel: conv_bn2d.2
$region0: #{conv_bn2d.2}
  #allocation0 [shape = 'u32[]', space=smem, size = 0x4, offset = 0x4, fixed_abs, tag = 'smem constant byte address 0x4 - core index']
  #allocation1 [shape = 'u32[144,128]{1,0:T(1,128)}', space=vmem, size = 0x12000, scoped, tag = 'internal scratch']
  %s0 = inlined_call_operand.vmem [shape: f32[2,18,18,4], index: 0, kind: input, shape index: {}]
  %s1 = inlined_call_operand.vmem [shape: f32[9,4,8], index: 1, kind: input, shape index: {}]
  %s2 = inlined_call_operand.vmem [shape: f32[512,8], index: 2, kind: output, shape index: {0}]
  %s3 = inlined_call_operand.vmem [shape: f32[2,2,8], index: 3, kind: output, shape index: {1}]
  %4 = xla_tuple %s2, %s3
  %s5 = sld [smem:[#allocation0]]
  $region49: #{conv_bn2d.2} parent=0
    _
  %s7 = ssub.s32 1, %s5
  %s8 = scalar_select 0, %s7, %s5
  loop: start=0, step=1, limit=4
  $region2: #{conv_bn2d.2} parent=0 // loop_pre_header
    _
  $region3: #{conv_bn2d.2} parent=0 // loop_header
    %s10 = sphi 0, %s14
    %p11 = scmp.ge.s32.totalorder %s10, 4
    %s20 = sphi 0, %s22
    %s23 = sphi 0, %s20
    %s24 = sphi 0, %s23
    %s40 = sphi 0, %s24
    %s44 = sphi 0, %s44
    %s46 = sphi 0, %s44
    %s47 = sphi 0, %s46
    %s61 = sphi 0, %s47
    %s67 = sphi 0, %s69
    %s70 = sphi 0, %s67
    %s71 = sphi 0, %s70
    %s87 = sphi 0, %s71
    %s93 = sphi 0, %s95
    %s96 = sphi 0, %s93
    %s97 = sphi 0, %s96
    %s113 = sphi 0, %s97
  $region4: #{conv_bn2d.2} parent=0 // loop_header_branch
    %13 = sbr.rel (%p11) target = $region8
  $region5: #{conv_bn2d.2} parent=0 // loop_body
    %s15 = ssub.s32 %s10, 1
    %s16 = ssub.s32 %s10, 2
    %s17 = sadd.s32 %s10, 1
    %s18 = ssub.s32 %s10, %s17
    %p19 = scmp.eq.s32.totalorder %s18, 0
    %s21 = sadd.s32 %s20, 1
    %s22 = scalar_select %p19, %s20, %s21
    %p25 = pneg %p19
    %p26 = scmp.eq.s32.totalorder %s10, 1
    %p27 = por %p25, %p26
    %p28 = scmp.ne.s32.totalorder %s20, %s23
    %p29 = scmp.eq.s32.totalorder %s10, 0
    %p30 = por %p28, %p29
    %p31 = scmp.ne.s32.totalorder %s20, %s23
    %p32 = scmp.eq.s32.totalorder %s15, 1
    %p33 = por %p31, %p32
    %p34 = scmp.ne.s32.totalorder %s23, %s24
    %p35 = scmp.eq.s32.totalorder %s15, 0
    %p36 = por %p34, %p35
    %p37 = scmp.ne.s32.totalorder %s23, %s24
    %p38 = scmp.eq.s32.totalorder %s16, 1
    %p39 = por %p37, %p38
    %p41 = scmp.ne.s32.totalorder %s24, %s40
    %p42 = scmp.eq.s32.totalorder %s16, 0
    %p43 = por %p41, %p42
    %s45 = sadd.s32 %s44, 1
    %p48 = scmp.eq.s32.totalorder %s10, 1
    %p49 = scmp.ne.s32.totalorder %s44, %s46
    %p50 = scmp.eq.s32.totalorder %s10, 0
    %p51 = por %p49, %p50
    %p52 = scmp.ne.s32.totalorder %s44, %s46
    %p53 = scmp.eq.s32.totalorder %s15, 1
    %p54 = por %p52, %p53
    %p55 = scmp.ne.s32.totalorder %s46, %s47
    %p56 = scmp.eq.s32.totalorder %s15, 0
    %p57 = por %p55, %p56
    %p58 = scmp.ne.s32.totalorder %s46, %s47
    %p59 = scmp.eq.s32.totalorder %s16, 1
    %p60 = por %p58, %p59
    %p62 = scmp.ne.s32.totalorder %s47, %s61
    %p63 = scmp.eq.s32.totalorder %s16, 0
    %p64 = por %p62, %p63
    %s65 = ssub.s32 %s10, %s17
    %p66 = scmp.eq.s32.totalorder %s65, 0
    %s68 = sadd.s32 %s67, 1
    %s69 = scalar_select %p66, %s67, %s68
    %p72 = pneg %p66
    %p73 = scmp.eq.s32.totalorder %s10, 1
    %p74 = por %p72, %p73
    %p75 = scmp.ne.s32.totalorder %s67, %s70
    %p76 = scmp.eq.s32.totalorder %s10, 0
    %p77 = por %p75, %p76
    %p78 = scmp.ne.s32.totalorder %s67, %s70
    %p79 = scmp.eq.s32.totalorder %s15, 1
    %p80 = por %p78, %p79
    %p81 = scmp.ne.s32.totalorder %s70, %s71
    %p82 = scmp.eq.s32.totalorder %s15, 0
    %p83 = por %p81, %p82
    %p84 = scmp.ne.s32.totalorder %s70, %s71
    %p85 = scmp.eq.s32.totalorder %s16, 1
    %p86 = por %p84, %p85
    %p88 = scmp.ne.s32.totalorder %s71, %s87
    %p89 = scmp.eq.s32.totalorder %s16, 0
    %p90 = por %p88, %p89
    %s91 = ssub.s32 %s10, %s17
    %p92 = scmp.eq.s32.totalorder %s91, 0
    %s94 = sadd.s32 %s93, 1
    %s95 = scalar_select %p92, %s93, %s94
    %p98 = pneg %p92
    %p99 = scmp.eq.s32.totalorder %s10, 1
    %p100 = por %p98, %p99
    %p101 = scmp.ne.s32.totalorder %s93, %s96
    %p102 = scmp.eq.s32.totalorder %s10, 0
    %p103 = por %p101, %p102
    %p104 = scmp.ne.s32.totalorder %s93, %s96
    %p105 = scmp.eq.s32.totalorder %s15, 1
    %p106 = por %p104, %p105
    %p107 = scmp.ne.s32.totalorder %s96, %s97
    %p108 = scmp.eq.s32.totalorder %s15, 0
    %p109 = por %p107, %p108
    %p110 = scmp.ne.s32.totalorder %s96, %s97
    %p111 = scmp.eq.s32.totalorder %s16, 1
    %p112 = por %p110, %p111
    %p114 = scmp.ne.s32.totalorder %s97, %s113
    %p115 = scmp.eq.s32.totalorder %s16, 0
    %p116 = por %p114, %p115
    %p117 = scmp.le.s32.totalorder 1, %s10
    %p118 = scmp.lt.s32.totalorder %s10, 3
    %p119 = pnand %p117, %p118
    %p120 = pneg %p119
    // Predicated region
    $region9: #{conv_bn2d.2} parent=5 // pred_check
      _
    $region10: #{conv_bn2d.2} parent=5 // pred_check_branch
      %122 = sbr.rel (%p119) target = $region12
    $region11: #{conv_bn2d.2} parent=5 // pred_region
      %s123 = ssub.s32 %s10, 1
      // Predicated region
      $region13: #{conv_bn2d.2} parent=11 // pred_check
        %p124 = pneg %p57
      $region14: #{conv_bn2d.2} parent=11 // pred_check_branch
        %126 = sbr.rel (%p124) target = $region16
      $region15: #{conv_bn2d.2} parent=11 // pred_region
        _
      $region16: #{conv_bn2d.2} parent=11 // pred_fallthru
        _
    $region12: #{conv_bn2d.2} parent=5 // pred_fallthru
      _
    %p127 = scmp.lt.s32.totalorder %s10, 2
    // Predicated region
    $region17: #{conv_bn2d.2} parent=5 // pred_check
      %p128 = pneg %p127
    $region18: #{conv_bn2d.2} parent=5 // pred_check_branch
      %130 = sbr.rel (%p128) target = $region20
    $region19: #{conv_bn2d.2} parent=5 // pred_region
      // Predicated region
      $region21: #{conv_bn2d.2} parent=19 // pred_check
        %p131 = pneg %p30
      $region22: #{conv_bn2d.2} parent=19 // pred_check_branch
        %133 = sbr.rel (%p131) target = $region24
      $region23: #{conv_bn2d.2} parent=19 // pred_region
        %p134 = scmp.lt.s32.totalorder %s10, 1
        %s135 = scalar_select %p134, %s10, 1
        %s136 = smul.addr %s135, 54
        %s137 = smul.addr %s136, 8
        %s138 = scalar_lea.vmem %s0, %s137
      $region24: #{conv_bn2d.2} parent=19 // pred_fallthru
        _
    $region20: #{conv_bn2d.2} parent=5 // pred_fallthru
      _
    %p139 = scmp.le.s32.totalorder 1, %s10
    %p140 = scmp.lt.s32.totalorder %s10, 3
    %p141 = pnand %p139, %p140
    %p142 = pneg %p141
    // Predicated region
    $region25: #{conv_bn2d.2} parent=5 // pred_check
      _
    $region26: #{conv_bn2d.2} parent=5 // pred_check_branch
      %144 = sbr.rel (%p141) target = $region28
    $region27: #{conv_bn2d.2} parent=5 // pred_region
      %s145 = ssub.s32 %s10, 1
      %p146 = scmp.lt.s32.totalorder %s15, 1
      %s147 = scalar_select %p146, %s15, 1
      %s148 = smul.addr %s147, 54
      %s149 = smul.addr %s148, 8
      %s150 = scalar_lea.vmem %s0, %s149
      %p151 = pneg %p36
      %p152 = pneg %p33
      %p153 = pneg %p57
      %p154 = pneg %p54
      %p155 = pneg %p83
      %p156 = pneg %p80
      %s157 = smul.u32 32, %s15
      %p158 = scmp.lt.s32.totalorder %s157, 63
      %s159 = scalar_select %p158, %s157, 63
      %s160 = smul.addr %s159, 8
      %s161 = scalar_lea.vmem %s2, %s160
      %p162 = pneg %p109
      %p163 = pneg %p106
      %p164 = scmp.lt.s32.totalorder %s15, 1
      %s165 = scalar_select %p164, %s15, 1
      %s166 = smul.addr %s165, 2
      %s167 = scalar_lea.vmem %s3, %s166
      %p168 = scmp.lt.s32.totalorder %s15, 1
      %s169 = scalar_select %p168, %s15, 1
      %s170 = smul.addr %s169, 54
      %s171 = smul.addr %s170, 8
      %s172 = scalar_lea.vmem %s0, %s171
      %s173 = smul.u32 32, %s15
      %p174 = scmp.lt.s32.totalorder %s173, 63
      %s175 = scalar_select %p174, %s173, 63
      %s176 = smul.addr %s175, 8
      %s177 = scalar_lea.vmem %s2, %s176
      %s178 = smul.u32 32, %s15
      %p179 = scmp.lt.s32.totalorder %s15, 1
      %s180 = scalar_select %p179, %s15, 1
      %s181 = smul.addr %s180, 2
      %s182 = scalar_lea.vmem %s3, %s181
      %v183 = vld [vmem:[%s172] sm:$0xff]
      %v184 = vld [vmem:[%s172 + $0x8] sm:$0xff]
      %v185 = vld [vmem:[%s172 + $0x18] sm:$0xff]
      %v186 = vld [vmem:[%s172 + $0x20] sm:$0xff]
      %v187 = vld [vmem:[%s172 + $0x30] sm:$0xff]
      %v188 = vld [vmem:[%s172 + $0x38] sm:$0xff]
      %v189 = vld [vmem:[%s172 + $0x48] sm:$0xff]
      %v190 = vld [vmem:[%s172 + $0x50] sm:$0xff]
      %v191 = vld [vmem:[%s172 + $0x60] sm:$0xff]
      %v192 = vld [vmem:[%s172 + $0x68] sm:$0xff]
      %v193 = vld [vmem:[%s172 + $0x78] sm:$0xff]
      %v194 = vld [vmem:[%s172 + $0x80] sm:$0xff]
      %v195 = vld [vmem:[%s172 + $0x90] sm:$0xff]
      %v196 = vld [vmem:[%s172 + $0x98] sm:$0xff]
      %v197 = vld [vmem:[%s172 + $0xa8] sm:$0xff]
      %v198 = vld [vmem:[%s172 + $0xb0] sm:$0xff]
      %v199 = vld [vmem:[%s172 + $0xc0] sm:$0xff]
      %v200 = vld [vmem:[%s172 + $0xc8] sm:$0xff]
      %v201 = vld [vmem:[%s172 + $0xd8] sm:$0xff]
      %v202 = vld [vmem:[%s172 + $0xe0] sm:$0xff]
      %v203 = vld [vmem:[%s172 + $0xf0] sm:$0xff]
      %v204 = vld [vmem:[%s172 + $0xf8] sm:$0xff]
      %v205 = vld [vmem:[%s172 + $0x108] sm:$0xff]
      %v206 = vld [vmem:[%s172 + $0x110] sm:$0xff]
      %v207 = vld [vmem:[%s172 + $0x120] sm:$0xff]
      %v208 = vld [vmem:[%s172 + $0x128] sm:$0xff]
      %v209 = vld [vmem:[%s172 + $0x138] sm:$0xff]
      %v210 = vld [vmem:[%s172 + $0x140] sm:$0xff]
      %v211 = vld [vmem:[%s172 + $0x150] sm:$0xff]
      %v212 = vld [vmem:[%s172 + $0x158] sm:$0xff]
      %v213 = vld [vmem:[%s172 + $0x168] sm:$0xff]
      %v214 = vld [vmem:[%s172 + $0x170] sm:$0xff]
      %v215 = vld [vmem:[%s1] sm:$0xf]
      %v216 = vld [vmem:[%s172 + $0x1] sm:$0xff]
      %v217 = vld [vmem:[%s172 + $0x9] sm:$0xff]
      %v218 = vld [vmem:[%s172 + $0x19] sm:$0xff]
      %v219 = vld [vmem:[%s172 + $0x21] sm:$0xff]
      %v220 = vld [vmem:[%s172 + $0x31] sm:$0xff]
      %v221 = vld [vmem:[%s172 + $0x39] sm:$0xff]
      %v222 = vld [vmem:[%s172 + $0x49] sm:$0xff]
      %v223 = vld [vmem:[%s172 + $0x51] sm:$0xff]
      %v224 = vld [vmem:[%s172 + $0x61] sm:$0xff]
      %v225 = vld [vmem:[%s172 + $0x69] sm:$0xff]
      %v226 = vld [vmem:[%s172 + $0x79] sm:$0xff]
      %v227 = vld [vmem:[%s172 + $0x81] sm:$0xff]
      %v228 = vld [vmem:[%s172 + $0x91] sm:$0xff]
      %v229 = vld [vmem:[%s172 + $0x99] sm:$0xff]
      %v230 = vld [vmem:[%s172 + $0xa9] sm:$0xff]
      %v231 = vld [vmem:[%s172 + $0xb1] sm:$0xff]
      %v232 = vld [vmem:[%s172 + $0xc1] sm:$0xff]
      %v233 = vld [vmem:[%s172 + $0xc9] sm:$0xff]
      %v234 = vld [vmem:[%s172 + $0xd9] sm:$0xff]
      %v235 = vld [vmem:[%s172 + $0xe1] sm:$0xff]
      %v236 = vld [vmem:[%s172 + $0xf1] sm:$0xff]
      %v237 = vld [vmem:[%s172 + $0xf9] sm:$0xff]
      %v238 = vld [vmem:[%s172 + $0x109] sm:$0xff]
      %v239 = vld [vmem:[%s172 + $0x111] sm:$0xff]
      %v240 = vld [vmem:[%s172 + $0x121] sm:$0xff]
      %v241 = vld [vmem:[%s172 + $0x129] sm:$0xff]
      %v242 = vld [vmem:[%s172 + $0x139] sm:$0xff]
      %v243 = vld [vmem:[%s172 + $0x141] sm:$0xff]
      %v244 = vld [vmem:[%s172 + $0x151] sm:$0xff]
      %v245 = vld [vmem:[%s172 + $0x159] sm:$0xff]
      %v246 = vld [vmem:[%s172 + $0x169] sm:$0xff]
      %v247 = vld [vmem:[%s172 + $0x171] sm:$0xff]
      %s248 = scalar_lea.vmem %s1, 4
      %v249 = vld [vmem:[%s248] sm:$0xf]
      %vm250 = vcmask 31744
      %v252 = vsel %vm250, %v216, 0
      %v255 = vsel %vm250, %v217, 0
      %v258 = vsel %vm250, %v218, 0
      %v261 = vsel %vm250, %v219, 0
      %v264 = vsel %vm250, %v220, 0
      %v267 = vsel %vm250, %v221, 0
      %v270 = vsel %vm250, %v222, 0
      %v273 = vsel %vm250, %v223, 0
      %v276 = vsel %vm250, %v224, 0
      %v279 = vsel %vm250, %v225, 0
      %v282 = vsel %vm250, %v226, 0
      %v285 = vsel %vm250, %v227, 0
      %v288 = vsel %vm250, %v228, 0
      %v291 = vsel %vm250, %v229, 0
      %v294 = vsel %vm250, %v230, 0
      %v297 = vsel %vm250, %v231, 0
      %v300 = vsel %vm250, %v232, 0
      %v303 = vsel %vm250, %v233, 0
      %v306 = vsel %vm250, %v234, 0
      %v309 = vsel %vm250, %v235, 0
      %v312 = vsel %vm250, %v236, 0
      %v315 = vsel %vm250, %v237, 0
      %v318 = vsel %vm250, %v238, 0
      %v321 = vsel %vm250, %v239, 0
      %v324 = vsel %vm250, %v240, 0
      %v327 = vsel %vm250, %v241, 0
      %v330 = vsel %vm250, %v242, 0
      %v333 = vsel %vm250, %v243, 0
      %v336 = vsel %vm250, %v244, 0
      %v339 = vsel %vm250, %v245, 0
      %v342 = vsel %vm250, %v246, 0
      %v345 = vsel %vm250, %v247, 0
      %vm347 = vcmask 1043456
      %v349 = vsel %vm347, %v249, 0
      %351 = vmatprep.subr.mxu0 0.0
      %352 = vmatpush1.msra.mxu0 %v349
      %353 = vmatprep.subr.mxu0 0.0
      %354 = vmatpush1.msra.mxu0 0.0
      %355 = vmatprep.subr.mxu0 0.0
      %356 = vmatpush1.msra.mxu0 0.0
      %357 = vmatprep.subr.mxu0 0.0
      %358 = vmatpush1.msra.mxu0 0.0
      %359 = vmatprep.subr.mxu0 0.0
      %360 = vmatpush1.msra.mxu0 0.0
      %361 = vmatprep.subr.mxu0 0.0
      %362 = vmatpush1.msra.mxu0 0.0
      %363 = vmatprep.subr.mxu0 0.0
      %364 = vmatpush1.msra.mxu0 0.0
      %365 = vmatprep.subr.mxu0 0.0
      %366 = vmatpush1.msra.mxu0 0.0
      %367 = vmatprep.subr.mxu0 0.0
      %368 = vmatpush1.msra.mxu0 0.0
      %369 = vmatprep.subr.mxu0 0.0
      %370 = vmatpush1.msra.mxu0 0.0
      %371 = vmatprep.subr.mxu0 0.0
      %372 = vmatpush1.msra.mxu0 0.0
      %373 = vmatprep.subr.mxu0 0.0
      %374 = vmatpush1.msra.mxu0 0.0
      %375 = vmatprep.subr.mxu0 0.0
      %376 = vmatpush1.msra.mxu0 0.0
      %377 = vmatprep.subr.mxu0 0.0
      %378 = vmatpush1.msra.mxu0 0.0
      %379 = vmatprep.subr.mxu0 0.0
      %380 = vmatpush1.msra.mxu0 0.0
      %381 = vmatprep.subr.mxu0 0.0
      %382 = vmatpush1.msra.mxu0 0.0
      %383 = vmatprep.subr.mxu0 0.0
      %384 = vmatpush1.msra.mxu0 0.0
      %385 = vmatprep.subr.mxu0 0.0
      %386 = vmatpush1.msra.mxu0 0.0
      %387 = vmatprep.subr.mxu0 0.0
      %388 = vmatpush1.msra.mxu0 0.0
      %389 = vmatprep.subr.mxu0 0.0
      %390 = vmatpush1.msra.mxu0 0.0
      %391 = vmatprep.subr.mxu0 0.0
      %392 = vmatpush1.msra.mxu0 0.0
      %393 = vmatprep.subr.mxu0 0.0
      %394 = vmatpush1.msra.mxu0 0.0
      %395 = vmatprep.subr.mxu0 0.0
      %396 = vmatpush1.msra.mxu0 0.0
      %397 = vmatprep.subr.mxu0 0.0
      %398 = vmatpush1.msra.mxu0 0.0
      %399 = vmatprep.subr.mxu0 0.0
      %400 = vmatpush1.msra.mxu0 0.0
      %401 = vmatprep.subr.mxu0 0.0
      %402 = vmatpush1.msra.mxu0 0.0
      %403 = vmatprep.subr.mxu0 0.0
      %404 = vmatpush1.msra.mxu0 0.0
      %405 = vmatprep.subr.mxu0 0.0
      %406 = vmatpush1.msra.mxu0 0.0
      %407 = vmatprep.subr.mxu0 0.0
      %408 = vmatpush1.msra.mxu0 0.0
      %409 = vmatprep.subr.mxu0 0.0
      %410 = vmatpush1.msra.mxu0 0.0
      %411 = vmatprep.subr.mxu0 0.0
      %412 = vmatpush1.msra.mxu0 0.0
      %413 = vmatprep.subr.mxu0 0.0
      %414 = vmatpush1.msra.mxu0 0.0
      %415 = vmatprep.mubr.f32.mxu0 0.0
      %416 = vmatmul.mubr.f32.gmra.mrb[0].mxu0 %v252
      %v417 = vpop.f32.mrb[0].mxu0
      %v418 = vadd.f32 0.0, %v417
      %v419 = vpop.f32.mrb[0].mxu0
      %420 = vmatprep.mubr.f32.mxu0 0.0
      %421 = vmatmul.mubr.f32.gmra.mrb[0].mxu0 %v255
      %v422 = vpop.f32.mrb[0].mxu0
      %v423 = vadd.f32 0.0, %v422
      %v424 = vpop.f32.mrb[0].mxu0
      %425 = vmatprep.mubr.f32.mxu0 0.0
      %426 = vmatmul.mubr.f32.gmra.mrb[0].mxu0 %v258
      %v427 = vpop.f32.mrb[0].mxu0
      %v428 = vadd.f32 0.0, %v427
      %v429 = vpop.f32.mrb[0].mxu0
      %430 = vmatprep.mubr.f32.mxu0 0.0
      %431 = vmatmul.mubr.f32.gmra.mrb[0].mxu0 %v261
      %v432 = vpop.f32.mrb[0].mxu0
      %v433 = vadd.f32 0.0, %v432
      %v434 = vpop.f32.mrb[0].mxu0
      %435 = vmatprep.mubr.f32.mxu0 0.0
      %436 = vmatmul.mubr.f32.gmra.mrb[0].mxu0 %v264
      %v437 = vpop.f32.mrb[0].mxu0
      %v438 = vadd.f32 0.0, %v437
      %v439 = vpop.f32.mrb[0].mxu0
      %440 = vmatprep.mubr.f32.mxu0 0.0
      %441 = vmatmul.mubr.f32.gmra.mrb[0].mxu0 %v267
      %v442 = vpop.f32.mrb[0].mxu0
      %v443 = vadd.f32 0.0, %v442
      %v444 = vpop.f32.mrb[0].mxu0
      %445 = vmatprep.mubr.f32.mxu0 0.0
      %446 = vmatmul.mubr.f32.gmra.mrb[0].mxu0 %v270
      %v447 = vpop.f32.mrb[0].mxu0
      %v448 = vadd.f32 0.0, %v447
      %v449 = vpop.f32.mrb[0].mxu0
      %450 = vmatprep.mubr.f32.mxu0 0.0
      %451 = vmatmul.mubr.f32.gmra.mrb[0].mxu0 %v273
      %v452 = vpop.f32.mrb[0].mxu0
      %v453 = vadd.f32 0.0, %v452
      %v454 = vpop.f32.mrb[0].mxu0
      %455 = vmatprep.mubr.f32.mxu0 0.0
      %456 = vmatmul.mubr.f32.gmra.mrb[0].mxu0 %v276
      %v457 = vpop.f32.mrb[0].mxu0
      %v458 = vadd.f32 0.0, %v457
      %v459 = vpop.f32.mrb[0].mxu0
      %460 = vmatprep.mubr.f32.mxu0 0.0
      %461 = vmatmul.mubr.f32.gmra.mrb[0].mxu0 %v279
      %v462 = vpop.f32.mrb[0].mxu0
      %v463 = vadd.f32 0.0, %v462
      %v464 = vpop.f32.mrb[0].mxu0
      %465 = vmatprep.mubr.f32.mxu0 0.0
      %466 = vmatmul.mubr.f32.gmra.mrb[0].mxu0 %v282
      %v467 = vpop.f32.mrb[0].mxu0
      %v468 = vadd.f32 0.0, %v467
      %v469 = vpop.f32.mrb[0].mxu0
      %470 = vmatprep.mubr.f32.mxu0 0.0
      %471 = vmatmul.mubr.f32.gmra.mrb[0].mxu0 %v285
      %v472 = vpop.f32.mrb[0].mxu0
      %v473 = vadd.f32 0.0, %v472
      %v474 = vpop.f32.mrb[0].mxu0
      %475 = vmatprep.mubr.f32.mxu0 0.0
      %476 = vmatmul.mubr.f32.gmra.mrb[0].mxu0 %v288
      %v477 = vpop.f32.mrb[0].mxu0
      %v478 = vadd.f32 0.0, %v477
      %v479 = vpop.f32.mrb[0].mxu0
      %480 = vmatprep.mubr.f32.mxu0 0.0
      %481 = vmatmul.mubr.f32.gmra.mrb[0].mxu0 %v291
      %v482 = vpop.f32.mrb[0].mxu0
      %v483 = vadd.f32 0.0, %v482
      %v484 = vpop.f32.mrb[0].mxu0
      %485 = vmatprep.mubr.f32.mxu0 0.0
      %486 = vmatmul.mubr.f32.gmra.mrb[0].mxu0 %v294
      %v487 = vpop.f32.mrb[0].mxu0
      %v488 = vadd.f32 0.0, %v487
      %v489 = vpop.f32.mrb[0].mxu0
      %490 = vmatprep.mubr.f32.mxu0 0.0
      %491 = vmatmul.mubr.f32.gmra.mrb[0].mxu0 %v297
      %v492 = vpop.f32.mrb[0].mxu0
      %v493 = vadd.f32 0.0, %v492
      %v494 = vpop.f32.mrb[0].mxu0
      %495 = vmatprep.mubr.f32.mxu0 0.0
      %496 = vmatmul.mubr.f32.gmra.mrb[0].mxu0 %v300
      %v497 = vpop.f32.mrb[0].mxu0
      %v498 = vadd.f32 0.0, %v497
      %v499 = vpop.f32.mrb[0].mxu0
      %500 = vmatprep.mubr.f32.mxu0 0.0
      %501 = vmatmul.mubr.f32.gmra.mrb[0].mxu0 %v303
      %v502 = vpop.f32.mrb[0].mxu0
      %v503 = vadd.f32 0.0, %v502
      %v504 = vpop.f32.mrb[0].mxu0
      %505 = vmatprep.mubr.f32.mxu0 0.0
      %506 = vmatmul.mubr.f32.gmra.mrb[0].mxu0 %v306
      %v507 = vpop.f32.mrb[0].mxu0
      %v508 = vadd.f32 0.0, %v507
      %v509 = vpop.f32.mrb[0].mxu0
      %510 = vmatprep.mubr.f32.mxu0 0.0
      %511 = vmatmul.mubr.f32.gmra.mrb[0].mxu0 %v309
      %v512 = vpop.f32.mrb[0].mxu0
      %v513 = vadd.f32 0.0, %v512
      %v514 = vpop.f32.mrb[0].mxu0
      %515 = vmatprep.mubr.f32.mxu0 0.0
      %516 = vmatmul.mubr.f32.gmra.mrb[0].mxu0 %v312
      %v517 = vpop.f32.mrb[0].mxu0
      %v518 = vadd.f32 0.0, %v517
      %v519 = vpop.f32.mrb[0].mxu0
      %520 = vmatprep.mubr.f32.mxu0 0.0
      %521 = vmatmul.mubr.f32.gmra.mrb[0].mxu0 %v315
      %v522 = vpop.f32.mrb[0].mxu0
      %v523 = vadd.f32 0.0, %v522
      %v524 = vpop.f32.mrb[0].mxu0
      %525 = vmatprep.mubr.f32.mxu0 0.0
      %526 = vmatmul.mubr.f32.gmra.mrb[0].mxu0 %v318
      %v527 = vpop.f32.mrb[0].mxu0
      %v528 = vadd.f32 0.0, %v527
      %v529 = vpop.f32.mrb[0].mxu0
      %530 = vmatprep.mubr.f32.mxu0 0.0
      %531 = vmatmul.mubr.f32.gmra.mrb[0].mxu0 %v321
      %v532 = vpop.f32.mrb[0].mxu0
      %v533 = vadd.f32 0.0, %v532
      %v534 = vpop.f32.mrb[0].mxu0
      %535 = vmatprep.mubr.f32.mxu0 0.0
      %536 = vmatmul.mubr.f32.gmra.mrb[0].mxu0 %v324
      %v537 = vpop.f32.mrb[0].mxu0
      %v538 = vadd.f32 0.0, %v537
      %v539 = vpop.f32.mrb[0].mxu0
      %540 = vmatprep.mubr.f32.mxu0 0.0
      %541 = vmatmul.mubr.f32.gmra.mrb[0].mxu0 %v327
      %v542 = vpop.f32.mrb[0].mxu0
      %v543 = vadd.f32 0.0, %v542
      %v544 = vpop.f32.mrb[0].mxu0
      %545 = vmatprep.mubr.f32.mxu0 0.0
      %546 = vmatmul.mubr.f32.gmra.mrb[0].mxu0 %v330
      %v547 = vpop.f32.mrb[0].mxu0
      %v548 = vadd.f32 0.0, %v547
      %v549 = vpop.f32.mrb[0].mxu0
      %550 = vmatprep.mubr.f32.mxu0 0.0
      %551 = vmatmul.mubr.f32.gmra.mrb[0].mxu0 %v333
      %v552 = vpop.f32.mrb[0].mxu0
      %v553 = vadd.f32 0.0, %v552
      %v554 = vpop.f32.mrb[0].mxu0
      %555 = vmatprep.mubr.f32.mxu0 0.0
      %556 = vmatmul.mubr.f32.gmra.mrb[0].mxu0 %v336
      %v557 = vpop.f32.mrb[0].mxu0
      %v558 = vadd.f32 0.0, %v557
      %v559 = vpop.f32.mrb[0].mxu0
      %560 = vmatprep.mubr.f32.mxu0 0.0
      %561 = vmatmul.mubr.f32.gmra.mrb[0].mxu0 %v339
      %v562 = vpop.f32.mrb[0].mxu0
      %v563 = vadd.f32 0.0, %v562
      %v564 = vpop.f32.mrb[0].mxu0
      %565 = vmatprep.mubr.f32.mxu0 0.0
      %566 = vmatmul.mubr.f32.gmra.mrb[0].mxu0 %v342
      %v567 = vpop.f32.mrb[0].mxu0
      %v568 = vadd.f32 0.0, %v567
      %v569 = vpop.f32.mrb[0].mxu0
      %570 = vmatprep.mubr.f32.mxu0 0.0
      %571 = vmatmul.mubr.f32.gmra.mrb[0].mxu0 %v345
      %v572 = vpop.f32.mrb[0].mxu0
      %v573 = vadd.f32 0.0, %v572
      %v574 = vpop.f32.mrb[0].mxu0
      %575 = vdwg.mxu0
      %v577 = vsel %vm250, %v183, 0
      %v580 = vsel %vm250, %v184, 0
      %v583 = vsel %vm250, %v185, 0
      %v586 = vsel %vm250, %v186, 0
      %v589 = vsel %vm250, %v187, 0
      %v592 = vsel %vm250, %v188, 0
      %v595 = vsel %vm250, %v189, 0
      %v598 = vsel %vm250, %v190, 0
      %v601 = vsel %vm250, %v191, 0
      %v604 = vsel %vm250, %v192, 0
      %v607 = vsel %vm250, %v193, 0
      %v610 = vsel %vm250, %v194, 0
      %v613 = vsel %vm250, %v195, 0
      %v616 = vsel %vm250, %v196, 0
      %v619 = vsel %vm250, %v197, 0
      %v622 = vsel %vm250, %v198, 0
      %v625 = vsel %vm250, %v199, 0
      %v628 = vsel %vm250, %v200, 0
      %v631 = vsel %vm250, %v201, 0
      %v634 = vsel %vm250, %v202, 0
      %v637 = vsel %vm250, %v203, 0
      %v640 = vsel %vm250, %v204, 0
      %v643 = vsel %vm250, %v205, 0
      %v646 = vsel %vm250, %v206, 0
      %v649 = vsel %vm250, %v207, 0
      %v652 = vsel %vm250, %v208, 0
      %v655 = vsel %vm250, %v209, 0
      %v658 = vsel %vm250, %v210, 0
      %v661 = vsel %vm250, %v211, 0
      %v664 = vsel %vm250, %v212, 0
      %v667 = vsel %vm250, %v213, 0
      %v670 = vsel %vm250, %v214, 0
      %v673 = vsel %vm347, %v215, 0
      %675 = vmatprep.subr.mxu0 0.0
      %676 = vmatpush1.msra.mxu0 %v673
      %677 = vmatprep.subr.mxu0 0.0
      %678 = vmatpush1.msra.mxu0 0.0
      %679 = vmatprep.subr.mxu0 0.0
      %680 = vmatpush1.msra.mxu0 0.0
      %681 = vmatprep.subr.mxu0 0.0
      %682 = vmatpush1.msra.mxu0 0.0
      %683 = vmatprep.subr.mxu0 0.0
      %684 = vmatpush1.msra.mxu0 0.0
      %685 = vmatprep.subr.mxu0 0.0
      %686 = vmatpush1.msra.mxu0 0.0
      %687 = vmatprep.subr.mxu0 0.0
      %688 = vmatpush1.msra.mxu0 0.0
      %689 = vmatprep.subr.mxu0 0.0
      %690 = vmatpush1.msra.mxu0 0.0
      %691 = vmatprep.subr.mxu0 0.0
      %692 = vmatpush1.msra.mxu0 0.0
      %693 = vmatprep.subr.mxu0 0.0
      %694 = vmatpush1.msra.mxu0 0.0
      %695 = vmatprep.subr.mxu0 0.0
      %696 = vmatpush1.msra.mxu0 0.0
      %697 = vmatprep.subr.mxu0 0.0
      %698 = vmatpush1.msra.mxu0 0.0
      %699 = vmatprep.subr.mxu0 0.0
      %700 = vmatpush1.msra.mxu0 0.0
      %701 = vmatprep.subr.mxu0 0.0
      %702 = vmatpush1.msra.mxu0 0.0
      %703 = vmatprep.subr.mxu0 0.0
      %704 = vmatpush1.msra.mxu0 0.0
      %705 = vmatprep.subr.mxu0 0.0
      %706 = vmatpush1.msra.mxu0 0.0
      %707 = vmatprep.subr.mxu0 0.0
      %708 = vmatpush1.msra.mxu0 0.0
      %709 = vmatprep.subr.mxu0 0.0
      %710 = vmatpush1.msra.mxu0 0.0
      %711 = vmatprep.subr.mxu0 0.0
      %712 = vmatpush1.msra.mxu0 0.0
      %713 = vmatprep.subr.mxu0 0.0
      %714 = vmatpush1.msra.mxu0 0.0
      %715 = vmatprep.subr.mxu0 0.0
      %716 = vmatpush1.msra.mxu0 0.0
      %717 = vmatprep.subr.mxu0 0.0
      %718 = vmatpush1.msra.mxu0 0.0
      %719 = vmatprep.subr.mxu0 0.0
      %720 = vmatpush1.msra.mxu0 0.0
      %721 = vmatprep.subr.mxu0 0.0
      %722 = vmatpush1.msra.mxu0 0.0
      %723 = vmatprep.subr.mxu0 0.0
      %724 = vmatpush1.msra.mxu0 0.0
      %725 = vmatprep.subr.mxu0 0.0
      %726 = vmatpush1.msra.mxu0 0.0
      %727 = vmatprep.subr.mxu0 0.0
      %728 = vmatpush1.msra.mxu0 0.0
      %729 = vmatprep.subr.mxu0 0.0
      %730 = vmatpush1.msra.mxu0 0.0
      %731 = vmatprep.subr.mxu0 0.0
      %732 = vmatpush1.msra.mxu0 0.0
      %733 = vmatprep.subr.mxu0 0.0
      %734 = vmatpush1.msra.mxu0 0.0
      %735 = vmatprep.subr.mxu0 0.0
      %736 = vmatpush1.msra.mxu0 0.0
      %737 = vmatprep.subr.mxu0 0.0
      %738 = vmatpush1.msra.mxu0 0.0
      %739 = vmatprep.mubr.f32.mxu0 0.0
      %740 = vmatmul.mubr.f32.gmra.mrb[0].mxu0 %v577
      %v741 = vpop.f32.mrb[0].mxu0
      %v742 = vadd.f32 %v418, %v741
      %v743 = vpop.f32.mrb[0].mxu0
      %744 = vmatprep.mubr.f32.mxu0 0.0
      %745 = vmatmul.mubr.f32.gmra.mrb[0].mxu0 %v580
      %v746 = vpop.f32.mrb[0].mxu0
      %v747 = vadd.f32 %v423, %v746
      %v748 = vpop.f32.mrb[0].mxu0
      %749 = vmatprep.mubr.f32.mxu0 0.0
      %750 = vmatmul.mubr.f32.gmra.mrb[0].mxu0 %v583
      %v751 = vpop.f32.mrb[0].mxu0
      %v752 = vadd.f32 %v428, %v751
      %v753 = vpop.f32.mrb[0].mxu0
      %754 = vmatprep.mubr.f32.mxu0 0.0
      %755 = vmatmul.mubr.f32.gmra.mrb[0].mxu0 %v586
      %v756 = vpop.f32.mrb[0].mxu0
      %v757 = vadd.f32 %v433, %v756
      %v758 = vpop.f32.mrb[0].mxu0
      %759 = vmatprep.mubr.f32.mxu0 0.0
      %760 = vmatmul.mubr.f32.gmra.mrb[0].mxu0 %v589
      %v761 = vpop.f32.mrb[0].mxu0
      %v762 = vadd.f32 %v438, %v761
      %v763 = vpop.f32.mrb[0].mxu0
      %764 = vmatprep.mubr.f32.mxu0 0.0
      %765 = vmatmul.mubr.f32.gmra.mrb[0].mxu0 %v592
      %v766 = vpop.f32.mrb[0].mxu0
      %v767 = vadd.f32 %v443, %v766
      %v768 = vpop.f32.mrb[0].mxu0
      %769 = vmatprep.mubr.f32.mxu0 0.0
      %770 = vmatmul.mubr.f32.gmra.mrb[0].mxu0 %v595
      %v771 = vpop.f32.mrb[0].mxu0
      %v772 = vadd.f32 %v448, %v771
      %v773 = vpop.f32.mrb[0].mxu0
      %774 = vmatprep.mubr.f32.mxu0 0.0
      %775 = vmatmul.mubr.f32.gmra.mrb[0].mxu0 %v598
      %v776 = vpop.f32.mrb[0].mxu0
      %v777 = vadd.f32 %v453, %v776
      %v778 = vpop.f32.mrb[0].mxu0
      %779 = vmatprep.mubr.f32.mxu0 0.0
      %780 = vmatmul.mubr.f32.gmra.mrb[0].mxu0 %v601
      %v781 = vpop.f32.mrb[0].mxu0
      %v782 = vadd.f32 %v458, %v781
      %v783 = vpop.f32.mrb[0].mxu0
      %784 = vmatprep.mubr.f32.mxu0 0.0
      %785 = vmatmul.mubr.f32.gmra.mrb[0].mxu0 %v604
      %v786 = vpop.f32.mrb[0].mxu0
      %v787 = vadd.f32 %v463, %v786
      %v788 = vpop.f32.mrb[0].mxu0
      %789 = vmatprep.mubr.f32.mxu0 0.0
      %790 = vmatmul.mubr.f32.gmra.mrb[0].mxu0 %v607
      %v791 = vpop.f32.mrb[0].mxu0
      %v792 = vadd.f32 %v468, %v791
      %v793 = vpop.f32.mrb[0].mxu0
      %794 = vmatprep.mubr.f32.mxu0 0.0
      %795 = vmatmul.mubr.f32.gmra.mrb[0].mxu0 %v610
      %v796 = vpop.f32.mrb[0].mxu0
      %v797 = vadd.f32 %v473, %v796
      %v798 = vpop.f32.mrb[0].mxu0
      %799 = vmatprep.mubr.f32.mxu0 0.0
      %800 = vmatmul.mubr.f32.gmra.mrb[0].mxu0 %v613
      %v801 = vpop.f32.mrb[0].mxu0
      %v802 = vadd.f32 %v478, %v801
      %v803 = vpop.f32.mrb[0].mxu0
      %804 = vmatprep.mubr.f32.mxu0 0.0
      %805 = vmatmul.mubr.f32.gmra.mrb[0].mxu0 %v616
      %v806 = vpop.f32.mrb[0].mxu0
      %v807 = vadd.f32 %v483, %v806
      %v808 = vpop.f32.mrb[0].mxu0
      %809 = vmatprep.mubr.f32.mxu0 0.0
      %810 = vmatmul.mubr.f32.gmra.mrb[0].mxu0 %v619
      %v811 = vpop.f32.mrb[0].mxu0
      %v812 = vadd.f32 %v488, %v811
      %v813 = vpop.f32.mrb[0].mxu0
      %814 = vmatprep.mubr.f32.mxu0 0.0
      %815 = vmatmul.mubr.f32.gmra.mrb[0].mxu0 %v622
      %v816 = vpop.f32.mrb[0].mxu0
      %v817 = vadd.f32 %v493, %v816
      %v818 = vpop.f32.mrb[0].mxu0
      %819 = vmatprep.mubr.f32.mxu0 0.0
      %820 = vmatmul.mubr.f32.gmra.mrb[0].mxu0 %v625
      %v821 = vpop.f32.mrb[0].mxu0
      %v822 = vadd.f32 %v498, %v821
      %v823 = vpop.f32.mrb[0].mxu0
      %824 = vmatprep.mubr.f32.mxu0 0.0
      %825 = vmatmul.mubr.f32.gmra.mrb[0].mxu0 %v628
      %v826 = vpop.f32.mrb[0].mxu0
      %v827 = vadd.f32 %v503, %v826
      %v828 = vpop.f32.mrb[0].mxu0
      %829 = vmatprep.mubr.f32.mxu0 0.0
      %830 = vmatmul.mubr.f32.gmra.mrb[0].mxu0 %v631
      %v831 = vpop.f32.mrb[0].mxu0
      %v832 = vadd.f32 %v508, %v831
      %v833 = vpop.f32.mrb[0].mxu0
      %834 = vmatprep.mubr.f32.mxu0 0.0
      %835 = vmatmul.mubr.f32.gmra.mrb[0].mxu0 %v634
      %v836 = vpop.f32.mrb[0].mxu0
      %v837 = vadd.f32 %v513, %v836
      %v838 = vpop.f32.mrb[0].mxu0
      %839 = vmatprep.mubr.f32.mxu0 0.0
      %840 = vmatmul.mubr.f32.gmra.mrb[0].mxu0 %v637
      %v841 = vpop.f32.mrb[0].mxu0
      %v842 = vadd.f32 %v518, %v841
      %v843 = vpop.f32.mrb[0].mxu0
      %844 = vmatprep.mubr.f32.mxu0 0.0
      %845 = vmatmul.mubr.f32.gmra.mrb[0].mxu0 %v640
      %v846 = vpop.f32.mrb[0].mxu0
      %v847 = vadd.f32 %v523, %v846
      %v848 = vpop.f32.mrb[0].mxu0
      %849 = vmatprep.mubr.f32.mxu0 0.0
      %850 = vmatmul.mubr.f32.gmra.mrb[0].mxu0 %v643
      %v851 = vpop.f32.mrb[0].mxu0
      %v852 = vadd.f32 %v528, %v851
      %v853 = vpop.f32.mrb[0].mxu0
      %854 = vmatprep.mubr.f32.mxu0 0.0
      %855 = vmatmul.mubr.f32.gmra.mrb[0].mxu0 %v646
      %v856 = vpop.f32.mrb[0].mxu0
      %v857 = vadd.f32 %v533, %v856
      %v858 = vpop.f32.mrb[0].mxu0
      %859 = vmatprep.mubr.f32.mxu0 0.0
      %860 = vmatmul.mubr.f32.gmra.mrb[0].mxu0 %v649
      %v861 = vpop.f32.mrb[0].mxu0
      %v862 = vadd.f32 %v538, %v861
      %v863 = vpop.f32.mrb[0].mxu0
      %864 = vmatprep.mubr.f32.mxu0 0.0
      %865 = vmatmul.mubr.f32.gmra.mrb[0].mxu0 %v652
      %v866 = vpop.f32.mrb[0].mxu0
      %v867 = vadd.f32 %v543, %v866
      %v868 = vpop.f32.mrb[0].mxu0
      %869 = vmatprep.mubr.f32.mxu0 0.0
      %870 = vmatmul.mubr.f32.gmra.mrb[0].mxu0 %v655
      %v871 = vpop.f32.mrb[0].mxu0
      %v872 = vadd.f32 %v548, %v871
      %v873 = vpop.f32.mrb[0].mxu0
      %874 = vmatprep.mubr.f32.mxu0 0.0
      %875 = vmatmul.mubr.f32.gmra.mrb[0].mxu0 %v658
      %v876 = vpop.f32.mrb[0].mxu0
      %v877 = vadd.f32 %v553, %v876
      %v878 = vpop.f32.mrb[0].mxu0
      %879 = vmatprep.mubr.f32.mxu0 0.0
      %880 = vmatmul.mubr.f32.gmra.mrb[0].mxu0 %v661
      %v881 = vpop.f32.mrb[0].mxu0
      %v882 = vadd.f32 %v558, %v881
      %v883 = vpop.f32.mrb[0].mxu0
      %884 = vmatprep.mubr.f32.mxu0 0.0
      %885 = vmatmul.mubr.f32.gmra.mrb[0].mxu0 %v664
      %v886 = vpop.f32.mrb[0].mxu0
      %v887 = vadd.f32 %v563, %v886
      %v888 = vpop.f32.mrb[0].mxu0
      %889 = vmatprep.mubr.f32.mxu0 0.0
      %890 = vmatmul.mubr.f32.gmra.mrb[0].mxu0 %v667
      %v891 = vpop.f32.mrb[0].mxu0
      %v892 = vadd.f32 %v568, %v891
      %v893 = vpop.f32.mrb[0].mxu0
      %894 = vmatprep.mubr.f32.mxu0 0.0
      %895 = vmatmul.mubr.f32.gmra.mrb[0].mxu0 %v670
      %v896 = vpop.f32.mrb[0].mxu0
      %v897 = vadd.f32 %v573, %v896
      %v898 = vpop.f32.mrb[0].mxu0
      %899 = vdwg.mxu0
      %v900 = vld [vmem:[%s172 + $0x2] sm:$0xff]
      %v901 = vld [vmem:[%s172 + $0xa] sm:$0xff]
      %v902 = vld [vmem:[%s172 + $0x1a] sm:$0xff]
      %v903 = vld [vmem:[%s172 + $0x22] sm:$0xff]
      %v904 = vld [vmem:[%s172 + $0x32] sm:$0xff]
      %v905 = vld [vmem:[%s172 + $0x3a] sm:$0xff]
      %v906 = vld [vmem:[%s172 + $0x4a] sm:$0xff]
      %v907 = vld [vmem:[%s172 + $0x52] sm:$0xff]
      %v908 = vld [vmem:[%s172 + $0x62] sm:$0xff]
      %v909 = vld [vmem:[%s172 + $0x6a] sm:$0xff]
      %v910 = vld [vmem:[%s172 + $0x7a] sm:$0xff]
      %v911 = vld [vmem:[%s172 + $0x82] sm:$0xff]
      %v912 = vld [vmem:[%s172 + $0x92] sm:$0xff]
      %v913 = vld [vmem:[%s172 + $0x9a] sm:$0xff]
      %v914 = vld [vmem:[%s172 + $0xaa] sm:$0xff]
      %v915 = vld [vmem:[%s172 + $0xb2] sm:$0xff]
      %v916 = vld [vmem:[%s172 + $0xc2] sm:$0xff]
      %v917 = vld [vmem:[%s172 + $0xca] sm:$0xff]
      %v918 = vld [vmem:[%s172 + $0xda] sm:$0xff]
      %v919 = vld [vmem:[%s172 + $0xe2] sm:$0xff]
      %v920 = vld [vmem:[%s172 + $0xf2] sm:$0xff]
      %v921 = vld [vmem:[%s172 + $0xfa] sm:$0xff]
      %v922 = vld [vmem:[%s172 + $0x10a] sm:$0xff]
      %v923 = vld [vmem:[%s172 + $0x112] sm:$0xff]
      %v924 = vld [vmem:[%s172 + $0x122] sm:$0xff]
      %v925 = vld [vmem:[%s172 + $0x12a] sm:$0xff]
      %v926 = vld [vmem:[%s172 + $0x13a] sm:$0xff]
      %v927 = vld [vmem:[%s172 + $0x142] sm:$0xff]
      %v928 = vld [vmem:[%s172 + $0x152] sm:$0xff]
      %v929 = vld [vmem:[%s172 + $0x15a] sm:$0xff]
      %v930 = vld [vmem:[%s172 + $0x16a] sm:$0xff]
      %v931 = vld [vmem:[%s172 + $0x172] sm:$0xff]
      %s932 = scalar_lea.vmem %s1, 8
      %v933 = vld [vmem:[%s932] sm:$0xf]
      %v935 = vsel %vm250, %v900, 0
      %v938 = vsel %vm250, %v901, 0
      %v941 = vsel %vm250, %v902, 0
      %v944 = vsel %vm250, %v903, 0
      %v947 = vsel %vm250, %v904, 0
      %v950 = vsel %vm250, %v905, 0
      %v953 = vsel %vm250, %v906, 0
      %v956 = vsel %vm250, %v907, 0
      %v959 = vsel %vm250, %v908, 0
      %v962 = vsel %vm250, %v909, 0
      %v965 = vsel %vm250, %v910, 0
      %v968 = vsel %vm250, %v911, 0
      %v971 = vsel %vm250, %v912, 0
      %v974 = vsel %vm250, %v913, 0
      %v977 = vsel %vm250, %v914, 0
      %v980 = vsel %vm250, %v915, 0
      %v983 = vsel %vm250, %v916, 0
      %v986 = vsel %vm250, %v917, 0
      %v989 = vsel %vm250, %v918, 0
      %v992 = vsel %vm250, %v919, 0
      %v995 = vsel %vm250, %v920, 0
      %v998 = vsel %vm250, %v921, 0
      %v1001 = vsel %vm250, %v922, 0
      %v1004 = vsel %vm250, %v923, 0
      %v1007 = vsel %vm250, %v924, 0
      %v1010 = vsel %vm250, %v925, 0
      %v1013 = vsel %vm250, %v926, 0
      %v1016 = vsel %vm250, %v927, 0
      %v1019 = vsel %vm250, %v928, 0
      %v1022 = vsel %vm250, %v929, 0
      %v1025 = vsel %vm250, %v930, 0
      %v1028 = vsel %vm250, %v931, 0
      %v1031 = vsel %vm347, %v933, 0
      %1033 = vmatprep.subr.mxu0 0.0
      %1034 = vmatpush1.msra.mxu0 %v1031
      %1035 = vmatprep.subr.mxu0 0.0
      %1036 = vmatpush1.msra.mxu0 0.0
      %1037 = vmatprep.subr.mxu0 0.0
      %1038 = vmatpush1.msra.mxu0 0.0
      %1039 = vmatprep.subr.mxu0 0.0
      %1040 = vmatpush1.msra.mxu0 0.0
      %1041 = vmatprep.subr.mxu0 0.0
      %1042 = vmatpush1.msra.mxu0 0.0
      %1043 = vmatprep.subr.mxu0 0.0
      %1044 = vmatpush1.msra.mxu0 0.0
      %1045 = vmatprep.subr.mxu0 0.0
      %1046 = vmatpush1.msra.mxu0 0.0
      %1047 = vmatprep.subr.mxu0 0.0
      %1048 = vmatpush1.msra.mxu0 0.0
      %1049 = vmatprep.subr.mxu0 0.0
      %1050 = vmatpush1.msra.mxu0 0.0
      %1051 = vmatprep.subr.mxu0 0.0
      %1052 = vmatpush1.msra.mxu0 0.0
      %1053 = vmatprep.subr.mxu0 0.0
      %1054 = vmatpush1.msra.mxu0 0.0
      %1055 = vmatprep.subr.mxu0 0.0
      %1056 = vmatpush1.msra.mxu0 0.0
      %1057 = vmatprep.subr.mxu0 0.0
      %1058 = vmatpush1.msra.mxu0 0.0
      %1059 = vmatprep.subr.mxu0 0.0
      %1060 = vmatpush1.msra.mxu0 0.0
      %1061 = vmatprep.subr.mxu0 0.0
      %1062 = vmatpush1.msra.mxu0 0.0
      %1063 = vmatprep.subr.mxu0 0.0
      %1064 = vmatpush1.msra.mxu0 0.0
      %1065 = vmatprep.subr.mxu0 0.0
      %1066 = vmatpush1.msra.mxu0 0.0
      %1067 = vmatprep.subr.mxu0 0.0
      %1068 = vmatpush1.msra.mxu0 0.0
      %1069 = vmatprep.subr.mxu0 0.0
      %1070 = vmatpush1.msra.mxu0 0.0
      %1071 = vmatprep.subr.mxu0 0.0
      %1072 = vmatpush1.msra.mxu0 0.0
      %1073 = vmatprep.subr.mxu0 0.0
      %1074 = vmatpush1.msra.mxu0 0.0
      %1075 = vmatprep.subr.mxu0 0.0
      %1076 = vmatpush1.msra.mxu0 0.0
      %1077 = vmatprep.subr.mxu0 0.0
      %1078 = vmatpush1.msra.mxu0 0.0
      %1079 = vmatprep.subr.mxu0 0.0
      %1080 = vmatpush1.msra.mxu0 0.0
      %1081 = vmatprep.subr.mxu0 0.0
      %1082 = vmatpush1.msra.mxu0 0.0
      %1083 = vmatprep.subr.mxu0 0.0
      %1084 = vmatpush1.msra.mxu0 0.0
      %1085 = vmatprep.subr.mxu0 0.0
      %1086 = vmatpush1.msra.mxu0 0.0
      %1087 = vmatprep.subr.mxu0 0.0
      %1088 = vmatpush1.msra.mxu0 0.0
      %1089 = vmatprep.subr.mxu0 0.0
      %1090 = vmatpush1.msra.mxu0 0.0
      %1091 = vmatprep.subr.mxu0 0.0
      %1092 = vmatpush1.msra.mxu0 0.0
      %1093 = vmatprep.subr.mxu0 0.0
      %1094 = vmatpush1.msra.mxu0 0.0
      %1095 = vmatprep.subr.mxu0 0.0
      %1096 = vmatpush1.msra.mxu0 0.0
      %1097 = vmatprep.mubr.f32.mxu0 0.0
      %1098 = vmatmul.mubr.f32.gmra.mrb[0].mxu0 %v935
      %v1099 = vpop.f32.mrb[0].mxu0
      %v1100 = vadd.f32 0.0, %v1099
      %v1101 = vpop.f32.mrb[0].mxu0
      %1102 = vmatprep.mubr.f32.mxu0 0.0
      %1103 = vmatmul.mubr.f32.gmra.mrb[0].mxu0 %v938
      %v1104 = vpop.f32.mrb[0].mxu0
      %v1105 = vadd.f32 0.0, %v1104
      %v1106 = vpop.f32.mrb[0].mxu0
      %1107 = vmatprep.mubr.f32.mxu0 0.0
      %1108 = vmatmul.mubr.f32.gmra.mrb[0].mxu0 %v941
      %v1109 = vpop.f32.mrb[0].mxu0
      %v1110 = vadd.f32 0.0, %v1109
      %v1111 = vpop.f32.mrb[0].mxu0
      %1112 = vmatprep.mubr.f32.mxu0 0.0
      %1113 = vmatmul.mubr.f32.gmra.mrb[0].mxu0 %v944
      %v1114 = vpop.f32.mrb[0].mxu0
      %v1115 = vadd.f32 0.0, %v1114
      %v1116 = vpop.f32.mrb[0].mxu0
      %1117 = vmatprep.mubr.f32.mxu0 0.0
      %1118 = vmatmul.mubr.f32.gmra.mrb[0].mxu0 %v947
      %v1119 = vpop.f32.mrb[0].mxu0
      %v1120 = vadd.f32 0.0, %v1119
      %v1121 = vpop.f32.mrb[0].mxu0
      %1122 = vmatprep.mubr.f32.mxu0 0.0
      %1123 = vmatmul.mubr.f32.gmra.mrb[0].mxu0 %v950
      %v1124 = vpop.f32.mrb[0].mxu0
      %v1125 = vadd.f32 0.0, %v1124
      %v1126 = vpop.f32.mrb[0].mxu0
      %1127 = vmatprep.mubr.f32.mxu0 0.0
      %1128 = vmatmul.mubr.f32.gmra.mrb[0].mxu0 %v953
      %v1129 = vpop.f32.mrb[0].mxu0
      %v1130 = vadd.f32 0.0, %v1129
      %v1131 = vpop.f32.mrb[0].mxu0
      %1132 = vmatprep.mubr.f32.mxu0 0.0
      %1133 = vmatmul.mubr.f32.gmra.mrb[0].mxu0 %v956
      %v1134 = vpop.f32.mrb[0].mxu0
      %v1135 = vadd.f32 0.0, %v1134
      %v1136 = vpop.f32.mrb[0].mxu0
      %1137 = vmatprep.mubr.f32.mxu0 0.0
      %1138 = vmatmul.mubr.f32.gmra.mrb[0].mxu0 %v959
      %v1139 = vpop.f32.mrb[0].mxu0
      %v1140 = vadd.f32 0.0, %v1139
      %v1141 = vpop.f32.mrb[0].mxu0
      %1142 = vmatprep.mubr.f32.mxu0 0.0
      %1143 = vmatmul.mubr.f32.gmra.mrb[0].mxu0 %v962
      %v1144 = vpop.f32.mrb[0].mxu0
      %v1145 = vadd.f32 0.0, %v1144
      %v1146 = vpop.f32.mrb[0].mxu0
      %1147 = vmatprep.mubr.f32.mxu0 0.0
      %1148 = vmatmul.mubr.f32.gmra.mrb[0].mxu0 %v965
      %v1149 = vpop.f32.mrb[0].mxu0
      %v1150 = vadd.f32 0.0, %v1149
      %v1151 = vpop.f32.mrb[0].mxu0
      %1152 = vmatprep.mubr.f32.mxu0 0.0
      %1153 = vmatmul.mubr.f32.gmra.mrb[0].mxu0 %v968
      %v1154 = vpop.f32.mrb[0].mxu0
      %v1155 = vadd.f32 0.0, %v1154
      %v1156 = vpop.f32.mrb[0].mxu0
      %1157 = vmatprep.mubr.f32.mxu0 0.0
      %1158 = vmatmul.mubr.f32.gmra.mrb[0].mxu0 %v971
      %v1159 = vpop.f32.mrb[0].mxu0
      %v1160 = vadd.f32 0.0, %v1159
      %v1161 = vpop.f32.mrb[0].mxu0
      %1162 = vmatprep.mubr.f32.mxu0 0.0
      %1163 = vmatmul.mubr.f32.gmra.mrb[0].mxu0 %v974
      %v1164 = vpop.f32.mrb[0].mxu0
      %v1165 = vadd.f32 0.0, %v1164
      %v1166 = vpop.f32.mrb[0].mxu0
      %1167 = vmatprep.mubr.f32.mxu0 0.0
      %1168 = vmatmul.mubr.f32.gmra.mrb[0].mxu0 %v977
      %v1169 = vpop.f32.mrb[0].mxu0
      %v1170 = vadd.f32 0.0, %v1169
      %v1171 = vpop.f32.mrb[0].mxu0
      %1172 = vmatprep.mubr.f32.mxu0 0.0
      %1173 = vmatmul.mubr.f32.gmra.mrb[0].mxu0 %v980
      %v1174 = vpop.f32.mrb[0].mxu0
      %v1175 = vadd.f32 0.0, %v1174
      %v1176 = vpop.f32.mrb[0].mxu0
      %1177 = vmatprep.mubr.f32.mxu0 0.0
      %1178 = vmatmul.mubr.f32.gmra.mrb[0].mxu0 %v983
      %v1179 = vpop.f32.mrb[0].mxu0
      %v1180 = vadd.f32 0.0, %v1179
      %v1181 = vpop.f32.mrb[0].mxu0
      %1182 = vmatprep.mubr.f32.mxu0 0.0
      %1183 = vmatmul.mubr.f32.gmra.mrb[0].mxu0 %v986
      %v1184 = vpop.f32.mrb[0].mxu0
      %v1185 = vadd.f32 0.0, %v1184
      %v1186 = vpop.f32.mrb[0].mxu0
      %1187 = vmatprep.mubr.f32.mxu0 0.0
      %1188 = vmatmul.mubr.f32.gmra.mrb[0].mxu0 %v989
      %v1189 = vpop.f32.mrb[0].mxu0
      %v1190 = vadd.f32 0.0, %v1189
      %v1191 = vpop.f32.mrb[0].mxu0
      %1192 = vmatprep.mubr.f32.mxu0 0.0
      %1193 = vmatmul.mubr.f32.gmra.mrb[0].mxu0 %v992
      %v1194 = vpop.f32.mrb[0].mxu0
      %v1195 = vadd.f32 0.0, %v1194
      %v1196 = vpop.f32.mrb[0].mxu0
      %1197 = vmatprep.mubr.f32.mxu0 0.0
      %1198 = vmatmul.mubr.f32.gmra.mrb[0].mxu0 %v995
      %v1199 = vpop.f32.mrb[0].mxu0
      %v1200 = vadd.f32 0.0, %v1199
      %v1201 = vpop.f32.mrb[0].mxu0
      %1202 = vmatprep.mubr.f32.mxu0 0.0
      %1203 = vmatmul.mubr.f32.gmra.mrb[0].mxu0 %v998
      %v1204 = vpop.f32.mrb[0].mxu0
      %v1205 = vadd.f32 0.0, %v1204
      %v1206 = vpop.f32.mrb[0].mxu0
      %1207 = vmatprep.mubr.f32.mxu0 0.0
      %1208 = vmatmul.mubr.f32.gmra.mrb[0].mxu0 %v1001
      %v1209 = vpop.f32.mrb[0].mxu0
      %v1210 = vadd.f32 0.0, %v1209
      %v1211 = vpop.f32.mrb[0].mxu0
      %1212 = vmatprep.mubr.f32.mxu0 0.0
      %1213 = vmatmul.mubr.f32.gmra.mrb[0].mxu0 %v1004
      %v1214 = vpop.f32.mrb[0].mxu0
      %v1215 = vadd.f32 0.0, %v1214
      %v1216 = vpop.f32.mrb[0].mxu0
      %1217 = vmatprep.mubr.f32.mxu0 0.0
      %1218 = vmatmul.mubr.f32.gmra.mrb[0].mxu0 %v1007
      %v1219 = vpop.f32.mrb[0].mxu0
      %v1220 = vadd.f32 0.0, %v1219
      %v1221 = vpop.f32.mrb[0].mxu0
      %1222 = vmatprep.mubr.f32.mxu0 0.0
      %1223 = vmatmul.mubr.f32.gmra.mrb[0].mxu0 %v1010
      %v1224 = vpop.f32.mrb[0].mxu0
      %v1225 = vadd.f32 0.0, %v1224
      %v1226 = vpop.f32.mrb[0].mxu0
      %1227 = vmatprep.mubr.f32.mxu0 0.0
      %1228 = vmatmul.mubr.f32.gmra.mrb[0].mxu0 %v1013
      %v1229 = vpop.f32.mrb[0].mxu0
      %v1230 = vadd.f32 0.0, %v1229
      %v1231 = vpop.f32.mrb[0].mxu0
      %1232 = vmatprep.mubr.f32.mxu0 0.0
      %1233 = vmatmul.mubr.f32.gmra.mrb[0].mxu0 %v1016
      %v1234 = vpop.f32.mrb[0].mxu0
      %v1235 = vadd.f32 0.0, %v1234
      %v1236 = vpop.f32.mrb[0].mxu0
      %1237 = vmatprep.mubr.f32.mxu0 0.0
      %1238 = vmatmul.mubr.f32.gmra.mrb[0].mxu0 %v1019
      %v1239 = vpop.f32.mrb[0].mxu0
      %v1240 = vadd.f32 0.0, %v1239
      %v1241 = vpop.f32.mrb[0].mxu0
      %1242 = vmatprep.mubr.f32.mxu0 0.0
      %1243 = vmatmul.mubr.f32.gmra.mrb[0].mxu0 %v1022
      %v1244 = vpop.f32.mrb[0].mxu0
      %v1245 = vadd.f32 0.0, %v1244
      %v1246 = vpop.f32.mrb[0].mxu0
      %1247 = vmatprep.mubr.f32.mxu0 0.0
      %1248 = vmatmul.mubr.f32.gmra.mrb[0].mxu0 %v1025
      %v1249 = vpop.f32.mrb[0].mxu0
      %v1250 = vadd.f32 0.0, %v1249
      %v1251 = vpop.f32.mrb[0].mxu0
      %1252 = vmatprep.mubr.f32.mxu0 0.0
      %1253 = vmatmul.mubr.f32.gmra.mrb[0].mxu0 %v1028
      %v1254 = vpop.f32.mrb[0].mxu0
      %v1255 = vadd.f32 0.0, %v1254
      %v1256 = vpop.f32.mrb[0].mxu0
      %1257 = vdwg.mxu0
      %v1258 = vadd.f32 %v742, %v1100
      %v1259 = vadd.f32 %v747, %v1105
      %v1260 = vadd.f32 %v752, %v1110
      %v1261 = vadd.f32 %v757, %v1115
      %v1262 = vadd.f32 %v762, %v1120
      %v1263 = vadd.f32 %v767, %v1125
      %v1264 = vadd.f32 %v772, %v1130
      %v1265 = vadd.f32 %v777, %v1135
      %v1266 = vadd.f32 %v782, %v1140
      %v1267 = vadd.f32 %v787, %v1145
      %v1268 = vadd.f32 %v792, %v1150
      %v1269 = vadd.f32 %v797, %v1155
      %v1270 = vadd.f32 %v802, %v1160
      %v1271 = vadd.f32 %v807, %v1165
      %v1272 = vadd.f32 %v812, %v1170
      %v1273 = vadd.f32 %v817, %v1175
      %v1274 = vadd.f32 %v822, %v1180
      %v1275 = vadd.f32 %v827, %v1185
      %v1276 = vadd.f32 %v832, %v1190
      %v1277 = vadd.f32 %v837, %v1195
      %v1278 = vadd.f32 %v842, %v1200
      %v1279 = vadd.f32 %v847, %v1205
      %v1280 = vadd.f32 %v852, %v1210
      %v1281 = vadd.f32 %v857, %v1215
      %v1282 = vadd.f32 %v862, %v1220
      %v1283 = vadd.f32 %v867, %v1225
      %v1284 = vadd.f32 %v872, %v1230
      %v1285 = vadd.f32 %v877, %v1235
      %v1286 = vadd.f32 %v882, %v1240
      %v1287 = vadd.f32 %v887, %v1245
      %v1288 = vadd.f32 %v892, %v1250
      %v1289 = vadd.f32 %v897, %v1255
      %s1290 = scalar_lea.vmem %s172, 24
      %v1291 = vld [vmem:[%s1290] sm:$0xff]
      %v1292 = vld [vmem:[%s1290 + $0x8] sm:$0xff]
      %v1293 = vld [vmem:[%s1290 + $0x18] sm:$0xff]
      %v1294 = vld [vmem:[%s1290 + $0x20] sm:$0xff]
      %v1295 = vld [vmem:[%s1290 + $0x30] sm:$0xff]
      %v1296 = vld [vmem:[%s1290 + $0x38] sm:$0xff]
      %v1297 = vld [vmem:[%s1290 + $0x48] sm:$0xff]
      %v1298 = vld [vmem:[%s1290 + $0x50] sm:$0xff]
      %v1299 = vld [vmem:[%s1290 + $0x60] sm:$0xff]
      %v1300 = vld [vmem:[%s1290 + $0x68] sm:$0xff]
      %v1301 = vld [vmem:[%s1290 + $0x78] sm:$0xff]
      %v1302 = vld [vmem:[%s1290 + $0x80] sm:$0xff]
      %v1303 = vld [vmem:[%s1290 + $0x90] sm:$0xff]
      %v1304 = vld [vmem:[%s1290 + $0x98] sm:$0xff]
      %v1305 = vld [vmem:[%s1290 + $0xa8] sm:$0xff]
      %v1306 = vld [vmem:[%s1290 + $0xb0] sm:$0xff]
      %v1307 = vld [vmem:[%s1290 + $0xc0] sm:$0xff]
      %v1308 = vld [vmem:[%s1290 + $0xc8] sm:$0xff]
      %v1309 = vld [vmem:[%s1290 + $0xd8] sm:$0xff]
      %v1310 = vld [vmem:[%s1290 + $0xe0] sm:$0xff]
      %v1311 = vld [vmem:[%s1290 + $0xf0] sm:$0xff]
      %v1312 = vld [vmem:[%s1290 + $0xf8] sm:$0xff]
      %v1313 = vld [vmem:[%s1290 + $0x108] sm:$0xff]
      %v1314 = vld [vmem:[%s1290 + $0x110] sm:$0xff]
      %v1315 = vld [vmem:[%s1290 + $0x120] sm:$0xff]
      %v1316 = vld [vmem:[%s1290 + $0x128] sm:$0xff]
      %v1317 = vld [vmem:[%s1290 + $0x138] sm:$0xff]
      %v1318 = vld [vmem:[%s1290 + $0x140] sm:$0xff]
      %v1319 = vld [vmem:[%s1290 + $0x150] sm:$0xff]
      %v1320 = vld [vmem:[%s1290 + $0x158] sm:$0xff]
      %v1321 = vld [vmem:[%s1290 + $0x168] sm:$0xff]
      %v1322 = vld [vmem:[%s1290 + $0x170] sm:$0xff]
      %s1323 = scalar_lea.vmem %s1, 12
      %v1324 = vld [vmem:[%s1323] sm:$0xf]
      %v1326 = vsel %vm250, %v1291, 0
      %v1329 = vsel %vm250, %v1292, 0
      %v1332 = vsel %vm250, %v1293, 0
      %v1335 = vsel %vm250, %v1294, 0
      %v1338 = vsel %vm250, %v1295, 0
      %v1341 = vsel %vm250, %v1296, 0
      %v1344 = vsel %vm250, %v1297, 0
      %v1347 = vsel %vm250, %v1298, 0
      %v1350 = vsel %vm250, %v1299, 0
      %v1353 = vsel %vm250, %v1300, 0
      %v1356 = vsel %vm250, %v1301, 0
      %v1359 = vsel %vm250, %v1302, 0
      %v1362 = vsel %vm250, %v1303, 0
      %v1365 = vsel %vm250, %v1304, 0
      %v1368 = vsel %vm250, %v1305, 0
      %v1371 = vsel %vm250, %v1306, 0
      %v1374 = vsel %vm250, %v1307, 0
      %v1377 = vsel %vm250, %v1308, 0
      %v1380 = vsel %vm250, %v1309, 0
      %v1383 = vsel %vm250, %v1310, 0
      %v1386 = vsel %vm250, %v1311, 0
      %v1389 = vsel %vm250, %v1312, 0
      %v1392 = vsel %vm250, %v1313, 0
      %v1395 = vsel %vm250, %v1314, 0
      %v1398 = vsel %vm250, %v1315, 0
      %v1401 = vsel %vm250, %v1316, 0
      %v1404 = vsel %vm250, %v1317, 0
      %v1407 = vsel %vm250, %v1318, 0
      %v1410 = vsel %vm250, %v1319, 0
      %v1413 = vsel %vm250, %v1320, 0
      %v1416 = vsel %vm250, %v1321, 0
      %v1419 = vsel %vm250, %v1322, 0
      %v1422 = vsel %vm347, %v1324, 0
      %1424 = vmatprep.subr.mxu0 0.0
      %1425 = vmatpush1.msra.mxu0 %v1422
      %1426 = vmatprep.subr.mxu0 0.0
      %1427 = vmatpush1.msra.mxu0 0.0
      %1428 = vmatprep.subr.mxu0 0.0
      %1429 = vmatpush1.msra.mxu0 0.0
      %1430 = vmatprep.subr.mxu0 0.0
      %1431 = vmatpush1.msra.mxu0 0.0
      %1432 = vmatprep.subr.mxu0 0.0
      %1433 = vmatpush1.msra.mxu0 0.0
      %1434 = vmatprep.subr.mxu0 0.0
      %1435 = vmatpush1.msra.mxu0 0.0
      %1436 = vmatprep.subr.mxu0 0.0
      %1437 = vmatpush1.msra.mxu0 0.0
      %1438 = vmatprep.subr.mxu0 0.0
      %1439 = vmatpush1.msra.mxu0 0.0
      %1440 = vmatprep.subr.mxu0 0.0
      %1441 = vmatpush1.msra.mxu0 0.0
      %1442 = vmatprep.subr.mxu0 0.0
      %1443 = vmatpush1.msra.mxu0 0.0
      %1444 = vmatprep.subr.mxu0 0.0
      %1445 = vmatpush1.msra.mxu0 0.0
      %1446 = vmatprep.subr.mxu0 0.0
      %1447 = vmatpush1.msra.mxu0 0.0
      %1448 = vmatprep.subr.mxu0 0.0
      %1449 = vmatpush1.msra.mxu0 0.0
      %1450 = vmatprep.subr.mxu0 0.0
      %1451 = vmatpush1.msra.mxu0 0.0
      %1452 = vmatprep.subr.mxu0 0.0
      %1453 = vmatpush1.msra.mxu0 0.0
      %1454 = vmatprep.subr.mxu0 0.0
      %1455 = vmatpush1.msra.mxu0 0.0
      %1456 = vmatprep.subr.mxu0 0.0
      %1457 = vmatpush1.msra.mxu0 0.0
      %1458 = vmatprep.subr.mxu0 0.0
      %1459 = vmatpush1.msra.mxu0 0.0
      %1460 = vmatprep.subr.mxu0 0.0
      %1461 = vmatpush1.msra.mxu0 0.0
      %1462 = vmatprep.subr.mxu0 0.0
      %1463 = vmatpush1.msra.mxu0 0.0
      %1464 = vmatprep.subr.mxu0 0.0
      %1465 = vmatpush1.msra.mxu0 0.0
      %1466 = vmatprep.subr.mxu0 0.0
      %1467 = vmatpush1.msra.mxu0 0.0
      %1468 = vmatprep.subr.mxu0 0.0
      %1469 = vmatpush1.msra.mxu0 0.0
      %1470 = vmatprep.subr.mxu0 0.0
      %1471 = vmatpush1.msra.mxu0 0.0
      %1472 = vmatprep.subr.mxu0 0.0
      %1473 = vmatpush1.msra.mxu0 0.0
      %1474 = vmatprep.subr.mxu0 0.0
      %1475 = vmatpush1.msra.mxu0 0.0
      %1476 = vmatprep.subr.mxu0 0.0
      %1477 = vmatpush1.msra.mxu0 0.0
      %1478 = vmatprep.subr.mxu0 0.0
      %1479 = vmatpush1.msra.mxu0 0.0
      %1480 = vmatprep.subr.mxu0 0.0
      %1481 = vmatpush1.msra.mxu0 0.0
      %1482 = vmatprep.subr.mxu0 0.0
      %1483 = vmatpush1.msra.mxu0 0.0
      %1484 = vmatprep.subr.mxu0 0.0
      %1485 = vmatpush1.msra.mxu0 0.0
      %1486 = vmatprep.subr.mxu0 0.0
      %1487 = vmatpush1.msra.mxu0 0.0
      %1488 = vmatprep.mubr.f32.mxu0 0.0
      %1489 = vmatmul.mubr.f32.gmra.mrb[0].mxu0 %v1326
      %v1490 = vpop.f32.mrb[0].mxu0
      %v1491 = vadd.f32 0.0, %v1490
      %v1492 = vpop.f32.mrb[0].mxu0
      %1493 = vmatprep.mubr.f32.mxu0 0.0
      %1494 = vmatmul.mubr.f32.gmra.mrb[0].mxu0 %v1329
      %v1495 = vpop.f32.mrb[0].mxu0
      %v1496 = vadd.f32 0.0, %v1495
      %v1497 = vpop.f32.mrb[0].mxu0
      %1498 = vmatprep.mubr.f32.mxu0 0.0
      %1499 = vmatmul.mubr.f32.gmra.mrb[0].mxu0 %v1332
      %v1500 = vpop.f32.mrb[0].mxu0
      %v1501 = vadd.f32 0.0, %v1500
      %v1502 = vpop.f32.mrb[0].mxu0
      %1503 = vmatprep.mubr.f32.mxu0 0.0
      %1504 = vmatmul.mubr.f32.gmra.mrb[0].mxu0 %v1335
      %v1505 = vpop.f32.mrb[0].mxu0
      %v1506 = vadd.f32 0.0, %v1505
      %v1507 = vpop.f32.mrb[0].mxu0
      %1508 = vmatprep.mubr.f32.mxu0 0.0
      %1509 = vmatmul.mubr.f32.gmra.mrb[0].mxu0 %v1338
      %v1510 = vpop.f32.mrb[0].mxu0
      %v1511 = vadd.f32 0.0, %v1510
      %v1512 = vpop.f32.mrb[0].mxu0
      %1513 = vmatprep.mubr.f32.mxu0 0.0
      %1514 = vmatmul.mubr.f32.gmra.mrb[0].mxu0 %v1341
      %v1515 = vpop.f32.mrb[0].mxu0
      %v1516 = vadd.f32 0.0, %v1515
      %v1517 = vpop.f32.mrb[0].mxu0
      %1518 = vmatprep.mubr.f32.mxu0 0.0
      %1519 = vmatmul.mubr.f32.gmra.mrb[0].mxu0 %v1344
      %v1520 = vpop.f32.mrb[0].mxu0
      %v1521 = vadd.f32 0.0, %v1520
      %v1522 = vpop.f32.mrb[0].mxu0
      %1523 = vmatprep.mubr.f32.mxu0 0.0
      %1524 = vmatmul.mubr.f32.gmra.mrb[0].mxu0 %v1347
      %v1525 = vpop.f32.mrb[0].mxu0
      %v1526 = vadd.f32 0.0, %v1525
      %v1527 = vpop.f32.mrb[0].mxu0
      %1528 = vmatprep.mubr.f32.mxu0 0.0
      %1529 = vmatmul.mubr.f32.gmra.mrb[0].mxu0 %v1350
      %v1530 = vpop.f32.mrb[0].mxu0
      %v1531 = vadd.f32 0.0, %v1530
      %v1532 = vpop.f32.mrb[0].mxu0
      %1533 = vmatprep.mubr.f32.mxu0 0.0
      %1534 = vmatmul.mubr.f32.gmra.mrb[0].mxu0 %v1353
      %v1535 = vpop.f32.mrb[0].mxu0
      %v1536 = vadd.f32 0.0, %v1535
      %v1537 = vpop.f32.mrb[0].mxu0
      %1538 = vmatprep.mubr.f32.mxu0 0.0
      %1539 = vmatmul.mubr.f32.gmra.mrb[0].mxu0 %v1356
      %v1540 = vpop.f32.mrb[0].mxu0
      %v1541 = vadd.f32 0.0, %v1540
      %v1542 = vpop.f32.mrb[0].mxu0
      %1543 = vmatprep.mubr.f32.mxu0 0.0
      %1544 = vmatmul.mubr.f32.gmra.mrb[0].mxu0 %v1359
      %v1545 = vpop.f32.mrb[0].mxu0
      %v1546 = vadd.f32 0.0, %v1545
      %v1547 = vpop.f32.mrb[0].mxu0
      %1548 = vmatprep.mubr.f32.mxu0 0.0
      %1549 = vmatmul.mubr.f32.gmra.mrb[0].mxu0 %v1362
      %v1550 = vpop.f32.mrb[0].mxu0
      %v1551 = vadd.f32 0.0, %v1550
      %v1552 = vpop.f32.mrb[0].mxu0
      %1553 = vmatprep.mubr.f32.mxu0 0.0
      %1554 = vmatmul.mubr.f32.gmra.mrb[0].mxu0 %v1365
      %v1555 = vpop.f32.mrb[0].mxu0
      %v1556 = vadd.f32 0.0, %v1555
      %v1557 = vpop.f32.mrb[0].mxu0
      %1558 = vmatprep.mubr.f32.mxu0 0.0
      %1559 = vmatmul.mubr.f32.gmra.mrb[0].mxu0 %v1368
      %v1560 = vpop.f32.mrb[0].mxu0
      %v1561 = vadd.f32 0.0, %v1560
      %v1562 = vpop.f32.mrb[0].mxu0
      %1563 = vmatprep.mubr.f32.mxu0 0.0
      %1564 = vmatmul.mubr.f32.gmra.mrb[0].mxu0 %v1371
      %v1565 = vpop.f32.mrb[0].mxu0
      %v1566 = vadd.f32 0.0, %v1565
      %v1567 = vpop.f32.mrb[0].mxu0
      %1568 = vmatprep.mubr.f32.mxu0 0.0
      %1569 = vmatmul.mubr.f32.gmra.mrb[0].mxu0 %v1374
      %v1570 = vpop.f32.mrb[0].mxu0
      %v1571 = vadd.f32 0.0, %v1570
      %v1572 = vpop.f32.mrb[0].mxu0
      %1573 = vmatprep.mubr.f32.mxu0 0.0
      %1574 = vmatmul.mubr.f32.gmra.mrb[0].mxu0 %v1377
      %v1575 = vpop.f32.mrb[0].mxu0
      %v1576 = vadd.f32 0.0, %v1575
      %v1577 = vpop.f32.mrb[0].mxu0
      %1578 = vmatprep.mubr.f32.mxu0 0.0
      %1579 = vmatmul.mubr.f32.gmra.mrb[0].mxu0 %v1380
      %v1580 = vpop.f32.mrb[0].mxu0
      %v1581 = vadd.f32 0.0, %v1580
      %v1582 = vpop.f32.mrb[0].mxu0
      %1583 = vmatprep.mubr.f32.mxu0 0.0
      %1584 = vmatmul.mubr.f32.gmra.mrb[0].mxu0 %v1383
      %v1585 = vpop.f32.mrb[0].mxu0
      %v1586 = vadd.f32 0.0, %v1585
      %v1587 = vpop.f32.mrb[0].mxu0
      %1588 = vmatprep.mubr.f32.mxu0 0.0
      %1589 = vmatmul.mubr.f32.gmra.mrb[0].mxu0 %v1386
      %v1590 = vpop.f32.mrb[0].mxu0
      %v1591 = vadd.f32 0.0, %v1590
      %v1592 = vpop.f32.mrb[0].mxu0
      %1593 = vmatprep.mubr.f32.mxu0 0.0
      %1594 = vmatmul.mubr.f32.gmra.mrb[0].mxu0 %v1389
      %v1595 = vpop.f32.mrb[0].mxu0
      %v1596 = vadd.f32 0.0, %v1595
      %v1597 = vpop.f32.mrb[0].mxu0
      %1598 = vmatprep.mubr.f32.mxu0 0.0
      %1599 = vmatmul.mubr.f32.gmra.mrb[0].mxu0 %v1392
      %v1600 = vpop.f32.mrb[0].mxu0
      %v1601 = vadd.f32 0.0, %v1600
      %v1602 = vpop.f32.mrb[0].mxu0
      %1603 = vmatprep.mubr.f32.mxu0 0.0
      %1604 = vmatmul.mubr.f32.gmra.mrb[0].mxu0 %v1395
      %v1605 = vpop.f32.mrb[0].mxu0
      %v1606 = vadd.f32 0.0, %v1605
      %v1607 = vpop.f32.mrb[0].mxu0
      %1608 = vmatprep.mubr.f32.mxu0 0.0
      %1609 = vmatmul.mubr.f32.gmra.mrb[0].mxu0 %v1398
      %v1610 = vpop.f32.mrb[0].mxu0
      %v1611 = vadd.f32 0.0, %v1610
      %v1612 = vpop.f32.mrb[0].mxu0
      %1613 = vmatprep.mubr.f32.mxu0 0.0
      %1614 = vmatmul.mubr.f32.gmra.mrb[0].mxu0 %v1401
      %v1615 = vpop.f32.mrb[0].mxu0
      %v1616 = vadd.f32 0.0, %v1615
      %v1617 = vpop.f32.mrb[0].mxu0
      %1618 = vmatprep.mubr.f32.mxu0 0.0
      %1619 = vmatmul.mubr.f32.gmra.mrb[0].mxu0 %v1404
      %v1620 = vpop.f32.mrb[0].mxu0
      %v1621 = vadd.f32 0.0, %v1620
      %v1622 = vpop.f32.mrb[0].mxu0
      %1623 = vmatprep.mubr.f32.mxu0 0.0
      %1624 = vmatmul.mubr.f32.gmra.mrb[0].mxu0 %v1407
      %v1625 = vpop.f32.mrb[0].mxu0
      %v1626 = vadd.f32 0.0, %v1625
      %v1627 = vpop.f32.mrb[0].mxu0
      %1628 = vmatprep.mubr.f32.mxu0 0.0
      %1629 = vmatmul.mubr.f32.gmra.mrb[0].mxu0 %v1410
      %v1630 = vpop.f32.mrb[0].mxu0
      %v1631 = vadd.f32 0.0, %v1630
      %v1632 = vpop.f32.mrb[0].mxu0
      %1633 = vmatprep.mubr.f32.mxu0 0.0
      %1634 = vmatmul.mubr.f32.gmra.mrb[0].mxu0 %v1413
      %v1635 = vpop.f32.mrb[0].mxu0
      %v1636 = vadd.f32 0.0, %v1635
      %v1637 = vpop.f32.mrb[0].mxu0
      %1638 = vmatprep.mubr.f32.mxu0 0.0
      %1639 = vmatmul.mubr.f32.gmra.mrb[0].mxu0 %v1416
      %v1640 = vpop.f32.mrb[0].mxu0
      %v1641 = vadd.f32 0.0, %v1640
      %v1642 = vpop.f32.mrb[0].mxu0
      %1643 = vmatprep.mubr.f32.mxu0 0.0
      %1644 = vmatmul.mubr.f32.gmra.mrb[0].mxu0 %v1419
      %v1645 = vpop.f32.mrb[0].mxu0
      %v1646 = vadd.f32 0.0, %v1645
      %v1647 = vpop.f32.mrb[0].mxu0
      %1648 = vdwg.mxu0
      %v1649 = vadd.f32 %v1258, %v1491
      %v1650 = vadd.f32 %v1259, %v1496
      %v1651 = vadd.f32 %v1260, %v1501
      %v1652 = vadd.f32 %v1261, %v1506
      %v1653 = vadd.f32 %v1262, %v1511
      %v1654 = vadd.f32 %v1263, %v1516
      %v1655 = vadd.f32 %v1264, %v1521
      %v1656 = vadd.f32 %v1265, %v1526
      %v1657 = vadd.f32 %v1266, %v1531
      %v1658 = vadd.f32 %v1267, %v1536
      %v1659 = vadd.f32 %v1268, %v1541
      %v1660 = vadd.f32 %v1269, %v1546
      %v1661 = vadd.f32 %v1270, %v1551
      %v1662 = vadd.f32 %v1271, %v1556
      %v1663 = vadd.f32 %v1272, %v1561
      %v1664 = vadd.f32 %v1273, %v1566
      %v1665 = vadd.f32 %v1274, %v1571
      %v1666 = vadd.f32 %v1275, %v1576
      %v1667 = vadd.f32 %v1276, %v1581
      %v1668 = vadd.f32 %v1277, %v1586
      %v1669 = vadd.f32 %v1278, %v1591
      %v1670 = vadd.f32 %v1279, %v1596
      %v1671 = vadd.f32 %v1280, %v1601
      %v1672 = vadd.f32 %v1281, %v1606
      %v1673 = vadd.f32 %v1282, %v1611
      %v1674 = vadd.f32 %v1283, %v1616
      %v1675 = vadd.f32 %v1284, %v1621
      %v1676 = vadd.f32 %v1285, %v1626
      %v1677 = vadd.f32 %v1286, %v1631
      %v1678 = vadd.f32 %v1287, %v1636
      %v1679 = vadd.f32 %v1288, %v1641
      %v1680 = vadd.f32 %v1289, %v1646
      %v1681 = vld [vmem:[%s1290 + $0x1] sm:$0xff]
      %v1682 = vld [vmem:[%s1290 + $0x9] sm:$0xff]
      %v1683 = vld [vmem:[%s1290 + $0x19] sm:$0xff]
      %v1684 = vld [vmem:[%s1290 + $0x21] sm:$0xff]
      %v1685 = vld [vmem:[%s1290 + $0x31] sm:$0xff]
      %v1686 = vld [vmem:[%s1290 + $0x39] sm:$0xff]
      %v1687 = vld [vmem:[%s1290 + $0x49] sm:$0xff]
      %v1688 = vld [vmem:[%s1290 + $0x51] sm:$0xff]
      %v1689 = vld [vmem:[%s1290 + $0x61] sm:$0xff]
      %v1690 = vld [vmem:[%s1290 + $0x69] sm:$0xff]
      %v1691 = vld [vmem:[%s1290 + $0x79] sm:$0xff]
      %v1692 = vld [vmem:[%s1290 + $0x81] sm:$0xff]
      %v1693 = vld [vmem:[%s1290 + $0x91] sm:$0xff]
      %v1694 = vld [vmem:[%s1290 + $0x99] sm:$0xff]
      %v1695 = vld [vmem:[%s1290 + $0xa9] sm:$0xff]
      %v1696 = vld [vmem:[%s1290 + $0xb1] sm:$0xff]
      %v1697 = vld [vmem:[%s1290 + $0xc1] sm:$0xff]
      %v1698 = vld [vmem:[%s1290 + $0xc9] sm:$0xff]
      %v1699 = vld [vmem:[%s1290 + $0xd9] sm:$0xff]
      %v1700 = vld [vmem:[%s1290 + $0xe1] sm:$0xff]
      %v1701 = vld [vmem:[%s1290 + $0xf1] sm:$0xff]
      %v1702 = vld [vmem:[%s1290 + $0xf9] sm:$0xff]
      %v1703 = vld [vmem:[%s1290 + $0x109] sm:$0xff]
      %v1704 = vld [vmem:[%s1290 + $0x111] sm:$0xff]
      %v1705 = vld [vmem:[%s1290 + $0x121] sm:$0xff]
      %v1706 = vld [vmem:[%s1290 + $0x129] sm:$0xff]
      %v1707 = vld [vmem:[%s1290 + $0x139] sm:$0xff]
      %v1708 = vld [vmem:[%s1290 + $0x141] sm:$0xff]
      %v1709 = vld [vmem:[%s1290 + $0x151] sm:$0xff]
      %v1710 = vld [vmem:[%s1290 + $0x159] sm:$0xff]
      %v1711 = vld [vmem:[%s1290 + $0x169] sm:$0xff]
      %v1712 = vld [vmem:[%s1290 + $0x171] sm:$0xff]
      %s1713 = scalar_lea.vmem %s1, 16
      %v1714 = vld [vmem:[%s1713] sm:$0xf]
      %v1716 = vsel %vm250, %v1681, 0
      %v1719 = vsel %vm250, %v1682, 0
      %v1722 = vsel %vm250, %v1683, 0
      %v1725 = vsel %vm250, %v1684, 0
      %v1728 = vsel %vm250, %v1685, 0
      %v1731 = vsel %vm250, %v1686, 0
      %v1734 = vsel %vm250, %v1687, 0
      %v1737 = vsel %vm250, %v1688, 0
      %v1740 = vsel %vm250, %v1689, 0
      %v1743 = vsel %vm250, %v1690, 0
      %v1746 = vsel %vm250, %v1691, 0
      %v1749 = vsel %vm250, %v1692, 0
      %v1752 = vsel %vm250, %v1693, 0
      %v1755 = vsel %vm250, %v1694, 0
      %v1758 = vsel %vm250, %v1695, 0
      %v1761 = vsel %vm250, %v1696, 0
      %v1764 = vsel %vm250, %v1697, 0
      %v1767 = vsel %vm250, %v1698, 0
      %v1770 = vsel %vm250, %v1699, 0
      %v1773 = vsel %vm250, %v1700, 0
      %v1776 = vsel %vm250, %v1701, 0
      %v1779 = vsel %vm250, %v1702, 0
      %v1782 = vsel %vm250, %v1703, 0
      %v1785 = vsel %vm250, %v1704, 0
      %v1788 = vsel %vm250, %v1705, 0
      %v1791 = vsel %vm250, %v1706, 0
      %v1794 = vsel %vm250, %v1707, 0
      %v1797 = vsel %vm250, %v1708, 0
      %v1800 = vsel %vm250, %v1709, 0
      %v1803 = vsel %vm250, %v1710, 0
      %v1806 = vsel %vm250, %v1711, 0
      %v1809 = vsel %vm250, %v1712, 0
      %v1812 = vsel %vm347, %v1714, 0
      %1814 = vmatprep.subr.mxu0 0.0
      %1815 = vmatpush1.msra.mxu0 %v1812
      %1816 = vmatprep.subr.mxu0 0.0
      %1817 = vmatpush1.msra.mxu0 0.0
      %1818 = vmatprep.subr.mxu0 0.0
      %1819 = vmatpush1.msra.mxu0 0.0
      %1820 = vmatprep.subr.mxu0 0.0
      %1821 = vmatpush1.msra.mxu0 0.0
      %1822 = vmatprep.subr.mxu0 0.0
      %1823 = vmatpush1.msra.mxu0 0.0
      %1824 = vmatprep.subr.mxu0 0.0
      %1825 = vmatpush1.msra.mxu0 0.0
      %1826 = vmatprep.subr.mxu0 0.0
      %1827 = vmatpush1.msra.mxu0 0.0
      %1828 = vmatprep.subr.mxu0 0.0
      %1829 = vmatpush1.msra.mxu0 0.0
      %1830 = vmatprep.subr.mxu0 0.0
      %1831 = vmatpush1.msra.mxu0 0.0
      %1832 = vmatprep.subr.mxu0 0.0
      %1833 = vmatpush1.msra.mxu0 0.0
      %1834 = vmatprep.subr.mxu0 0.0
      %1835 = vmatpush1.msra.mxu0 0.0
      %1836 = vmatprep.subr.mxu0 0.0
      %1837 = vmatpush1.msra.mxu0 0.0
      %1838 = vmatprep.subr.mxu0 0.0
      %1839 = vmatpush1.msra.mxu0 0.0
      %1840 = vmatprep.subr.mxu0 0.0
      %1841 = vmatpush1.msra.mxu0 0.0
      %1842 = vmatprep.subr.mxu0 0.0
      %1843 = vmatpush1.msra.mxu0 0.0
      %1844 = vmatprep.subr.mxu0 0.0
      %1845 = vmatpush1.msra.mxu0 0.0
      %1846 = vmatprep.subr.mxu0 0.0
      %1847 = vmatpush1.msra.mxu0 0.0
      %1848 = vmatprep.subr.mxu0 0.0
      %1849 = vmatpush1.msra.mxu0 0.0
      %1850 = vmatprep.subr.mxu0 0.0
      %1851 = vmatpush1.msra.mxu0 0.0
      %1852 = vmatprep.subr.mxu0 0.0
      %1853 = vmatpush1.msra.mxu0 0.0
      %1854 = vmatprep.subr.mxu0 0.0
      %1855 = vmatpush1.msra.mxu0 0.0
      %1856 = vmatprep.subr.mxu0 0.0
      %1857 = vmatpush1.msra.mxu0 0.0
      %1858 = vmatprep.subr.mxu0 0.0
      %1859 = vmatpush1.msra.mxu0 0.0
      %1860 = vmatprep.subr.mxu0 0.0
      %1861 = vmatpush1.msra.mxu0 0.0
      %1862 = vmatprep.subr.mxu0 0.0
      %1863 = vmatpush1.msra.mxu0 0.0
      %1864 = vmatprep.subr.mxu0 0.0
      %1865 = vmatpush1.msra.mxu0 0.0
      %1866 = vmatprep.subr.mxu0 0.0
      %1867 = vmatpush1.msra.mxu0 0.0
      %1868 = vmatprep.subr.mxu0 0.0
      %1869 = vmatpush1.msra.mxu0 0.0
      %1870 = vmatprep.subr.mxu0 0.0
      %1871 = vmatpush1.msra.mxu0 0.0
      %1872 = vmatprep.subr.mxu0 0.0
      %1873 = vmatpush1.msra.mxu0 0.0
      %1874 = vmatprep.subr.mxu0 0.0
      %1875 = vmatpush1.msra.mxu0 0.0
      %1876 = vmatprep.subr.mxu0 0.0
      %1877 = vmatpush1.msra.mxu0 0.0
      %1878 = vmatprep.mubr.f32.mxu0 0.0
      %1879 = vmatmul.mubr.f32.gmra.mrb[0].mxu0 %v1716
      %v1880 = vpop.f32.mrb[0].mxu0
      %v1881 = vadd.f32 0.0, %v1880
      %v1882 = vpop.f32.mrb[0].mxu0
      %1883 = vmatprep.mubr.f32.mxu0 0.0
      %1884 = vmatmul.mubr.f32.gmra.mrb[0].mxu0 %v1719
      %v1885 = vpop.f32.mrb[0].mxu0
      %v1886 = vadd.f32 0.0, %v1885
      %v1887 = vpop.f32.mrb[0].mxu0
      %1888 = vmatprep.mubr.f32.mxu0 0.0
      %1889 = vmatmul.mubr.f32.gmra.mrb[0].mxu0 %v1722
      %v1890 = vpop.f32.mrb[0].mxu0
      %v1891 = vadd.f32 0.0, %v1890
      %v1892 = vpop.f32.mrb[0].mxu0
      %1893 = vmatprep.mubr.f32.mxu0 0.0
      %1894 = vmatmul.mubr.f32.gmra.mrb[0].mxu0 %v1725
      %v1895 = vpop.f32.mrb[0].mxu0
      %v1896 = vadd.f32 0.0, %v1895
      %v1897 = vpop.f32.mrb[0].mxu0
      %1898 = vmatprep.mubr.f32.mxu0 0.0
      %1899 = vmatmul.mubr.f32.gmra.mrb[0].mxu0 %v1728
      %v1900 = vpop.f32.mrb[0].mxu0
      %v1901 = vadd.f32 0.0, %v1900
      %v1902 = vpop.f32.mrb[0].mxu0
      %1903 = vmatprep.mubr.f32.mxu0 0.0
      %1904 = vmatmul.mubr.f32.gmra.mrb[0].mxu0 %v1731
      %v1905 = vpop.f32.mrb[0].mxu0
      %v1906 = vadd.f32 0.0, %v1905
      %v1907 = vpop.f32.mrb[0].mxu0
      %1908 = vmatprep.mubr.f32.mxu0 0.0
      %1909 = vmatmul.mubr.f32.gmra.mrb[0].mxu0 %v1734
      %v1910 = vpop.f32.mrb[0].mxu0
      %v1911 = vadd.f32 0.0, %v1910
      %v1912 = vpop.f32.mrb[0].mxu0
      %1913 = vmatprep.mubr.f32.mxu0 0.0
      %1914 = vmatmul.mubr.f32.gmra.mrb[0].mxu0 %v1737
      %v1915 = vpop.f32.mrb[0].mxu0
      %v1916 = vadd.f32 0.0, %v1915
      %v1917 = vpop.f32.mrb[0].mxu0
      %1918 = vmatprep.mubr.f32.mxu0 0.0
      %1919 = vmatmul.mubr.f32.gmra.mrb[0].mxu0 %v1740
      %v1920 = vpop.f32.mrb[0].mxu0
      %v1921 = vadd.f32 0.0, %v1920
      %v1922 = vpop.f32.mrb[0].mxu0
      %1923 = vmatprep.mubr.f32.mxu0 0.0
      %1924 = vmatmul.mubr.f32.gmra.mrb[0].mxu0 %v1743
      %v1925 = vpop.f32.mrb[0].mxu0
      %v1926 = vadd.f32 0.0, %v1925
      %v1927 = vpop.f32.mrb[0].mxu0
      %1928 = vmatprep.mubr.f32.mxu0 0.0
      %1929 = vmatmul.mubr.f32.gmra.mrb[0].mxu0 %v1746
      %v1930 = vpop.f32.mrb[0].mxu0
      %v1931 = vadd.f32 0.0, %v1930
      %v1932 = vpop.f32.mrb[0].mxu0
      %1933 = vmatprep.mubr.f32.mxu0 0.0
      %1934 = vmatmul.mubr.f32.gmra.mrb[0].mxu0 %v1749
      %v1935 = vpop.f32.mrb[0].mxu0
      %v1936 = vadd.f32 0.0, %v1935
      %v1937 = vpop.f32.mrb[0].mxu0
      %1938 = vmatprep.mubr.f32.mxu0 0.0
      %1939 = vmatmul.mubr.f32.gmra.mrb[0].mxu0 %v1752
      %v1940 = vpop.f32.mrb[0].mxu0
      %v1941 = vadd.f32 0.0, %v1940
      %v1942 = vpop.f32.mrb[0].mxu0
      %1943 = vmatprep.mubr.f32.mxu0 0.0
      %1944 = vmatmul.mubr.f32.gmra.mrb[0].mxu0 %v1755
      %v1945 = vpop.f32.mrb[0].mxu0
      %v1946 = vadd.f32 0.0, %v1945
      %v1947 = vpop.f32.mrb[0].mxu0
      %1948 = vmatprep.mubr.f32.mxu0 0.0
      %1949 = vmatmul.mubr.f32.gmra.mrb[0].mxu0 %v1758
      %v1950 = vpop.f32.mrb[0].mxu0
      %v1951 = vadd.f32 0.0, %v1950
      %v1952 = vpop.f32.mrb[0].mxu0
      %1953 = vmatprep.mubr.f32.mxu0 0.0
      %1954 = vmatmul.mubr.f32.gmra.mrb[0].mxu0 %v1761
      %v1955 = vpop.f32.mrb[0].mxu0
      %v1956 = vadd.f32 0.0, %v1955
      %v1957 = vpop.f32.mrb[0].mxu0
      %1958 = vmatprep.mubr.f32.mxu0 0.0
      %1959 = vmatmul.mubr.f32.gmra.mrb[0].mxu0 %v1764
      %v1960 = vpop.f32.mrb[0].mxu0
      %v1961 = vadd.f32 0.0, %v1960
      %v1962 = vpop.f32.mrb[0].mxu0
      %1963 = vmatprep.mubr.f32.mxu0 0.0
      %1964 = vmatmul.mubr.f32.gmra.mrb[0].mxu0 %v1767
      %v1965 = vpop.f32.mrb[0].mxu0
      %v1966 = vadd.f32 0.0, %v1965
      %v1967 = vpop.f32.mrb[0].mxu0
      %1968 = vmatprep.mubr.f32.mxu0 0.0
      %1969 = vmatmul.mubr.f32.gmra.mrb[0].mxu0 %v1770
      %v1970 = vpop.f32.mrb[0].mxu0
      %v1971 = vadd.f32 0.0, %v1970
      %v1972 = vpop.f32.mrb[0].mxu0
      %1973 = vmatprep.mubr.f32.mxu0 0.0
      %1974 = vmatmul.mubr.f32.gmra.mrb[0].mxu0 %v1773
      %v1975 = vpop.f32.mrb[0].mxu0
      %v1976 = vadd.f32 0.0, %v1975
      %v1977 = vpop.f32.mrb[0].mxu0
      %1978 = vmatprep.mubr.f32.mxu0 0.0
      %1979 = vmatmul.mubr.f32.gmra.mrb[0].mxu0 %v1776
      %v1980 = vpop.f32.mrb[0].mxu0
      %v1981 = vadd.f32 0.0, %v1980
      %v1982 = vpop.f32.mrb[0].mxu0
      %1983 = vmatprep.mubr.f32.mxu0 0.0
      %1984 = vmatmul.mubr.f32.gmra.mrb[0].mxu0 %v1779
      %v1985 = vpop.f32.mrb[0].mxu0
      %v1986 = vadd.f32 0.0, %v1985
      %v1987 = vpop.f32.mrb[0].mxu0
      %1988 = vmatprep.mubr.f32.mxu0 0.0
      %1989 = vmatmul.mubr.f32.gmra.mrb[0].mxu0 %v1782
      %v1990 = vpop.f32.mrb[0].mxu0
      %v1991 = vadd.f32 0.0, %v1990
      %v1992 = vpop.f32.mrb[0].mxu0
      %1993 = vmatprep.mubr.f32.mxu0 0.0
      %1994 = vmatmul.mubr.f32.gmra.mrb[0].mxu0 %v1785
      %v1995 = vpop.f32.mrb[0].mxu0
      %v1996 = vadd.f32 0.0, %v1995
      %v1997 = vpop.f32.mrb[0].mxu0
      %1998 = vmatprep.mubr.f32.mxu0 0.0
      %1999 = vmatmul.mubr.f32.gmra.mrb[0].mxu0 %v1788
      %v2000 = vpop.f32.mrb[0].mxu0
      %v2001 = vadd.f32 0.0, %v2000
      %v2002 = vpop.f32.mrb[0].mxu0
      %2003 = vmatprep.mubr.f32.mxu0 0.0
      %2004 = vmatmul.mubr.f32.gmra.mrb[0].mxu0 %v1791
      %v2005 = vpop.f32.mrb[0].mxu0
      %v2006 = vadd.f32 0.0, %v2005
      %v2007 = vpop.f32.mrb[0].mxu0
      %2008 = vmatprep.mubr.f32.mxu0 0.0
      %2009 = vmatmul.mubr.f32.gmra.mrb[0].mxu0 %v1794
      %v2010 = vpop.f32.mrb[0].mxu0
      %v2011 = vadd.f32 0.0, %v2010
      %v2012 = vpop.f32.mrb[0].mxu0
      %2013 = vmatprep.mubr.f32.mxu0 0.0
      %2014 = vmatmul.mubr.f32.gmra.mrb[0].mxu0 %v1797
      %v2015 = vpop.f32.mrb[0].mxu0
      %v2016 = vadd.f32 0.0, %v2015
      %v2017 = vpop.f32.mrb[0].mxu0
      %2018 = vmatprep.mubr.f32.mxu0 0.0
      %2019 = vmatmul.mubr.f32.gmra.mrb[0].mxu0 %v1800
      %v2020 = vpop.f32.mrb[0].mxu0
      %v2021 = vadd.f32 0.0, %v2020
      %v2022 = vpop.f32.mrb[0].mxu0
      %2023 = vmatprep.mubr.f32.mxu0 0.0
      %2024 = vmatmul.mubr.f32.gmra.mrb[0].mxu0 %v1803
      %v2025 = vpop.f32.mrb[0].mxu0
      %v2026 = vadd.f32 0.0, %v2025
      %v2027 = vpop.f32.mrb[0].mxu0
      %2028 = vmatprep.mubr.f32.mxu0 0.0
      %2029 = vmatmul.mubr.f32.gmra.mrb[0].mxu0 %v1806
      %v2030 = vpop.f32.mrb[0].mxu0
      %v2031 = vadd.f32 0.0, %v2030
      %v2032 = vpop.f32.mrb[0].mxu0
      %2033 = vmatprep.mubr.f32.mxu0 0.0
      %2034 = vmatmul.mubr.f32.gmra.mrb[0].mxu0 %v1809
      %v2035 = vpop.f32.mrb[0].mxu0
      %v2036 = vadd.f32 0.0, %v2035
      %v2037 = vpop.f32.mrb[0].mxu0
      %2038 = vdwg.mxu0
      %v2039 = vadd.f32 %v1649, %v1881
      %v2040 = vadd.f32 %v1650, %v1886
      %v2041 = vadd.f32 %v1651, %v1891
      %v2042 = vadd.f32 %v1652, %v1896
      %v2043 = vadd.f32 %v1653, %v1901
      %v2044 = vadd.f32 %v1654, %v1906
      %v2045 = vadd.f32 %v1655, %v1911
      %v2046 = vadd.f32 %v1656, %v1916
      %v2047 = vadd.f32 %v1657, %v1921
      %v2048 = vadd.f32 %v1658, %v1926
      %v2049 = vadd.f32 %v1659, %v1931
      %v2050 = vadd.f32 %v1660, %v1936
      %v2051 = vadd.f32 %v1661, %v1941
      %v2052 = vadd.f32 %v1662, %v1946
      %v2053 = vadd.f32 %v1663, %v1951
      %v2054 = vadd.f32 %v1664, %v1956
      %v2055 = vadd.f32 %v1665, %v1961
      %v2056 = vadd.f32 %v1666, %v1966
      %v2057 = vadd.f32 %v1667, %v1971
      %v2058 = vadd.f32 %v1668, %v1976
      %v2059 = vadd.f32 %v1669, %v1981
      %v2060 = vadd.f32 %v1670, %v1986
      %v2061 = vadd.f32 %v1671, %v1991
      %v2062 = vadd.f32 %v1672, %v1996
      %v2063 = vadd.f32 %v1673, %v2001
      %v2064 = vadd.f32 %v1674, %v2006
      %v2065 = vadd.f32 %v1675, %v2011
      %v2066 = vadd.f32 %v1676, %v2016
      %v2067 = vadd.f32 %v1677, %v2021
      %v2068 = vadd.f32 %v1678, %v2026
      %v2069 = vadd.f32 %v1679, %v2031
      %v2070 = vadd.f32 %v1680, %v2036
      %v2071 = vld [vmem:[%s1290 + $0x2] sm:$0xff]
      %v2072 = vld [vmem:[%s1290 + $0xa] sm:$0xff]
      %v2073 = vld [vmem:[%s1290 + $0x1a] sm:$0xff]
      %v2074 = vld [vmem:[%s1290 + $0x22] sm:$0xff]
      %v2075 = vld [vmem:[%s1290 + $0x32] sm:$0xff]
      %v2076 = vld [vmem:[%s1290 + $0x3a] sm:$0xff]
      %v2077 = vld [vmem:[%s1290 + $0x4a] sm:$0xff]
      %v2078 = vld [vmem:[%s1290 + $0x52] sm:$0xff]
      %v2079 = vld [vmem:[%s1290 + $0x62] sm:$0xff]
      %v2080 = vld [vmem:[%s1290 + $0x6a] sm:$0xff]
      %v2081 = vld [vmem:[%s1290 + $0x7a] sm:$0xff]
      %v2082 = vld [vmem:[%s1290 + $0x82] sm:$0xff]
      %v2083 = vld [vmem:[%s1290 + $0x92] sm:$0xff]
      %v2084 = vld [vmem:[%s1290 + $0x9a] sm:$0xff]
      %v2085 = vld [vmem:[%s1290 + $0xaa] sm:$0xff]
      %v2086 = vld [vmem:[%s1290 + $0xb2] sm:$0xff]
      %v2087 = vld [vmem:[%s1290 + $0xc2] sm:$0xff]
      %v2088 = vld [vmem:[%s1290 + $0xca] sm:$0xff]
      %v2089 = vld [vmem:[%s1290 + $0xda] sm:$0xff]
      %v2090 = vld [vmem:[%s1290 + $0xe2] sm:$0xff]
      %v2091 = vld [vmem:[%s1290 + $0xf2] sm:$0xff]
      %v2092 = vld [vmem:[%s1290 + $0xfa] sm:$0xff]
      %v2093 = vld [vmem:[%s1290 + $0x10a] sm:$0xff]
      %v2094 = vld [vmem:[%s1290 + $0x112] sm:$0xff]
      %v2095 = vld [vmem:[%s1290 + $0x122] sm:$0xff]
      %v2096 = vld [vmem:[%s1290 + $0x12a] sm:$0xff]
      %v2097 = vld [vmem:[%s1290 + $0x13a] sm:$0xff]
      %v2098 = vld [vmem:[%s1290 + $0x142] sm:$0xff]
      %v2099 = vld [vmem:[%s1290 + $0x152] sm:$0xff]
      %v2100 = vld [vmem:[%s1290 + $0x15a] sm:$0xff]
      %v2101 = vld [vmem:[%s1290 + $0x16a] sm:$0xff]
      %v2102 = vld [vmem:[%s1290 + $0x172] sm:$0xff]
      %s2103 = scalar_lea.vmem %s1, 20
      %v2104 = vld [vmem:[%s2103] sm:$0xf]
      %v2106 = vsel %vm250, %v2071, 0
      %v2109 = vsel %vm250, %v2072, 0
      %v2112 = vsel %vm250, %v2073, 0
      %v2115 = vsel %vm250, %v2074, 0
      %v2118 = vsel %vm250, %v2075, 0
      %v2121 = vsel %vm250, %v2076, 0
      %v2124 = vsel %vm250, %v2077, 0
      %v2127 = vsel %vm250, %v2078, 0
      %v2130 = vsel %vm250, %v2079, 0
      %v2133 = vsel %vm250, %v2080, 0
      %v2136 = vsel %vm250, %v2081, 0
      %v2139 = vsel %vm250, %v2082, 0
      %v2142 = vsel %vm250, %v2083, 0
      %v2145 = vsel %vm250, %v2084, 0
      %v2148 = vsel %vm250, %v2085, 0
      %v2151 = vsel %vm250, %v2086, 0
      %v2154 = vsel %vm250, %v2087, 0
      %v2157 = vsel %vm250, %v2088, 0
      %v2160 = vsel %vm250, %v2089, 0
      %v2163 = vsel %vm250, %v2090, 0
      %v2166 = vsel %vm250, %v2091, 0
      %v2169 = vsel %vm250, %v2092, 0
      %v2172 = vsel %vm250, %v2093, 0
      %v2175 = vsel %vm250, %v2094, 0
      %v2178 = vsel %vm250, %v2095, 0
      %v2181 = vsel %vm250, %v2096, 0
      %v2184 = vsel %vm250, %v2097, 0
      %v2187 = vsel %vm250, %v2098, 0
      %v2190 = vsel %vm250, %v2099, 0
      %v2193 = vsel %vm250, %v2100, 0
      %v2196 = vsel %vm250, %v2101, 0
      %v2199 = vsel %vm250, %v2102, 0
      %v2202 = vsel %vm347, %v2104, 0
      %2204 = vmatprep.subr.mxu0 0.0
      %2205 = vmatpush1.msra.mxu0 %v2202
      %2206 = vmatprep.subr.mxu0 0.0
      %2207 = vmatpush1.msra.mxu0 0.0
      %2208 = vmatprep.subr.mxu0 0.0
      %2209 = vmatpush1.msra.mxu0 0.0
      %2210 = vmatprep.subr.mxu0 0.0
      %2211 = vmatpush1.msra.mxu0 0.0
      %2212 = vmatprep.subr.mxu0 0.0
      %2213 = vmatpush1.msra.mxu0 0.0
      %2214 = vmatprep.subr.mxu0 0.0
      %2215 = vmatpush1.msra.mxu0 0.0
      %2216 = vmatprep.subr.mxu0 0.0
      %2217 = vmatpush1.msra.mxu0 0.0
      %2218 = vmatprep.subr.mxu0 0.0
      %2219 = vmatpush1.msra.mxu0 0.0
      %2220 = vmatprep.subr.mxu0 0.0
      %2221 = vmatpush1.msra.mxu0 0.0
      %2222 = vmatprep.subr.mxu0 0.0
      %2223 = vmatpush1.msra.mxu0 0.0
      %2224 = vmatprep.subr.mxu0 0.0
      %2225 = vmatpush1.msra.mxu0 0.0
      %2226 = vmatprep.subr.mxu0 0.0
      %2227 = vmatpush1.msra.mxu0 0.0
      %2228 = vmatprep.subr.mxu0 0.0
      %2229 = vmatpush1.msra.mxu0 0.0
      %2230 = vmatprep.subr.mxu0 0.0
      %2231 = vmatpush1.msra.mxu0 0.0
      %2232 = vmatprep.subr.mxu0 0.0
      %2233 = vmatpush1.msra.mxu0 0.0
      %2234 = vmatprep.subr.mxu0 0.0
      %2235 = vmatpush1.msra.mxu0 0.0
      %2236 = vmatprep.subr.mxu0 0.0
      %2237 = vmatpush1.msra.mxu0 0.0
      %2238 = vmatprep.subr.mxu0 0.0
      %2239 = vmatpush1.msra.mxu0 0.0
      %2240 = vmatprep.subr.mxu0 0.0
      %2241 = vmatpush1.msra.mxu0 0.0
      %2242 = vmatprep.subr.mxu0 0.0
      %2243 = vmatpush1.msra.mxu0 0.0
      %2244 = vmatprep.subr.mxu0 0.0
      %2245 = vmatpush1.msra.mxu0 0.0
      %2246 = vmatprep.subr.mxu0 0.0
      %2247 = vmatpush1.msra.mxu0 0.0
      %2248 = vmatprep.subr.mxu0 0.0
      %2249 = vmatpush1.msra.mxu0 0.0
      %2250 = vmatprep.subr.mxu0 0.0
      %2251 = vmatpush1.msra.mxu0 0.0
      %2252 = vmatprep.subr.mxu0 0.0
      %2253 = vmatpush1.msra.mxu0 0.0
      %2254 = vmatprep.subr.mxu0 0.0
      %2255 = vmatpush1.msra.mxu0 0.0
      %2256 = vmatprep.subr.mxu0 0.0
      %2257 = vmatpush1.msra.mxu0 0.0
      %2258 = vmatprep.subr.mxu0 0.0
      %2259 = vmatpush1.msra.mxu0 0.0
      %2260 = vmatprep.subr.mxu0 0.0
      %2261 = vmatpush1.msra.mxu0 0.0
      %2262 = vmatprep.subr.mxu0 0.0
      %2263 = vmatpush1.msra.mxu0 0.0
      %2264 = vmatprep.subr.mxu0 0.0
      %2265 = vmatpush1.msra.mxu0 0.0
      %2266 = vmatprep.subr.mxu0 0.0
      %2267 = vmatpush1.msra.mxu0 0.0
      %2268 = vmatprep.mubr.f32.mxu0 0.0
      %2269 = vmatmul.mubr.f32.gmra.mrb[0].mxu0 %v2106
      %v2270 = vpop.f32.mrb[0].mxu0
      %v2271 = vadd.f32 0.0, %v2270
      %v2272 = vpop.f32.mrb[0].mxu0
      %2273 = vmatprep.mubr.f32.mxu0 0.0
      %2274 = vmatmul.mubr.f32.gmra.mrb[0].mxu0 %v2109
      %v2275 = vpop.f32.mrb[0].mxu0
      %v2276 = vadd.f32 0.0, %v2275
      %v2277 = vpop.f32.mrb[0].mxu0
      %2278 = vmatprep.mubr.f32.mxu0 0.0
      %2279 = vmatmul.mubr.f32.gmra.mrb[0].mxu0 %v2112
      %v2280 = vpop.f32.mrb[0].mxu0
      %v2281 = vadd.f32 0.0, %v2280
      %v2282 = vpop.f32.mrb[0].mxu0
      %2283 = vmatprep.mubr.f32.mxu0 0.0
      %2284 = vmatmul.mubr.f32.gmra.mrb[0].mxu0 %v2115
      %v2285 = vpop.f32.mrb[0].mxu0
      %v2286 = vadd.f32 0.0, %v2285
      %v2287 = vpop.f32.mrb[0].mxu0
      %2288 = vmatprep.mubr.f32.mxu0 0.0
      %2289 = vmatmul.mubr.f32.gmra.mrb[0].mxu0 %v2118
      %v2290 = vpop.f32.mrb[0].mxu0
      %v2291 = vadd.f32 0.0, %v2290
      %v2292 = vpop.f32.mrb[0].mxu0
      %2293 = vmatprep.mubr.f32.mxu0 0.0
      %2294 = vmatmul.mubr.f32.gmra.mrb[0].mxu0 %v2121
      %v2295 = vpop.f32.mrb[0].mxu0
      %v2296 = vadd.f32 0.0, %v2295
      %v2297 = vpop.f32.mrb[0].mxu0
      %2298 = vmatprep.mubr.f32.mxu0 0.0
      %2299 = vmatmul.mubr.f32.gmra.mrb[0].mxu0 %v2124
      %v2300 = vpop.f32.mrb[0].mxu0
      %v2301 = vadd.f32 0.0, %v2300
      %v2302 = vpop.f32.mrb[0].mxu0
      %2303 = vmatprep.mubr.f32.mxu0 0.0
      %2304 = vmatmul.mubr.f32.gmra.mrb[0].mxu0 %v2127
      %v2305 = vpop.f32.mrb[0].mxu0
      %v2306 = vadd.f32 0.0, %v2305
      %v2307 = vpop.f32.mrb[0].mxu0
      %2308 = vmatprep.mubr.f32.mxu0 0.0
      %2309 = vmatmul.mubr.f32.gmra.mrb[0].mxu0 %v2130
      %v2310 = vpop.f32.mrb[0].mxu0
      %v2311 = vadd.f32 0.0, %v2310
      %v2312 = vpop.f32.mrb[0].mxu0
      %2313 = vmatprep.mubr.f32.mxu0 0.0
      %2314 = vmatmul.mubr.f32.gmra.mrb[0].mxu0 %v2133
      %v2315 = vpop.f32.mrb[0].mxu0
      %v2316 = vadd.f32 0.0, %v2315
      %v2317 = vpop.f32.mrb[0].mxu0
      %2318 = vmatprep.mubr.f32.mxu0 0.0
      %2319 = vmatmul.mubr.f32.gmra.mrb[0].mxu0 %v2136
      %v2320 = vpop.f32.mrb[0].mxu0
      %v2321 = vadd.f32 0.0, %v2320
      %v2322 = vpop.f32.mrb[0].mxu0
      %2323 = vmatprep.mubr.f32.mxu0 0.0
      %2324 = vmatmul.mubr.f32.gmra.mrb[0].mxu0 %v2139
      %v2325 = vpop.f32.mrb[0].mxu0
      %v2326 = vadd.f32 0.0, %v2325
      %v2327 = vpop.f32.mrb[0].mxu0
      %2328 = vmatprep.mubr.f32.mxu0 0.0
      %2329 = vmatmul.mubr.f32.gmra.mrb[0].mxu0 %v2142
      %v2330 = vpop.f32.mrb[0].mxu0
      %v2331 = vadd.f32 0.0, %v2330
      %v2332 = vpop.f32.mrb[0].mxu0
      %2333 = vmatprep.mubr.f32.mxu0 0.0
      %2334 = vmatmul.mubr.f32.gmra.mrb[0].mxu0 %v2145
      %v2335 = vpop.f32.mrb[0].mxu0
      %v2336 = vadd.f32 0.0, %v2335
      %v2337 = vpop.f32.mrb[0].mxu0
      %2338 = vmatprep.mubr.f32.mxu0 0.0
      %2339 = vmatmul.mubr.f32.gmra.mrb[0].mxu0 %v2148
      %v2340 = vpop.f32.mrb[0].mxu0
      %v2341 = vadd.f32 0.0, %v2340
      %v2342 = vpop.f32.mrb[0].mxu0
      %2343 = vmatprep.mubr.f32.mxu0 0.0
      %2344 = vmatmul.mubr.f32.gmra.mrb[0].mxu0 %v2151
      %v2345 = vpop.f32.mrb[0].mxu0
      %v2346 = vadd.f32 0.0, %v2345
      %v2347 = vpop.f32.mrb[0].mxu0
      %2348 = vmatprep.mubr.f32.mxu0 0.0
      %2349 = vmatmul.mubr.f32.gmra.mrb[0].mxu0 %v2154
      %v2350 = vpop.f32.mrb[0].mxu0
      %v2351 = vadd.f32 0.0, %v2350
      %v2352 = vpop.f32.mrb[0].mxu0
      %2353 = vmatprep.mubr.f32.mxu0 0.0
      %2354 = vmatmul.mubr.f32.gmra.mrb[0].mxu0 %v2157
      %v2355 = vpop.f32.mrb[0].mxu0
      %v2356 = vadd.f32 0.0, %v2355
      %v2357 = vpop.f32.mrb[0].mxu0
      %2358 = vmatprep.mubr.f32.mxu0 0.0
      %2359 = vmatmul.mubr.f32.gmra.mrb[0].mxu0 %v2160
      %v2360 = vpop.f32.mrb[0].mxu0
      %v2361 = vadd.f32 0.0, %v2360
      %v2362 = vpop.f32.mrb[0].mxu0
      %2363 = vmatprep.mubr.f32.mxu0 0.0
      %2364 = vmatmul.mubr.f32.gmra.mrb[0].mxu0 %v2163
      %v2365 = vpop.f32.mrb[0].mxu0
      %v2366 = vadd.f32 0.0, %v2365
      %v2367 = vpop.f32.mrb[0].mxu0
      %2368 = vmatprep.mubr.f32.mxu0 0.0
      %2369 = vmatmul.mubr.f32.gmra.mrb[0].mxu0 %v2166
      %v2370 = vpop.f32.mrb[0].mxu0
      %v2371 = vadd.f32 0.0, %v2370
      %v2372 = vpop.f32.mrb[0].mxu0
      %2373 = vmatprep.mubr.f32.mxu0 0.0
      %2374 = vmatmul.mubr.f32.gmra.mrb[0].mxu0 %v2169
      %v2375 = vpop.f32.mrb[0].mxu0
      %v2376 = vadd.f32 0.0, %v2375
      %v2377 = vpop.f32.mrb[0].mxu0
      %2378 = vmatprep.mubr.f32.mxu0 0.0
      %2379 = vmatmul.mubr.f32.gmra.mrb[0].mxu0 %v2172
      %v2380 = vpop.f32.mrb[0].mxu0
      %v2381 = vadd.f32 0.0, %v2380
      %v2382 = vpop.f32.mrb[0].mxu0
      %2383 = vmatprep.mubr.f32.mxu0 0.0
      %2384 = vmatmul.mubr.f32.gmra.mrb[0].mxu0 %v2175
      %v2385 = vpop.f32.mrb[0].mxu0
      %v2386 = vadd.f32 0.0, %v2385
      %v2387 = vpop.f32.mrb[0].mxu0
      %2388 = vmatprep.mubr.f32.mxu0 0.0
      %2389 = vmatmul.mubr.f32.gmra.mrb[0].mxu0 %v2178
      %v2390 = vpop.f32.mrb[0].mxu0
      %v2391 = vadd.f32 0.0, %v2390
      %v2392 = vpop.f32.mrb[0].mxu0
      %2393 = vmatprep.mubr.f32.mxu0 0.0
      %2394 = vmatmul.mubr.f32.gmra.mrb[0].mxu0 %v2181
      %v2395 = vpop.f32.mrb[0].mxu0
      %v2396 = vadd.f32 0.0, %v2395
      %v2397 = vpop.f32.mrb[0].mxu0
      %2398 = vmatprep.mubr.f32.mxu0 0.0
      %2399 = vmatmul.mubr.f32.gmra.mrb[0].mxu0 %v2184
      %v2400 = vpop.f32.mrb[0].mxu0
      %v2401 = vadd.f32 0.0, %v2400
      %v2402 = vpop.f32.mrb[0].mxu0
      %2403 = vmatprep.mubr.f32.mxu0 0.0
      %2404 = vmatmul.mubr.f32.gmra.mrb[0].mxu0 %v2187
      %v2405 = vpop.f32.mrb[0].mxu0
      %v2406 = vadd.f32 0.0, %v2405
      %v2407 = vpop.f32.mrb[0].mxu0
      %2408 = vmatprep.mubr.f32.mxu0 0.0
      %2409 = vmatmul.mubr.f32.gmra.mrb[0].mxu0 %v2190
      %v2410 = vpop.f32.mrb[0].mxu0
      %v2411 = vadd.f32 0.0, %v2410
      %v2412 = vpop.f32.mrb[0].mxu0
      %2413 = vmatprep.mubr.f32.mxu0 0.0
      %2414 = vmatmul.mubr.f32.gmra.mrb[0].mxu0 %v2193
      %v2415 = vpop.f32.mrb[0].mxu0
      %v2416 = vadd.f32 0.0, %v2415
      %v2417 = vpop.f32.mrb[0].mxu0
      %2418 = vmatprep.mubr.f32.mxu0 0.0
      %2419 = vmatmul.mubr.f32.gmra.mrb[0].mxu0 %v2196
      %v2420 = vpop.f32.mrb[0].mxu0
      %v2421 = vadd.f32 0.0, %v2420
      %v2422 = vpop.f32.mrb[0].mxu0
      %2423 = vmatprep.mubr.f32.mxu0 0.0
      %2424 = vmatmul.mubr.f32.gmra.mrb[0].mxu0 %v2199
      %v2425 = vpop.f32.mrb[0].mxu0
      %v2426 = vadd.f32 0.0, %v2425
      %v2427 = vpop.f32.mrb[0].mxu0
      %2428 = vdwg.mxu0
      %v2429 = vadd.f32 %v2039, %v2271
      %v2430 = vadd.f32 %v2040, %v2276
      %v2431 = vadd.f32 %v2041, %v2281
      %v2432 = vadd.f32 %v2042, %v2286
      %v2433 = vadd.f32 %v2043, %v2291
      %v2434 = vadd.f32 %v2044, %v2296
      %v2435 = vadd.f32 %v2045, %v2301
      %v2436 = vadd.f32 %v2046, %v2306
      %v2437 = vadd.f32 %v2047, %v2311
      %v2438 = vadd.f32 %v2048, %v2316
      %v2439 = vadd.f32 %v2049, %v2321
      %v2440 = vadd.f32 %v2050, %v2326
      %v2441 = vadd.f32 %v2051, %v2331
      %v2442 = vadd.f32 %v2052, %v2336
      %v2443 = vadd.f32 %v2053, %v2341
      %v2444 = vadd.f32 %v2054, %v2346
      %v2445 = vadd.f32 %v2055, %v2351
      %v2446 = vadd.f32 %v2056, %v2356
      %v2447 = vadd.f32 %v2057, %v2361
      %v2448 = vadd.f32 %v2058, %v2366
      %v2449 = vadd.f32 %v2059, %v2371
      %v2450 = vadd.f32 %v2060, %v2376
      %v2451 = vadd.f32 %v2061, %v2381
      %v2452 = vadd.f32 %v2062, %v2386
      %v2453 = vadd.f32 %v2063, %v2391
      %v2454 = vadd.f32 %v2064, %v2396
      %v2455 = vadd.f32 %v2065, %v2401
      %v2456 = vadd.f32 %v2066, %v2406
      %v2457 = vadd.f32 %v2067, %v2411
      %v2458 = vadd.f32 %v2068, %v2416
      %v2459 = vadd.f32 %v2069, %v2421
      %v2460 = vadd.f32 %v2070, %v2426
      %s2461 = scalar_lea.vmem %s172, 48
      %v2462 = vld [vmem:[%s2461] sm:$0xff]
      %v2463 = vld [vmem:[%s2461 + $0x8] sm:$0xff]
      %v2464 = vld [vmem:[%s2461 + $0x18] sm:$0xff]
      %v2465 = vld [vmem:[%s2461 + $0x20] sm:$0xff]
      %v2466 = vld [vmem:[%s2461 + $0x30] sm:$0xff]
      %v2467 = vld [vmem:[%s2461 + $0x38] sm:$0xff]
      %v2468 = vld [vmem:[%s2461 + $0x48] sm:$0xff]
      %v2469 = vld [vmem:[%s2461 + $0x50] sm:$0xff]
      %v2470 = vld [vmem:[%s2461 + $0x60] sm:$0xff]
      %v2471 = vld [vmem:[%s2461 + $0x68] sm:$0xff]
      %v2472 = vld [vmem:[%s2461 + $0x78] sm:$0xff]
      %v2473 = vld [vmem:[%s2461 + $0x80] sm:$0xff]
      %v2474 = vld [vmem:[%s2461 + $0x90] sm:$0xff]
      %v2475 = vld [vmem:[%s2461 + $0x98] sm:$0xff]
      %v2476 = vld [vmem:[%s2461 + $0xa8] sm:$0xff]
      %v2477 = vld [vmem:[%s2461 + $0xb0] sm:$0xff]
      %v2478 = vld [vmem:[%s2461 + $0xc0] sm:$0xff]
      %v2479 = vld [vmem:[%s2461 + $0xc8] sm:$0xff]
      %v2480 = vld [vmem:[%s2461 + $0xd8] sm:$0xff]
      %v2481 = vld [vmem:[%s2461 + $0xe0] sm:$0xff]
      %v2482 = vld [vmem:[%s2461 + $0xf0] sm:$0xff]
      %v2483 = vld [vmem:[%s2461 + $0xf8] sm:$0xff]
      %v2484 = vld [vmem:[%s2461 + $0x108] sm:$0xff]
      %v2485 = vld [vmem:[%s2461 + $0x110] sm:$0xff]
      %v2486 = vld [vmem:[%s2461 + $0x120] sm:$0xff]
      %v2487 = vld [vmem:[%s2461 + $0x128] sm:$0xff]
      %v2488 = vld [vmem:[%s2461 + $0x138] sm:$0xff]
      %v2489 = vld [vmem:[%s2461 + $0x140] sm:$0xff]
      %v2490 = vld [vmem:[%s2461 + $0x150] sm:$0xff]
      %v2491 = vld [vmem:[%s2461 + $0x158] sm:$0xff]
      %v2492 = vld [vmem:[%s2461 + $0x168] sm:$0xff]
      %v2493 = vld [vmem:[%s2461 + $0x170] sm:$0xff]
      %s2494 = scalar_lea.vmem %s1, 24
      %v2495 = vld [vmem:[%s2494] sm:$0xf]
      %v2497 = vsel %vm250, %v2462, 0
      %v2500 = vsel %vm250, %v2463, 0
      %v2503 = vsel %vm250, %v2464, 0
      %v2506 = vsel %vm250, %v2465, 0
      %v2509 = vsel %vm250, %v2466, 0
      %v2512 = vsel %vm250, %v2467, 0
      %v2515 = vsel %vm250, %v2468, 0
      %v2518 = vsel %vm250, %v2469, 0
      %v2521 = vsel %vm250, %v2470, 0
      %v2524 = vsel %vm250, %v2471, 0
      %v2527 = vsel %vm250, %v2472, 0
      %v2530 = vsel %vm250, %v2473, 0
      %v2533 = vsel %vm250, %v2474, 0
      %v2536 = vsel %vm250, %v2475, 0
      %v2539 = vsel %vm250, %v2476, 0
      %v2542 = vsel %vm250, %v2477, 0
      %v2545 = vsel %vm250, %v2478, 0
      %v2548 = vsel %vm250, %v2479, 0
      %v2551 = vsel %vm250, %v2480, 0
      %v2554 = vsel %vm250, %v2481, 0
      %v2557 = vsel %vm250, %v2482, 0
      %v2560 = vsel %vm250, %v2483, 0
      %v2563 = vsel %vm250, %v2484, 0
      %v2566 = vsel %vm250, %v2485, 0
      %v2569 = vsel %vm250, %v2486, 0
      %v2572 = vsel %vm250, %v2487, 0
      %v2575 = vsel %vm250, %v2488, 0
      %v2578 = vsel %vm250, %v2489, 0
      %v2581 = vsel %vm250, %v2490, 0
      %v2584 = vsel %vm250, %v2491, 0
      %v2587 = vsel %vm250, %v2492, 0
      %v2590 = vsel %vm250, %v2493, 0
      %v2593 = vsel %vm347, %v2495, 0
      %2595 = vmatprep.subr.mxu0 0.0
      %2596 = vmatpush1.msra.mxu0 %v2593
      %2597 = vmatprep.subr.mxu0 0.0
      %2598 = vmatpush1.msra.mxu0 0.0
      %2599 = vmatprep.subr.mxu0 0.0
      %2600 = vmatpush1.msra.mxu0 0.0
      %2601 = vmatprep.subr.mxu0 0.0
      %2602 = vmatpush1.msra.mxu0 0.0
      %2603 = vmatprep.subr.mxu0 0.0
      %2604 = vmatpush1.msra.mxu0 0.0
      %2605 = vmatprep.subr.mxu0 0.0
      %2606 = vmatpush1.msra.mxu0 0.0
      %2607 = vmatprep.subr.mxu0 0.0
      %2608 = vmatpush1.msra.mxu0 0.0
      %2609 = vmatprep.subr.mxu0 0.0
      %2610 = vmatpush1.msra.mxu0 0.0
      %2611 = vmatprep.subr.mxu0 0.0
      %2612 = vmatpush1.msra.mxu0 0.0
      %2613 = vmatprep.subr.mxu0 0.0
      %2614 = vmatpush1.msra.mxu0 0.0
      %2615 = vmatprep.subr.mxu0 0.0
      %2616 = vmatpush1.msra.mxu0 0.0
      %2617 = vmatprep.subr.mxu0 0.0
      %2618 = vmatpush1.msra.mxu0 0.0
      %2619 = vmatprep.subr.mxu0 0.0
      %2620 = vmatpush1.msra.mxu0 0.0
      %2621 = vmatprep.subr.mxu0 0.0
      %2622 = vmatpush1.msra.mxu0 0.0
      %2623 = vmatprep.subr.mxu0 0.0
      %2624 = vmatpush1.msra.mxu0 0.0
      %2625 = vmatprep.subr.mxu0 0.0
      %2626 = vmatpush1.msra.mxu0 0.0
      %2627 = vmatprep.subr.mxu0 0.0
      %2628 = vmatpush1.msra.mxu0 0.0
      %2629 = vmatprep.subr.mxu0 0.0
      %2630 = vmatpush1.msra.mxu0 0.0
      %2631 = vmatprep.subr.mxu0 0.0
      %2632 = vmatpush1.msra.mxu0 0.0
      %2633 = vmatprep.subr.mxu0 0.0
      %2634 = vmatpush1.msra.mxu0 0.0
      %2635 = vmatprep.subr.mxu0 0.0
      %2636 = vmatpush1.msra.mxu0 0.0
      %2637 = vmatprep.subr.mxu0 0.0
      %2638 = vmatpush1.msra.mxu0 0.0
      %2639 = vmatprep.subr.mxu0 0.0
      %2640 = vmatpush1.msra.mxu0 0.0
      %2641 = vmatprep.subr.mxu0 0.0
      %2642 = vmatpush1.msra.mxu0 0.0
      %2643 = vmatprep.subr.mxu0 0.0
      %2644 = vmatpush1.msra.mxu0 0.0
      %2645 = vmatprep.subr.mxu0 0.0
      %2646 = vmatpush1.msra.mxu0 0.0
      %2647 = vmatprep.subr.mxu0 0.0
      %2648 = vmatpush1.msra.mxu0 0.0
      %2649 = vmatprep.subr.mxu0 0.0
      %2650 = vmatpush1.msra.mxu0 0.0
      %2651 = vmatprep.subr.mxu0 0.0
      %2652 = vmatpush1.msra.mxu0 0.0
      %2653 = vmatprep.subr.mxu0 0.0
      %2654 = vmatpush1.msra.mxu0 0.0
      %2655 = vmatprep.subr.mxu0 0.0
      %2656 = vmatpush1.msra.mxu0 0.0
      %2657 = vmatprep.subr.mxu0 0.0
      %2658 = vmatpush1.msra.mxu0 0.0
      %2659 = vmatprep.mubr.f32.mxu0 0.0
      %2660 = vmatmul.mubr.f32.gmra.mrb[0].mxu0 %v2497
      %v2661 = vpop.f32.mrb[0].mxu0
      %v2662 = vadd.f32 0.0, %v2661
      %v2663 = vpop.f32.mrb[0].mxu0
      %2664 = vmatprep.mubr.f32.mxu0 0.0
      %2665 = vmatmul.mubr.f32.gmra.mrb[0].mxu0 %v2500
      %v2666 = vpop.f32.mrb[0].mxu0
      %v2667 = vadd.f32 0.0, %v2666
      %v2668 = vpop.f32.mrb[0].mxu0
      %2669 = vmatprep.mubr.f32.mxu0 0.0
      %2670 = vmatmul.mubr.f32.gmra.mrb[0].mxu0 %v2503
      %v2671 = vpop.f32.mrb[0].mxu0
      %v2672 = vadd.f32 0.0, %v2671
      %v2673 = vpop.f32.mrb[0].mxu0
      %2674 = vmatprep.mubr.f32.mxu0 0.0
      %2675 = vmatmul.mubr.f32.gmra.mrb[0].mxu0 %v2506
      %v2676 = vpop.f32.mrb[0].mxu0
      %v2677 = vadd.f32 0.0, %v2676
      %v2678 = vpop.f32.mrb[0].mxu0
      %2679 = vmatprep.mubr.f32.mxu0 0.0
      %2680 = vmatmul.mubr.f32.gmra.mrb[0].mxu0 %v2509
      %v2681 = vpop.f32.mrb[0].mxu0
      %v2682 = vadd.f32 0.0, %v2681
      %v2683 = vpop.f32.mrb[0].mxu0
      %2684 = vmatprep.mubr.f32.mxu0 0.0
      %2685 = vmatmul.mubr.f32.gmra.mrb[0].mxu0 %v2512
      %v2686 = vpop.f32.mrb[0].mxu0
      %v2687 = vadd.f32 0.0, %v2686
      %v2688 = vpop.f32.mrb[0].mxu0
      %2689 = vmatprep.mubr.f32.mxu0 0.0
      %2690 = vmatmul.mubr.f32.gmra.mrb[0].mxu0 %v2515
      %v2691 = vpop.f32.mrb[0].mxu0
      %v2692 = vadd.f32 0.0, %v2691
      %v2693 = vpop.f32.mrb[0].mxu0
      %2694 = vmatprep.mubr.f32.mxu0 0.0
      %2695 = vmatmul.mubr.f32.gmra.mrb[0].mxu0 %v2518
      %v2696 = vpop.f32.mrb[0].mxu0
      %v2697 = vadd.f32 0.0, %v2696
      %v2698 = vpop.f32.mrb[0].mxu0
      %2699 = vmatprep.mubr.f32.mxu0 0.0
      %2700 = vmatmul.mubr.f32.gmra.mrb[0].mxu0 %v2521
      %v2701 = vpop.f32.mrb[0].mxu0
      %v2702 = vadd.f32 0.0, %v2701
      %v2703 = vpop.f32.mrb[0].mxu0
      %2704 = vmatprep.mubr.f32.mxu0 0.0
      %2705 = vmatmul.mubr.f32.gmra.mrb[0].mxu0 %v2524
      %v2706 = vpop.f32.mrb[0].mxu0
      %v2707 = vadd.f32 0.0, %v2706
      %v2708 = vpop.f32.mrb[0].mxu0
      %2709 = vmatprep.mubr.f32.mxu0 0.0
      %2710 = vmatmul.mubr.f32.gmra.mrb[0].mxu0 %v2527
      %v2711 = vpop.f32.mrb[0].mxu0
      %v2712 = vadd.f32 0.0, %v2711
      %v2713 = vpop.f32.mrb[0].mxu0
      %2714 = vmatprep.mubr.f32.mxu0 0.0
      %2715 = vmatmul.mubr.f32.gmra.mrb[0].mxu0 %v2530
      %v2716 = vpop.f32.mrb[0].mxu0
      %v2717 = vadd.f32 0.0, %v2716
      %v2718 = vpop.f32.mrb[0].mxu0
      %2719 = vmatprep.mubr.f32.mxu0 0.0
      %2720 = vmatmul.mubr.f32.gmra.mrb[0].mxu0 %v2533
      %v2721 = vpop.f32.mrb[0].mxu0
      %v2722 = vadd.f32 0.0, %v2721
      %v2723 = vpop.f32.mrb[0].mxu0
      %2724 = vmatprep.mubr.f32.mxu0 0.0
      %2725 = vmatmul.mubr.f32.gmra.mrb[0].mxu0 %v2536
      %v2726 = vpop.f32.mrb[0].mxu0
      %v2727 = vadd.f32 0.0, %v2726
      %v2728 = vpop.f32.mrb[0].mxu0
      %2729 = vmatprep.mubr.f32.mxu0 0.0
      %2730 = vmatmul.mubr.f32.gmra.mrb[0].mxu0 %v2539
      %v2731 = vpop.f32.mrb[0].mxu0
      %v2732 = vadd.f32 0.0, %v2731
      %v2733 = vpop.f32.mrb[0].mxu0
      %2734 = vmatprep.mubr.f32.mxu0 0.0
      %2735 = vmatmul.mubr.f32.gmra.mrb[0].mxu0 %v2542
      %v2736 = vpop.f32.mrb[0].mxu0
      %v2737 = vadd.f32 0.0, %v2736
      %v2738 = vpop.f32.mrb[0].mxu0
      %2739 = vmatprep.mubr.f32.mxu0 0.0
      %2740 = vmatmul.mubr.f32.gmra.mrb[0].mxu0 %v2545
      %v2741 = vpop.f32.mrb[0].mxu0
      %v2742 = vadd.f32 0.0, %v2741
      %v2743 = vpop.f32.mrb[0].mxu0
      %2744 = vmatprep.mubr.f32.mxu0 0.0
      %2745 = vmatmul.mubr.f32.gmra.mrb[0].mxu0 %v2548
      %v2746 = vpop.f32.mrb[0].mxu0
      %v2747 = vadd.f32 0.0, %v2746
      %v2748 = vpop.f32.mrb[0].mxu0
      %2749 = vmatprep.mubr.f32.mxu0 0.0
      %2750 = vmatmul.mubr.f32.gmra.mrb[0].mxu0 %v2551
      %v2751 = vpop.f32.mrb[0].mxu0
      %v2752 = vadd.f32 0.0, %v2751
      %v2753 = vpop.f32.mrb[0].mxu0
      %2754 = vmatprep.mubr.f32.mxu0 0.0
      %2755 = vmatmul.mubr.f32.gmra.mrb[0].mxu0 %v2554
      %v2756 = vpop.f32.mrb[0].mxu0
      %v2757 = vadd.f32 0.0, %v2756
      %v2758 = vpop.f32.mrb[0].mxu0
      %2759 = vmatprep.mubr.f32.mxu0 0.0
      %2760 = vmatmul.mubr.f32.gmra.mrb[0].mxu0 %v2557
      %v2761 = vpop.f32.mrb[0].mxu0
      %v2762 = vadd.f32 0.0, %v2761
      %v2763 = vpop.f32.mrb[0].mxu0
      %2764 = vmatprep.mubr.f32.mxu0 0.0
      %2765 = vmatmul.mubr.f32.gmra.mrb[0].mxu0 %v2560
      %v2766 = vpop.f32.mrb[0].mxu0
      %v2767 = vadd.f32 0.0, %v2766
      %v2768 = vpop.f32.mrb[0].mxu0
      %2769 = vmatprep.mubr.f32.mxu0 0.0
      %2770 = vmatmul.mubr.f32.gmra.mrb[0].mxu0 %v2563
      %v2771 = vpop.f32.mrb[0].mxu0
      %v2772 = vadd.f32 0.0, %v2771
      %v2773 = vpop.f32.mrb[0].mxu0
      %2774 = vmatprep.mubr.f32.mxu0 0.0
      %2775 = vmatmul.mubr.f32.gmra.mrb[0].mxu0 %v2566
      %v2776 = vpop.f32.mrb[0].mxu0
      %v2777 = vadd.f32 0.0, %v2776
      %v2778 = vpop.f32.mrb[0].mxu0
      %2779 = vmatprep.mubr.f32.mxu0 0.0
      %2780 = vmatmul.mubr.f32.gmra.mrb[0].mxu0 %v2569
      %v2781 = vpop.f32.mrb[0].mxu0
      %v2782 = vadd.f32 0.0, %v2781
      %v2783 = vpop.f32.mrb[0].mxu0
      %2784 = vmatprep.mubr.f32.mxu0 0.0
      %2785 = vmatmul.mubr.f32.gmra.mrb[0].mxu0 %v2572
      %v2786 = vpop.f32.mrb[0].mxu0
      %v2787 = vadd.f32 0.0, %v2786
      %v2788 = vpop.f32.mrb[0].mxu0
      %2789 = vmatprep.mubr.f32.mxu0 0.0
      %2790 = vmatmul.mubr.f32.gmra.mrb[0].mxu0 %v2575
      %v2791 = vpop.f32.mrb[0].mxu0
      %v2792 = vadd.f32 0.0, %v2791
      %v2793 = vpop.f32.mrb[0].mxu0
      %2794 = vmatprep.mubr.f32.mxu0 0.0
      %2795 = vmatmul.mubr.f32.gmra.mrb[0].mxu0 %v2578
      %v2796 = vpop.f32.mrb[0].mxu0
      %v2797 = vadd.f32 0.0, %v2796
      %v2798 = vpop.f32.mrb[0].mxu0
      %2799 = vmatprep.mubr.f32.mxu0 0.0
      %2800 = vmatmul.mubr.f32.gmra.mrb[0].mxu0 %v2581
      %v2801 = vpop.f32.mrb[0].mxu0
      %v2802 = vadd.f32 0.0, %v2801
      %v2803 = vpop.f32.mrb[0].mxu0
      %2804 = vmatprep.mubr.f32.mxu0 0.0
      %2805 = vmatmul.mubr.f32.gmra.mrb[0].mxu0 %v2584
      %v2806 = vpop.f32.mrb[0].mxu0
      %v2807 = vadd.f32 0.0, %v2806
      %v2808 = vpop.f32.mrb[0].mxu0
      %2809 = vmatprep.mubr.f32.mxu0 0.0
      %2810 = vmatmul.mubr.f32.gmra.mrb[0].mxu0 %v2587
      %v2811 = vpop.f32.mrb[0].mxu0
      %v2812 = vadd.f32 0.0, %v2811
      %v2813 = vpop.f32.mrb[0].mxu0
      %2814 = vmatprep.mubr.f32.mxu0 0.0
      %2815 = vmatmul.mubr.f32.gmra.mrb[0].mxu0 %v2590
      %v2816 = vpop.f32.mrb[0].mxu0
      %v2817 = vadd.f32 0.0, %v2816
      %v2818 = vpop.f32.mrb[0].mxu0
      %2819 = vdwg.mxu0
      %v2820 = vadd.f32 %v2429, %v2662
      %v2821 = vadd.f32 %v2430, %v2667
      %v2822 = vadd.f32 %v2431, %v2672
      %v2823 = vadd.f32 %v2432, %v2677
      %v2824 = vadd.f32 %v2433, %v2682
      %v2825 = vadd.f32 %v2434, %v2687
      %v2826 = vadd.f32 %v2435, %v2692
      %v2827 = vadd.f32 %v2436, %v2697
      %v2828 = vadd.f32 %v2437, %v2702
      %v2829 = vadd.f32 %v2438, %v2707
      %v2830 = vadd.f32 %v2439, %v2712
      %v2831 = vadd.f32 %v2440, %v2717
      %v2832 = vadd.f32 %v2441, %v2722
      %v2833 = vadd.f32 %v2442, %v2727
      %v2834 = vadd.f32 %v2443, %v2732
      %v2835 = vadd.f32 %v2444, %v2737
      %v2836 = vadd.f32 %v2445, %v2742
      %v2837 = vadd.f32 %v2446, %v2747
      %v2838 = vadd.f32 %v2447, %v2752
      %v2839 = vadd.f32 %v2448, %v2757
      %v2840 = vadd.f32 %v2449, %v2762
      %v2841 = vadd.f32 %v2450, %v2767
      %v2842 = vadd.f32 %v2451, %v2772
      %v2843 = vadd.f32 %v2452, %v2777
      %v2844 = vadd.f32 %v2453, %v2782
      %v2845 = vadd.f32 %v2454, %v2787
      %v2846 = vadd.f32 %v2455, %v2792
      %v2847 = vadd.f32 %v2456, %v2797
      %v2848 = vadd.f32 %v2457, %v2802
      %v2849 = vadd.f32 %v2458, %v2807
      %v2850 = vadd.f32 %v2459, %v2812
      %v2851 = vadd.f32 %v2460, %v2817
      %v2852 = vld [vmem:[%s2461 + $0x1] sm:$0xff]
      %v2853 = vld [vmem:[%s2461 + $0x9] sm:$0xff]
      %v2854 = vld [vmem:[%s2461 + $0x19] sm:$0xff]
      %v2855 = vld [vmem:[%s2461 + $0x21] sm:$0xff]
      %v2856 = vld [vmem:[%s2461 + $0x31] sm:$0xff]
      %v2857 = vld [vmem:[%s2461 + $0x39] sm:$0xff]
      %v2858 = vld [vmem:[%s2461 + $0x49] sm:$0xff]
      %v2859 = vld [vmem:[%s2461 + $0x51] sm:$0xff]
      %v2860 = vld [vmem:[%s2461 + $0x61] sm:$0xff]
      %v2861 = vld [vmem:[%s2461 + $0x69] sm:$0xff]
      %v2862 = vld [vmem:[%s2461 + $0x79] sm:$0xff]
      %v2863 = vld [vmem:[%s2461 + $0x81] sm:$0xff]
      %v2864 = vld [vmem:[%s2461 + $0x91] sm:$0xff]
      %v2865 = vld [vmem:[%s2461 + $0x99] sm:$0xff]
      %v2866 = vld [vmem:[%s2461 + $0xa9] sm:$0xff]
      %v2867 = vld [vmem:[%s2461 + $0xb1] sm:$0xff]
      %v2868 = vld [vmem:[%s2461 + $0xc1] sm:$0xff]
      %v2869 = vld [vmem:[%s2461 + $0xc9] sm:$0xff]
      %v2870 = vld [vmem:[%s2461 + $0xd9] sm:$0xff]
      %v2871 = vld [vmem:[%s2461 + $0xe1] sm:$0xff]
      %v2872 = vld [vmem:[%s2461 + $0xf1] sm:$0xff]
      %v2873 = vld [vmem:[%s2461 + $0xf9] sm:$0xff]
      %v2874 = vld [vmem:[%s2461 + $0x109] sm:$0xff]
      %v2875 = vld [vmem:[%s2461 + $0x111] sm:$0xff]
      %v2876 = vld [vmem:[%s2461 + $0x121] sm:$0xff]
      %v2877 = vld [vmem:[%s2461 + $0x129] sm:$0xff]
      %v2878 = vld [vmem:[%s2461 + $0x139] sm:$0xff]
      %v2879 = vld [vmem:[%s2461 + $0x141] sm:$0xff]
      %v2880 = vld [vmem:[%s2461 + $0x151] sm:$0xff]
      %v2881 = vld [vmem:[%s2461 + $0x159] sm:$0xff]
      %v2882 = vld [vmem:[%s2461 + $0x169] sm:$0xff]
      %v2883 = vld [vmem:[%s2461 + $0x171] sm:$0xff]
      %s2884 = scalar_lea.vmem %s1, 28
      %v2885 = vld [vmem:[%s2884] sm:$0xf]
      %v2887 = vsel %vm250, %v2852, 0
      %v2890 = vsel %vm250, %v2853, 0
      %v2893 = vsel %vm250, %v2854, 0
      %v2896 = vsel %vm250, %v2855, 0
      %v2899 = vsel %vm250, %v2856, 0
      %v2902 = vsel %vm250, %v2857, 0
      %v2905 = vsel %vm250, %v2858, 0
      %v2908 = vsel %vm250, %v2859, 0
      %v2911 = vsel %vm250, %v2860, 0
      %v2914 = vsel %vm250, %v2861, 0
      %v2917 = vsel %vm250, %v2862, 0
      %v2920 = vsel %vm250, %v2863, 0
      %v2923 = vsel %vm250, %v2864, 0
      %v2926 = vsel %vm250, %v2865, 0
      %v2929 = vsel %vm250, %v2866, 0
      %v2932 = vsel %vm250, %v2867, 0
      %v2935 = vsel %vm250, %v2868, 0
      %v2938 = vsel %vm250, %v2869, 0
      %v2941 = vsel %vm250, %v2870, 0
      %v2944 = vsel %vm250, %v2871, 0
      %v2947 = vsel %vm250, %v2872, 0
      %v2950 = vsel %vm250, %v2873, 0
      %v2953 = vsel %vm250, %v2874, 0
      %v2956 = vsel %vm250, %v2875, 0
      %v2959 = vsel %vm250, %v2876, 0
      %v2962 = vsel %vm250, %v2877, 0
      %v2965 = vsel %vm250, %v2878, 0
      %v2968 = vsel %vm250, %v2879, 0
      %v2971 = vsel %vm250, %v2880, 0
      %v2974 = vsel %vm250, %v2881, 0
      %v2977 = vsel %vm250, %v2882, 0
      %v2980 = vsel %vm250, %v2883, 0
      %v2983 = vsel %vm347, %v2885, 0
      %2985 = vmatprep.subr.mxu0 0.0
      %2986 = vmatpush1.msra.mxu0 %v2983
      %2987 = vmatprep.subr.mxu0 0.0
      %2988 = vmatpush1.msra.mxu0 0.0
      %2989 = vmatprep.subr.mxu0 0.0
      %2990 = vmatpush1.msra.mxu0 0.0
      %2991 = vmatprep.subr.mxu0 0.0
      %2992 = vmatpush1.msra.mxu0 0.0
      %2993 = vmatprep.subr.mxu0 0.0
      %2994 = vmatpush1.msra.mxu0 0.0
      %2995 = vmatprep.subr.mxu0 0.0
      %2996 = vmatpush1.msra.mxu0 0.0
      %2997 = vmatprep.subr.mxu0 0.0
      %2998 = vmatpush1.msra.mxu0 0.0
      %2999 = vmatprep.subr.mxu0 0.0
      %3000 = vmatpush1.msra.mxu0 0.0
      %3001 = vmatprep.subr.mxu0 0.0
      %3002 = vmatpush1.msra.mxu0 0.0
      %3003 = vmatprep.subr.mxu0 0.0
      %3004 = vmatpush1.msra.mxu0 0.0
      %3005 = vmatprep.subr.mxu0 0.0
      %3006 = vmatpush1.msra.mxu0 0.0
      %3007 = vmatprep.subr.mxu0 0.0
      %3008 = vmatpush1.msra.mxu0 0.0
      %3009 = vmatprep.subr.mxu0 0.0
      %3010 = vmatpush1.msra.mxu0 0.0
      %3011 = vmatprep.subr.mxu0 0.0
      %3012 = vmatpush1.msra.mxu0 0.0
      %3013 = vmatprep.subr.mxu0 0.0
      %3014 = vmatpush1.msra.mxu0 0.0
      %3015 = vmatprep.subr.mxu0 0.0
      %3016 = vmatpush1.msra.mxu0 0.0
      %3017 = vmatprep.subr.mxu0 0.0
      %3018 = vmatpush1.msra.mxu0 0.0
      %3019 = vmatprep.subr.mxu0 0.0
      %3020 = vmatpush1.msra.mxu0 0.0
      %3021 = vmatprep.subr.mxu0 0.0
      %3022 = vmatpush1.msra.mxu0 0.0
      %3023 = vmatprep.subr.mxu0 0.0
      %3024 = vmatpush1.msra.mxu0 0.0
      %3025 = vmatprep.subr.mxu0 0.0
      %3026 = vmatpush1.msra.mxu0 0.0
      %3027 = vmatprep.subr.mxu0 0.0
      %3028 = vmatpush1.msra.mxu0 0.0
      %3029 = vmatprep.subr.mxu0 0.0
      %3030 = vmatpush1.msra.mxu0 0.0
      %3031 = vmatprep.subr.mxu0 0.0
      %3032 = vmatpush1.msra.mxu0 0.0
      %3033 = vmatprep.subr.mxu0 0.0
      %3034 = vmatpush1.msra.mxu0 0.0
      %3035 = vmatprep.subr.mxu0 0.0
      %3036 = vmatpush1.msra.mxu0 0.0
      %3037 = vmatprep.subr.mxu0 0.0
      %3038 = vmatpush1.msra.mxu0 0.0
      %3039 = vmatprep.subr.mxu0 0.0
      %3040 = vmatpush1.msra.mxu0 0.0
      %3041 = vmatprep.subr.mxu0 0.0
      %3042 = vmatpush1.msra.mxu0 0.0
      %3043 = vmatprep.subr.mxu0 0.0
      %3044 = vmatpush1.msra.mxu0 0.0
      %3045 = vmatprep.subr.mxu0 0.0
      %3046 = vmatpush1.msra.mxu0 0.0
      %3047 = vmatprep.subr.mxu0 0.0
      %3048 = vmatpush1.msra.mxu0 0.0
      %3049 = vmatprep.mubr.f32.mxu0 0.0
      %3050 = vmatmul.mubr.f32.gmra.mrb[0].mxu0 %v2887
      %v3051 = vpop.f32.mrb[0].mxu0
      %v3052 = vadd.f32 0.0, %v3051
      %v3053 = vpop.f32.mrb[0].mxu0
      %3054 = vmatprep.mubr.f32.mxu0 0.0
      %3055 = vmatmul.mubr.f32.gmra.mrb[0].mxu0 %v2890
      %v3056 = vpop.f32.mrb[0].mxu0
      %v3057 = vadd.f32 0.0, %v3056
      %v3058 = vpop.f32.mrb[0].mxu0
      %3059 = vmatprep.mubr.f32.mxu0 0.0
      %3060 = vmatmul.mubr.f32.gmra.mrb[0].mxu0 %v2893
      %v3061 = vpop.f32.mrb[0].mxu0
      %v3062 = vadd.f32 0.0, %v3061
      %v3063 = vpop.f32.mrb[0].mxu0
      %3064 = vmatprep.mubr.f32.mxu0 0.0
      %3065 = vmatmul.mubr.f32.gmra.mrb[0].mxu0 %v2896
      %v3066 = vpop.f32.mrb[0].mxu0
      %v3067 = vadd.f32 0.0, %v3066
      %v3068 = vpop.f32.mrb[0].mxu0
      %3069 = vmatprep.mubr.f32.mxu0 0.0
      %3070 = vmatmul.mubr.f32.gmra.mrb[0].mxu0 %v2899
      %v3071 = vpop.f32.mrb[0].mxu0
      %v3072 = vadd.f32 0.0, %v3071
      %v3073 = vpop.f32.mrb[0].mxu0
      %3074 = vmatprep.mubr.f32.mxu0 0.0
      %3075 = vmatmul.mubr.f32.gmra.mrb[0].mxu0 %v2902
      %v3076 = vpop.f32.mrb[0].mxu0
      %v3077 = vadd.f32 0.0, %v3076
      %v3078 = vpop.f32.mrb[0].mxu0
      %3079 = vmatprep.mubr.f32.mxu0 0.0
      %3080 = vmatmul.mubr.f32.gmra.mrb[0].mxu0 %v2905
      %v3081 = vpop.f32.mrb[0].mxu0
      %v3082 = vadd.f32 0.0, %v3081
      %v3083 = vpop.f32.mrb[0].mxu0
      %3084 = vmatprep.mubr.f32.mxu0 0.0
      %3085 = vmatmul.mubr.f32.gmra.mrb[0].mxu0 %v2908
      %v3086 = vpop.f32.mrb[0].mxu0
      %v3087 = vadd.f32 0.0, %v3086
      %v3088 = vpop.f32.mrb[0].mxu0
      %3089 = vmatprep.mubr.f32.mxu0 0.0
      %3090 = vmatmul.mubr.f32.gmra.mrb[0].mxu0 %v2911
      %v3091 = vpop.f32.mrb[0].mxu0
      %v3092 = vadd.f32 0.0, %v3091
      %v3093 = vpop.f32.mrb[0].mxu0
      %3094 = vmatprep.mubr.f32.mxu0 0.0
      %3095 = vmatmul.mubr.f32.gmra.mrb[0].mxu0 %v2914
      %v3096 = vpop.f32.mrb[0].mxu0
      %v3097 = vadd.f32 0.0, %v3096
      %v3098 = vpop.f32.mrb[0].mxu0
      %3099 = vmatprep.mubr.f32.mxu0 0.0
      %3100 = vmatmul.mubr.f32.gmra.mrb[0].mxu0 %v2917
      %v3101 = vpop.f32.mrb[0].mxu0
      %v3102 = vadd.f32 0.0, %v3101
      %v3103 = vpop.f32.mrb[0].mxu0
      %3104 = vmatprep.mubr.f32.mxu0 0.0
      %3105 = vmatmul.mubr.f32.gmra.mrb[0].mxu0 %v2920
      %v3106 = vpop.f32.mrb[0].mxu0
      %v3107 = vadd.f32 0.0, %v3106
      %v3108 = vpop.f32.mrb[0].mxu0
      %3109 = vmatprep.mubr.f32.mxu0 0.0
      %3110 = vmatmul.mubr.f32.gmra.mrb[0].mxu0 %v2923
      %v3111 = vpop.f32.mrb[0].mxu0
      %v3112 = vadd.f32 0.0, %v3111
      %v3113 = vpop.f32.mrb[0].mxu0
      %3114 = vmatprep.mubr.f32.mxu0 0.0
      %3115 = vmatmul.mubr.f32.gmra.mrb[0].mxu0 %v2926
      %v3116 = vpop.f32.mrb[0].mxu0
      %v3117 = vadd.f32 0.0, %v3116
      %v3118 = vpop.f32.mrb[0].mxu0
      %3119 = vmatprep.mubr.f32.mxu0 0.0
      %3120 = vmatmul.mubr.f32.gmra.mrb[0].mxu0 %v2929
      %v3121 = vpop.f32.mrb[0].mxu0
      %v3122 = vadd.f32 0.0, %v3121
      %v3123 = vpop.f32.mrb[0].mxu0
      %3124 = vmatprep.mubr.f32.mxu0 0.0
      %3125 = vmatmul.mubr.f32.gmra.mrb[0].mxu0 %v2932
      %v3126 = vpop.f32.mrb[0].mxu0
      %v3127 = vadd.f32 0.0, %v3126
      %v3128 = vpop.f32.mrb[0].mxu0
      %3129 = vmatprep.mubr.f32.mxu0 0.0
      %3130 = vmatmul.mubr.f32.gmra.mrb[0].mxu0 %v2935
      %v3131 = vpop.f32.mrb[0].mxu0
      %v3132 = vadd.f32 0.0, %v3131
      %v3133 = vpop.f32.mrb[0].mxu0
      %3134 = vmatprep.mubr.f32.mxu0 0.0
      %3135 = vmatmul.mubr.f32.gmra.mrb[0].mxu0 %v2938
      %v3136 = vpop.f32.mrb[0].mxu0
      %v3137 = vadd.f32 0.0, %v3136
      %v3138 = vpop.f32.mrb[0].mxu0
      %3139 = vmatprep.mubr.f32.mxu0 0.0
      %3140 = vmatmul.mubr.f32.gmra.mrb[0].mxu0 %v2941
      %v3141 = vpop.f32.mrb[0].mxu0
      %v3142 = vadd.f32 0.0, %v3141
      %v3143 = vpop.f32.mrb[0].mxu0
      %3144 = vmatprep.mubr.f32.mxu0 0.0
      %3145 = vmatmul.mubr.f32.gmra.mrb[0].mxu0 %v2944
      %v3146 = vpop.f32.mrb[0].mxu0
      %v3147 = vadd.f32 0.0, %v3146
      %v3148 = vpop.f32.mrb[0].mxu0
      %3149 = vmatprep.mubr.f32.mxu0 0.0
      %3150 = vmatmul.mubr.f32.gmra.mrb[0].mxu0 %v2947
      %v3151 = vpop.f32.mrb[0].mxu0
      %v3152 = vadd.f32 0.0, %v3151
      %v3153 = vpop.f32.mrb[0].mxu0
      %3154 = vmatprep.mubr.f32.mxu0 0.0
      %3155 = vmatmul.mubr.f32.gmra.mrb[0].mxu0 %v2950
      %v3156 = vpop.f32.mrb[0].mxu0
      %v3157 = vadd.f32 0.0, %v3156
      %v3158 = vpop.f32.mrb[0].mxu0
      %3159 = vmatprep.mubr.f32.mxu0 0.0
      %3160 = vmatmul.mubr.f32.gmra.mrb[0].mxu0 %v2953
      %v3161 = vpop.f32.mrb[0].mxu0
      %v3162 = vadd.f32 0.0, %v3161
      %v3163 = vpop.f32.mrb[0].mxu0
      %3164 = vmatprep.mubr.f32.mxu0 0.0
      %3165 = vmatmul.mubr.f32.gmra.mrb[0].mxu0 %v2956
      %v3166 = vpop.f32.mrb[0].mxu0
      %v3167 = vadd.f32 0.0, %v3166
      %v3168 = vpop.f32.mrb[0].mxu0
      %3169 = vmatprep.mubr.f32.mxu0 0.0
      %3170 = vmatmul.mubr.f32.gmra.mrb[0].mxu0 %v2959
      %v3171 = vpop.f32.mrb[0].mxu0
      %v3172 = vadd.f32 0.0, %v3171
      %v3173 = vpop.f32.mrb[0].mxu0
      %3174 = vmatprep.mubr.f32.mxu0 0.0
      %3175 = vmatmul.mubr.f32.gmra.mrb[0].mxu0 %v2962
      %v3176 = vpop.f32.mrb[0].mxu0
      %v3177 = vadd.f32 0.0, %v3176
      %v3178 = vpop.f32.mrb[0].mxu0
      %3179 = vmatprep.mubr.f32.mxu0 0.0
      %3180 = vmatmul.mubr.f32.gmra.mrb[0].mxu0 %v2965
      %v3181 = vpop.f32.mrb[0].mxu0
      %v3182 = vadd.f32 0.0, %v3181
      %v3183 = vpop.f32.mrb[0].mxu0
      %3184 = vmatprep.mubr.f32.mxu0 0.0
      %3185 = vmatmul.mubr.f32.gmra.mrb[0].mxu0 %v2968
      %v3186 = vpop.f32.mrb[0].mxu0
      %v3187 = vadd.f32 0.0, %v3186
      %v3188 = vpop.f32.mrb[0].mxu0
      %3189 = vmatprep.mubr.f32.mxu0 0.0
      %3190 = vmatmul.mubr.f32.gmra.mrb[0].mxu0 %v2971
      %v3191 = vpop.f32.mrb[0].mxu0
      %v3192 = vadd.f32 0.0, %v3191
      %v3193 = vpop.f32.mrb[0].mxu0
      %3194 = vmatprep.mubr.f32.mxu0 0.0
      %3195 = vmatmul.mubr.f32.gmra.mrb[0].mxu0 %v2974
      %v3196 = vpop.f32.mrb[0].mxu0
      %v3197 = vadd.f32 0.0, %v3196
      %v3198 = vpop.f32.mrb[0].mxu0
      %3199 = vmatprep.mubr.f32.mxu0 0.0
      %3200 = vmatmul.mubr.f32.gmra.mrb[0].mxu0 %v2977
      %v3201 = vpop.f32.mrb[0].mxu0
      %v3202 = vadd.f32 0.0, %v3201
      %v3203 = vpop.f32.mrb[0].mxu0
      %3204 = vmatprep.mubr.f32.mxu0 0.0
      %3205 = vmatmul.mubr.f32.gmra.mrb[0].mxu0 %v2980
      %v3206 = vpop.f32.mrb[0].mxu0
      %v3207 = vadd.f32 0.0, %v3206
      %v3208 = vpop.f32.mrb[0].mxu0
      %3209 = vdwg.mxu0
      %v3210 = vadd.f32 %v2820, %v3052
      %v3211 = vadd.f32 %v2821, %v3057
      %v3212 = vadd.f32 %v2822, %v3062
      %v3213 = vadd.f32 %v2823, %v3067
      %v3214 = vadd.f32 %v2824, %v3072
      %v3215 = vadd.f32 %v2825, %v3077
      %v3216 = vadd.f32 %v2826, %v3082
      %v3217 = vadd.f32 %v2827, %v3087
      %v3218 = vadd.f32 %v2828, %v3092
      %v3219 = vadd.f32 %v2829, %v3097
      %v3220 = vadd.f32 %v2830, %v3102
      %v3221 = vadd.f32 %v2831, %v3107
      %v3222 = vadd.f32 %v2832, %v3112
      %v3223 = vadd.f32 %v2833, %v3117
      %v3224 = vadd.f32 %v2834, %v3122
      %v3225 = vadd.f32 %v2835, %v3127
      %v3226 = vadd.f32 %v2836, %v3132
      %v3227 = vadd.f32 %v2837, %v3137
      %v3228 = vadd.f32 %v2838, %v3142
      %v3229 = vadd.f32 %v2839, %v3147
      %v3230 = vadd.f32 %v2840, %v3152
      %v3231 = vadd.f32 %v2841, %v3157
      %v3232 = vadd.f32 %v2842, %v3162
      %v3233 = vadd.f32 %v2843, %v3167
      %v3234 = vadd.f32 %v2844, %v3172
      %v3235 = vadd.f32 %v2845, %v3177
      %v3236 = vadd.f32 %v2846, %v3182
      %v3237 = vadd.f32 %v2847, %v3187
      %v3238 = vadd.f32 %v2848, %v3192
      %v3239 = vadd.f32 %v2849, %v3197
      %v3240 = vadd.f32 %v2850, %v3202
      %v3241 = vadd.f32 %v2851, %v3207
      %v3242 = vld [vmem:[%s2461 + $0x2] sm:$0xff]
      %v3243 = vld [vmem:[%s2461 + $0xa] sm:$0xff]
      %v3244 = vld [vmem:[%s2461 + $0x1a] sm:$0xff]
      %v3245 = vld [vmem:[%s2461 + $0x22] sm:$0xff]
      %v3246 = vld [vmem:[%s2461 + $0x32] sm:$0xff]
      %v3247 = vld [vmem:[%s2461 + $0x3a] sm:$0xff]
      %v3248 = vld [vmem:[%s2461 + $0x4a] sm:$0xff]
      %v3249 = vld [vmem:[%s2461 + $0x52] sm:$0xff]
      %v3250 = vld [vmem:[%s2461 + $0x62] sm:$0xff]
      %v3251 = vld [vmem:[%s2461 + $0x6a] sm:$0xff]
      %v3252 = vld [vmem:[%s2461 + $0x7a] sm:$0xff]
      %v3253 = vld [vmem:[%s2461 + $0x82] sm:$0xff]
      %v3254 = vld [vmem:[%s2461 + $0x92] sm:$0xff]
      %v3255 = vld [vmem:[%s2461 + $0x9a] sm:$0xff]
      %v3256 = vld [vmem:[%s2461 + $0xaa] sm:$0xff]
      %v3257 = vld [vmem:[%s2461 + $0xb2] sm:$0xff]
      %v3258 = vld [vmem:[%s2461 + $0xc2] sm:$0xff]
      %v3259 = vld [vmem:[%s2461 + $0xca] sm:$0xff]
      %v3260 = vld [vmem:[%s2461 + $0xda] sm:$0xff]
      %v3261 = vld [vmem:[%s2461 + $0xe2] sm:$0xff]
      %v3262 = vld [vmem:[%s2461 + $0xf2] sm:$0xff]
      %v3263 = vld [vmem:[%s2461 + $0xfa] sm:$0xff]
      %v3264 = vld [vmem:[%s2461 + $0x10a] sm:$0xff]
      %v3265 = vld [vmem:[%s2461 + $0x112] sm:$0xff]
      %v3266 = vld [vmem:[%s2461 + $0x122] sm:$0xff]
      %v3267 = vld [vmem:[%s2461 + $0x12a] sm:$0xff]
      %v3268 = vld [vmem:[%s2461 + $0x13a] sm:$0xff]
      %v3269 = vld [vmem:[%s2461 + $0x142] sm:$0xff]
      %v3270 = vld [vmem:[%s2461 + $0x152] sm:$0xff]
      %v3271 = vld [vmem:[%s2461 + $0x15a] sm:$0xff]
      %v3272 = vld [vmem:[%s2461 + $0x16a] sm:$0xff]
      %v3273 = vld [vmem:[%s2461 + $0x172] sm:$0xff]
      %s3274 = scalar_lea.vmem %s1, 32
      %v3275 = vld [vmem:[%s3274] sm:$0xf]
      %v3277 = vsel %vm250, %v3242, 0
      %v3280 = vsel %vm250, %v3243, 0
      %v3283 = vsel %vm250, %v3244, 0
      %v3286 = vsel %vm250, %v3245, 0
      %v3289 = vsel %vm250, %v3246, 0
      %v3292 = vsel %vm250, %v3247, 0
      %v3295 = vsel %vm250, %v3248, 0
      %v3298 = vsel %vm250, %v3249, 0
      %v3301 = vsel %vm250, %v3250, 0
      %v3304 = vsel %vm250, %v3251, 0
      %v3307 = vsel %vm250, %v3252, 0
      %v3310 = vsel %vm250, %v3253, 0
      %v3313 = vsel %vm250, %v3254, 0
      %v3316 = vsel %vm250, %v3255, 0
      %v3319 = vsel %vm250, %v3256, 0
      %v3322 = vsel %vm250, %v3257, 0
      %v3325 = vsel %vm250, %v3258, 0
      %v3328 = vsel %vm250, %v3259, 0
      %v3331 = vsel %vm250, %v3260, 0
      %v3334 = vsel %vm250, %v3261, 0
      %v3337 = vsel %vm250, %v3262, 0
      %v3340 = vsel %vm250, %v3263, 0
      %v3343 = vsel %vm250, %v3264, 0
      %v3346 = vsel %vm250, %v3265, 0
      %v3349 = vsel %vm250, %v3266, 0
      %v3352 = vsel %vm250, %v3267, 0
      %v3355 = vsel %vm250, %v3268, 0
      %v3358 = vsel %vm250, %v3269, 0
      %v3361 = vsel %vm250, %v3270, 0
      %v3364 = vsel %vm250, %v3271, 0
      %v3367 = vsel %vm250, %v3272, 0
      %v3370 = vsel %vm250, %v3273, 0
      %v3373 = vsel %vm347, %v3275, 0
      %3375 = vmatprep.subr.mxu0 0.0
      %3376 = vmatpush1.msra.mxu0 %v3373
      %3377 = vmatprep.subr.mxu0 0.0
      %3378 = vmatpush1.msra.mxu0 0.0
      %3379 = vmatprep.subr.mxu0 0.0
      %3380 = vmatpush1.msra.mxu0 0.0
      %3381 = vmatprep.subr.mxu0 0.0
      %3382 = vmatpush1.msra.mxu0 0.0
      %3383 = vmatprep.subr.mxu0 0.0
      %3384 = vmatpush1.msra.mxu0 0.0
      %3385 = vmatprep.subr.mxu0 0.0
      %3386 = vmatpush1.msra.mxu0 0.0
      %3387 = vmatprep.subr.mxu0 0.0
      %3388 = vmatpush1.msra.mxu0 0.0
      %3389 = vmatprep.subr.mxu0 0.0
      %3390 = vmatpush1.msra.mxu0 0.0
      %3391 = vmatprep.subr.mxu0 0.0
      %3392 = vmatpush1.msra.mxu0 0.0
      %3393 = vmatprep.subr.mxu0 0.0
      %3394 = vmatpush1.msra.mxu0 0.0
      %3395 = vmatprep.subr.mxu0 0.0
      %3396 = vmatpush1.msra.mxu0 0.0
      %3397 = vmatprep.subr.mxu0 0.0
      %3398 = vmatpush1.msra.mxu0 0.0
      %3399 = vmatprep.subr.mxu0 0.0
      %3400 = vmatpush1.msra.mxu0 0.0
      %3401 = vmatprep.subr.mxu0 0.0
      %3402 = vmatpush1.msra.mxu0 0.0
      %3403 = vmatprep.subr.mxu0 0.0
      %3404 = vmatpush1.msra.mxu0 0.0
      %3405 = vmatprep.subr.mxu0 0.0
      %3406 = vmatpush1.msra.mxu0 0.0
      %3407 = vmatprep.subr.mxu0 0.0
      %3408 = vmatpush1.msra.mxu0 0.0
      %3409 = vmatprep.subr.mxu0 0.0
      %3410 = vmatpush1.msra.mxu0 0.0
      %3411 = vmatprep.subr.mxu0 0.0
      %3412 = vmatpush1.msra.mxu0 0.0
      %3413 = vmatprep.subr.mxu0 0.0
      %3414 = vmatpush1.msra.mxu0 0.0
      %3415 = vmatprep.subr.mxu0 0.0
      %3416 = vmatpush1.msra.mxu0 0.0
      %3417 = vmatprep.subr.mxu0 0.0
      %3418 = vmatpush1.msra.mxu0 0.0
      %3419 = vmatprep.subr.mxu0 0.0
      %3420 = vmatpush1.msra.mxu0 0.0
      %3421 = vmatprep.subr.mxu0 0.0
      %3422 = vmatpush1.msra.mxu0 0.0
      %3423 = vmatprep.subr.mxu0 0.0
      %3424 = vmatpush1.msra.mxu0 0.0
      %3425 = vmatprep.subr.mxu0 0.0
      %3426 = vmatpush1.msra.mxu0 0.0
      %3427 = vmatprep.subr.mxu0 0.0
      %3428 = vmatpush1.msra.mxu0 0.0
      %3429 = vmatprep.subr.mxu0 0.0
      %3430 = vmatpush1.msra.mxu0 0.0
      %3431 = vmatprep.subr.mxu0 0.0
      %3432 = vmatpush1.msra.mxu0 0.0
      %3433 = vmatprep.subr.mxu0 0.0
      %3434 = vmatpush1.msra.mxu0 0.0
      %3435 = vmatprep.subr.mxu0 0.0
      %3436 = vmatpush1.msra.mxu0 0.0
      %3437 = vmatprep.subr.mxu0 0.0
      %3438 = vmatpush1.msra.mxu0 0.0
      %3439 = vmatprep.mubr.f32.mxu0 0.0
      %3440 = vmatmul.mubr.f32.gmra.mrb[0].mxu0 %v3277
      %v3441 = vpop.f32.mrb[0].mxu0
      %v3442 = vadd.f32 0.0, %v3441
      %v3443 = vpop.f32.mrb[0].mxu0
      %3444 = vmatprep.mubr.f32.mxu0 0.0
      %3445 = vmatmul.mubr.f32.gmra.mrb[0].mxu0 %v3280
      %v3446 = vpop.f32.mrb[0].mxu0
      %v3447 = vadd.f32 0.0, %v3446
      %v3448 = vpop.f32.mrb[0].mxu0
      %3449 = vmatprep.mubr.f32.mxu0 0.0
      %3450 = vmatmul.mubr.f32.gmra.mrb[0].mxu0 %v3283
      %v3451 = vpop.f32.mrb[0].mxu0
      %v3452 = vadd.f32 0.0, %v3451
      %v3453 = vpop.f32.mrb[0].mxu0
      %3454 = vmatprep.mubr.f32.mxu0 0.0
      %3455 = vmatmul.mubr.f32.gmra.mrb[0].mxu0 %v3286
      %v3456 = vpop.f32.mrb[0].mxu0
      %v3457 = vadd.f32 0.0, %v3456
      %v3458 = vpop.f32.mrb[0].mxu0
      %3459 = vmatprep.mubr.f32.mxu0 0.0
      %3460 = vmatmul.mubr.f32.gmra.mrb[0].mxu0 %v3289
      %v3461 = vpop.f32.mrb[0].mxu0
      %v3462 = vadd.f32 0.0, %v3461
      %v3463 = vpop.f32.mrb[0].mxu0
      %3464 = vmatprep.mubr.f32.mxu0 0.0
      %3465 = vmatmul.mubr.f32.gmra.mrb[0].mxu0 %v3292
      %v3466 = vpop.f32.mrb[0].mxu0
      %v3467 = vadd.f32 0.0, %v3466
      %v3468 = vpop.f32.mrb[0].mxu0
      %3469 = vmatprep.mubr.f32.mxu0 0.0
      %3470 = vmatmul.mubr.f32.gmra.mrb[0].mxu0 %v3295
      %v3471 = vpop.f32.mrb[0].mxu0
      %v3472 = vadd.f32 0.0, %v3471
      %v3473 = vpop.f32.mrb[0].mxu0
      %3474 = vmatprep.mubr.f32.mxu0 0.0
      %3475 = vmatmul.mubr.f32.gmra.mrb[0].mxu0 %v3298
      %v3476 = vpop.f32.mrb[0].mxu0
      %v3477 = vadd.f32 0.0, %v3476
      %v3478 = vpop.f32.mrb[0].mxu0
      %3479 = vmatprep.mubr.f32.mxu0 0.0
      %3480 = vmatmul.mubr.f32.gmra.mrb[0].mxu0 %v3301
      %v3481 = vpop.f32.mrb[0].mxu0
      %v3482 = vadd.f32 0.0, %v3481
      %v3483 = vpop.f32.mrb[0].mxu0
      %3484 = vmatprep.mubr.f32.mxu0 0.0
      %3485 = vmatmul.mubr.f32.gmra.mrb[0].mxu0 %v3304
      %v3486 = vpop.f32.mrb[0].mxu0
      %v3487 = vadd.f32 0.0, %v3486
      %v3488 = vpop.f32.mrb[0].mxu0
      %3489 = vmatprep.mubr.f32.mxu0 0.0
      %3490 = vmatmul.mubr.f32.gmra.mrb[0].mxu0 %v3307
      %v3491 = vpop.f32.mrb[0].mxu0
      %v3492 = vadd.f32 0.0, %v3491
      %v3493 = vpop.f32.mrb[0].mxu0
      %3494 = vmatprep.mubr.f32.mxu0 0.0
      %3495 = vmatmul.mubr.f32.gmra.mrb[0].mxu0 %v3310
      %v3496 = vpop.f32.mrb[0].mxu0
      %v3497 = vadd.f32 0.0, %v3496
      %v3498 = vpop.f32.mrb[0].mxu0
      %3499 = vmatprep.mubr.f32.mxu0 0.0
      %3500 = vmatmul.mubr.f32.gmra.mrb[0].mxu0 %v3313
      %v3501 = vpop.f32.mrb[0].mxu0
      %v3502 = vadd.f32 0.0, %v3501
      %v3503 = vpop.f32.mrb[0].mxu0
      %3504 = vmatprep.mubr.f32.mxu0 0.0
      %3505 = vmatmul.mubr.f32.gmra.mrb[0].mxu0 %v3316
      %v3506 = vpop.f32.mrb[0].mxu0
      %v3507 = vadd.f32 0.0, %v3506
      %v3508 = vpop.f32.mrb[0].mxu0
      %3509 = vmatprep.mubr.f32.mxu0 0.0
      %3510 = vmatmul.mubr.f32.gmra.mrb[0].mxu0 %v3319
      %v3511 = vpop.f32.mrb[0].mxu0
      %v3512 = vadd.f32 0.0, %v3511
      %v3513 = vpop.f32.mrb[0].mxu0
      %3514 = vmatprep.mubr.f32.mxu0 0.0
      %3515 = vmatmul.mubr.f32.gmra.mrb[0].mxu0 %v3322
      %v3516 = vpop.f32.mrb[0].mxu0
      %v3517 = vadd.f32 0.0, %v3516
      %v3518 = vpop.f32.mrb[0].mxu0
      %3519 = vmatprep.mubr.f32.mxu0 0.0
      %3520 = vmatmul.mubr.f32.gmra.mrb[0].mxu0 %v3325
      %v3521 = vpop.f32.mrb[0].mxu0
      %v3522 = vadd.f32 0.0, %v3521
      %v3523 = vpop.f32.mrb[0].mxu0
      %3524 = vmatprep.mubr.f32.mxu0 0.0
      %3525 = vmatmul.mubr.f32.gmra.mrb[0].mxu0 %v3328
      %v3526 = vpop.f32.mrb[0].mxu0
      %v3527 = vadd.f32 0.0, %v3526
      %v3528 = vpop.f32.mrb[0].mxu0
      %3529 = vmatprep.mubr.f32.mxu0 0.0
      %3530 = vmatmul.mubr.f32.gmra.mrb[0].mxu0 %v3331
      %v3531 = vpop.f32.mrb[0].mxu0
      %v3532 = vadd.f32 0.0, %v3531
      %v3533 = vpop.f32.mrb[0].mxu0
      %3534 = vmatprep.mubr.f32.mxu0 0.0
      %3535 = vmatmul.mubr.f32.gmra.mrb[0].mxu0 %v3334
      %v3536 = vpop.f32.mrb[0].mxu0
      %v3537 = vadd.f32 0.0, %v3536
      %v3538 = vpop.f32.mrb[0].mxu0
      %3539 = vmatprep.mubr.f32.mxu0 0.0
      %3540 = vmatmul.mubr.f32.gmra.mrb[0].mxu0 %v3337
      %v3541 = vpop.f32.mrb[0].mxu0
      %v3542 = vadd.f32 0.0, %v3541
      %v3543 = vpop.f32.mrb[0].mxu0
      %3544 = vmatprep.mubr.f32.mxu0 0.0
      %3545 = vmatmul.mubr.f32.gmra.mrb[0].mxu0 %v3340
      %v3546 = vpop.f32.mrb[0].mxu0
      %v3547 = vadd.f32 0.0, %v3546
      %v3548 = vpop.f32.mrb[0].mxu0
      %3549 = vmatprep.mubr.f32.mxu0 0.0
      %3550 = vmatmul.mubr.f32.gmra.mrb[0].mxu0 %v3343
      %v3551 = vpop.f32.mrb[0].mxu0
      %v3552 = vadd.f32 0.0, %v3551
      %v3553 = vpop.f32.mrb[0].mxu0
      %3554 = vmatprep.mubr.f32.mxu0 0.0
      %3555 = vmatmul.mubr.f32.gmra.mrb[0].mxu0 %v3346
      %v3556 = vpop.f32.mrb[0].mxu0
      %v3557 = vadd.f32 0.0, %v3556
      %v3558 = vpop.f32.mrb[0].mxu0
      %3559 = vmatprep.mubr.f32.mxu0 0.0
      %3560 = vmatmul.mubr.f32.gmra.mrb[0].mxu0 %v3349
      %v3561 = vpop.f32.mrb[0].mxu0
      %v3562 = vadd.f32 0.0, %v3561
      %v3563 = vpop.f32.mrb[0].mxu0
      %3564 = vmatprep.mubr.f32.mxu0 0.0
      %3565 = vmatmul.mubr.f32.gmra.mrb[0].mxu0 %v3352
      %v3566 = vpop.f32.mrb[0].mxu0
      %v3567 = vadd.f32 0.0, %v3566
      %v3568 = vpop.f32.mrb[0].mxu0
      %3569 = vmatprep.mubr.f32.mxu0 0.0
      %3570 = vmatmul.mubr.f32.gmra.mrb[0].mxu0 %v3355
      %v3571 = vpop.f32.mrb[0].mxu0
      %v3572 = vadd.f32 0.0, %v3571
      %v3573 = vpop.f32.mrb[0].mxu0
      %3574 = vmatprep.mubr.f32.mxu0 0.0
      %3575 = vmatmul.mubr.f32.gmra.mrb[0].mxu0 %v3358
      %v3576 = vpop.f32.mrb[0].mxu0
      %v3577 = vadd.f32 0.0, %v3576
      %v3578 = vpop.f32.mrb[0].mxu0
      %3579 = vmatprep.mubr.f32.mxu0 0.0
      %3580 = vmatmul.mubr.f32.gmra.mrb[0].mxu0 %v3361
      %v3581 = vpop.f32.mrb[0].mxu0
      %v3582 = vadd.f32 0.0, %v3581
      %v3583 = vpop.f32.mrb[0].mxu0
      %3584 = vmatprep.mubr.f32.mxu0 0.0
      %3585 = vmatmul.mubr.f32.gmra.mrb[0].mxu0 %v3364
      %v3586 = vpop.f32.mrb[0].mxu0
      %v3587 = vadd.f32 0.0, %v3586
      %v3588 = vpop.f32.mrb[0].mxu0
      %3589 = vmatprep.mubr.f32.mxu0 0.0
      %3590 = vmatmul.mubr.f32.gmra.mrb[0].mxu0 %v3367
      %v3591 = vpop.f32.mrb[0].mxu0
      %v3592 = vadd.f32 0.0, %v3591
      %v3593 = vpop.f32.mrb[0].mxu0
      %3594 = vmatprep.mubr.f32.mxu0 0.0
      %3595 = vmatmul.mubr.f32.gmra.mrb[0].mxu0 %v3370
      %v3596 = vpop.f32.mrb[0].mxu0
      %v3597 = vadd.f32 0.0, %v3596
      %v3598 = vpop.f32.mrb[0].mxu0
      %3599 = vdwg.mxu0
      %v3600 = vadd.f32 %v3210, %v3442
      %v3601 = vadd.f32 %v3211, %v3447
      %v3602 = vadd.f32 %v3212, %v3452
      %v3603 = vadd.f32 %v3213, %v3457
      %v3604 = vadd.f32 %v3214, %v3462
      %v3605 = vadd.f32 %v3215, %v3467
      %v3606 = vadd.f32 %v3216, %v3472
      %v3607 = vadd.f32 %v3217, %v3477
      %v3608 = vadd.f32 %v3218, %v3482
      %v3609 = vadd.f32 %v3219, %v3487
      %v3610 = vadd.f32 %v3220, %v3492
      %v3611 = vadd.f32 %v3221, %v3497
      %v3612 = vadd.f32 %v3222, %v3502
      %v3613 = vadd.f32 %v3223, %v3507
      %v3614 = vadd.f32 %v3224, %v3512
      %v3615 = vadd.f32 %v3225, %v3517
      %v3616 = vadd.f32 %v3226, %v3522
      %v3617 = vadd.f32 %v3227, %v3527
      %v3618 = vadd.f32 %v3228, %v3532
      %v3619 = vadd.f32 %v3229, %v3537
      %v3620 = vadd.f32 %v3230, %v3542
      %v3621 = vadd.f32 %v3231, %v3547
      %v3622 = vadd.f32 %v3232, %v3552
      %v3623 = vadd.f32 %v3233, %v3557
      %v3624 = vadd.f32 %v3234, %v3562
      %v3625 = vadd.f32 %v3235, %v3567
      %v3626 = vadd.f32 %v3236, %v3572
      %v3627 = vadd.f32 %v3237, %v3577
      %v3628 = vadd.f32 %v3238, %v3582
      %v3629 = vadd.f32 %v3239, %v3587
      %v3630 = vadd.f32 %v3240, %v3592
      %v3631 = vadd.f32 %v3241, %v3597
      %vm3632 = vcmask 64512
      %v3633 = vsel %vm3632, %v3600, 0.0
      %v3634 = vsel %vm3632, %v3601, 0.0
      %v3635 = vadd.f32 %v3633, %v3634
      %v3636 = vsel %vm3632, %v3602, 0.0
      %v3637 = vadd.f32 %v3635, %v3636
      %v3638 = vsel %vm3632, %v3603, 0.0
      %v3639 = vadd.f32 %v3637, %v3638
      %v3640 = vsel %vm3632, %v3604, 0.0
      %v3641 = vadd.f32 %v3639, %v3640
      %v3642 = vsel %vm3632, %v3605, 0.0
      %v3643 = vadd.f32 %v3641, %v3642
      %v3644 = vsel %vm3632, %v3606, 0.0
      %v3645 = vadd.f32 %v3643, %v3644
      %v3646 = vsel %vm3632, %v3607, 0.0
      %v3647 = vadd.f32 %v3645, %v3646
      %v3648 = vsel %vm3632, %v3608, 0.0
      %v3649 = vadd.f32 %v3647, %v3648
      %v3650 = vsel %vm3632, %v3609, 0.0
      %v3651 = vadd.f32 %v3649, %v3650
      %v3652 = vsel %vm3632, %v3610, 0.0
      %v3653 = vadd.f32 %v3651, %v3652
      %v3654 = vsel %vm3632, %v3611, 0.0
      %v3655 = vadd.f32 %v3653, %v3654
      %v3656 = vsel %vm3632, %v3612, 0.0
      %v3657 = vadd.f32 %v3655, %v3656
      %v3658 = vsel %vm3632, %v3613, 0.0
      %v3659 = vadd.f32 %v3657, %v3658
      %v3660 = vsel %vm3632, %v3614, 0.0
      %v3661 = vadd.f32 %v3659, %v3660
      %v3662 = vsel %vm3632, %v3615, 0.0
      %v3663 = vadd.f32 %v3661, %v3662
      %v3664 = vsel %vm3632, %v3616, 0.0
      %v3665 = vadd.f32 %v3663, %v3664
      %v3666 = vsel %vm3632, %v3617, 0.0
      %v3667 = vadd.f32 %v3665, %v3666
      %v3668 = vsel %vm3632, %v3618, 0.0
      %v3669 = vadd.f32 %v3667, %v3668
      %v3670 = vsel %vm3632, %v3619, 0.0
      %v3671 = vadd.f32 %v3669, %v3670
      %v3672 = vsel %vm3632, %v3620, 0.0
      %v3673 = vadd.f32 %v3671, %v3672
      %v3674 = vsel %vm3632, %v3621, 0.0
      %v3675 = vadd.f32 %v3673, %v3674
      %v3676 = vsel %vm3632, %v3622, 0.0
      %v3677 = vadd.f32 %v3675, %v3676
      %v3678 = vsel %vm3632, %v3623, 0.0
      %v3679 = vadd.f32 %v3677, %v3678
      %v3680 = vsel %vm3632, %v3624, 0.0
      %v3681 = vadd.f32 %v3679, %v3680
      %v3682 = vsel %vm3632, %v3625, 0.0
      %v3683 = vadd.f32 %v3681, %v3682
      %v3684 = vsel %vm3632, %v3626, 0.0
      %v3685 = vadd.f32 %v3683, %v3684
      %v3686 = vsel %vm3632, %v3627, 0.0
      %v3687 = vadd.f32 %v3685, %v3686
      %v3688 = vsel %vm3632, %v3628, 0.0
      %v3689 = vadd.f32 %v3687, %v3688
      %v3690 = vsel %vm3632, %v3629, 0.0
      %v3691 = vadd.f32 %v3689, %v3690
      %v3692 = vsel %vm3632, %v3630, 0.0
      %v3693 = vadd.f32 %v3691, %v3692
      %v3694 = vsel %vm3632, %v3631, 0.0
      %v3695 = vadd.f32 %v3693, %v3694
      %v3696 = vrot.slane %v3695, 4
      %v3697 = vadd.f32 %v3695, %v3696
      %v3698 = vrot.slane %v3697, 2
      %v3699 = vadd.f32 %v3697, %v3698
      %v3700 = vrot.slane %v3699, 1
      %v3701 = vadd.f32 %v3699, %v3700
      %vm3702 = vcmask 57344
      %3703 = vst.msk [vmem:[%s182] sm:$0x1] %vm3702, %v3701
      %v3704 = vmul.f32 %v3600, %v3600
      %v3705 = vmul.f32 %v3601, %v3601
      %v3706 = vmul.f32 %v3602, %v3602
      %v3707 = vmul.f32 %v3603, %v3603
      %v3708 = vmul.f32 %v3604, %v3604
      %v3709 = vmul.f32 %v3605, %v3605
      %v3710 = vmul.f32 %v3606, %v3606
      %v3711 = vmul.f32 %v3607, %v3607
      %v3712 = vmul.f32 %v3608, %v3608
      %v3713 = vmul.f32 %v3609, %v3609
      %v3714 = vmul.f32 %v3610, %v3610
      %v3715 = vmul.f32 %v3611, %v3611
      %v3716 = vmul.f32 %v3612, %v3612
      %v3717 = vmul.f32 %v3613, %v3613
      %v3718 = vmul.f32 %v3614, %v3614
      %v3719 = vmul.f32 %v3615, %v3615
      %v3720 = vmul.f32 %v3616, %v3616
      %v3721 = vmul.f32 %v3617, %v3617
      %v3722 = vmul.f32 %v3618, %v3618
      %v3723 = vmul.f32 %v3619, %v3619
      %v3724 = vmul.f32 %v3620, %v3620
      %v3725 = vmul.f32 %v3621, %v3621
      %v3726 = vmul.f32 %v3622, %v3622
      %v3727 = vmul.f32 %v3623, %v3623
      %v3728 = vmul.f32 %v3624, %v3624
      %v3729 = vmul.f32 %v3625, %v3625
      %v3730 = vmul.f32 %v3626, %v3626
      %v3731 = vmul.f32 %v3627, %v3627
      %v3732 = vmul.f32 %v3628, %v3628
      %v3733 = vmul.f32 %v3629, %v3629
      %v3734 = vmul.f32 %v3630, %v3630
      %v3735 = vmul.f32 %v3631, %v3631
      %v3736 = vsel %vm3632, %v3704, 0.0
      %v3737 = vsel %vm3632, %v3705, 0.0
      %v3738 = vadd.f32 %v3736, %v3737
      %v3739 = vsel %vm3632, %v3706, 0.0
      %v3740 = vadd.f32 %v3738, %v3739
      %v3741 = vsel %vm3632, %v3707, 0.0
      %v3742 = vadd.f32 %v3740, %v3741
      %v3743 = vsel %vm3632, %v3708, 0.0
      %v3744 = vadd.f32 %v3742, %v3743
      %v3745 = vsel %vm3632, %v3709, 0.0
      %v3746 = vadd.f32 %v3744, %v3745
      %v3747 = vsel %vm3632, %v3710, 0.0
      %v3748 = vadd.f32 %v3746, %v3747
      %v3749 = vsel %vm3632, %v3711, 0.0
      %v3750 = vadd.f32 %v3748, %v3749
      %v3751 = vsel %vm3632, %v3712, 0.0
      %v3752 = vadd.f32 %v3750, %v3751
      %v3753 = vsel %vm3632, %v3713, 0.0
      %v3754 = vadd.f32 %v3752, %v3753
      %v3755 = vsel %vm3632, %v3714, 0.0
      %v3756 = vadd.f32 %v3754, %v3755
      %v3757 = vsel %vm3632, %v3715, 0.0
      %v3758 = vadd.f32 %v3756, %v3757
      %v3759 = vsel %vm3632, %v3716, 0.0
      %v3760 = vadd.f32 %v3758, %v3759
      %v3761 = vsel %vm3632, %v3717, 0.0
      %v3762 = vadd.f32 %v3760, %v3761
      %v3763 = vsel %vm3632, %v3718, 0.0
      %v3764 = vadd.f32 %v3762, %v3763
      %v3765 = vsel %vm3632, %v3719, 0.0
      %v3766 = vadd.f32 %v3764, %v3765
      %v3767 = vsel %vm3632, %v3720, 0.0
      %v3768 = vadd.f32 %v3766, %v3767
      %v3769 = vsel %vm3632, %v3721, 0.0
      %v3770 = vadd.f32 %v3768, %v3769
      %v3771 = vsel %vm3632, %v3722, 0.0
      %v3772 = vadd.f32 %v3770, %v3771
      %v3773 = vsel %vm3632, %v3723, 0.0
      %v3774 = vadd.f32 %v3772, %v3773
      %v3775 = vsel %vm3632, %v3724, 0.0
      %v3776 = vadd.f32 %v3774, %v3775
      %v3777 = vsel %vm3632, %v3725, 0.0
      %v3778 = vadd.f32 %v3776, %v3777
      %v3779 = vsel %vm3632, %v3726, 0.0
      %v3780 = vadd.f32 %v3778, %v3779
      %v3781 = vsel %vm3632, %v3727, 0.0
      %v3782 = vadd.f32 %v3780, %v3781
      %v3783 = vsel %vm3632, %v3728, 0.0
      %v3784 = vadd.f32 %v3782, %v3783
      %v3785 = vsel %vm3632, %v3729, 0.0
      %v3786 = vadd.f32 %v3784, %v3785
      %v3787 = vsel %vm3632, %v3730, 0.0
      %v3788 = vadd.f32 %v3786, %v3787
      %v3789 = vsel %vm3632, %v3731, 0.0
      %v3790 = vadd.f32 %v3788, %v3789
      %v3791 = vsel %vm3632, %v3732, 0.0
      %v3792 = vadd.f32 %v3790, %v3791
      %v3793 = vsel %vm3632, %v3733, 0.0
      %v3794 = vadd.f32 %v3792, %v3793
      %v3795 = vsel %vm3632, %v3734, 0.0
      %v3796 = vadd.f32 %v3794, %v3795
      %v3797 = vsel %vm3632, %v3735, 0.0
      %v3798 = vadd.f32 %v3796, %v3797
      %v3799 = vrot.slane %v3798, 4
      %v3800 = vadd.f32 %v3798, %v3799
      %v3801 = vrot.slane %v3800, 2
      %v3802 = vadd.f32 %v3800, %v3801
      %v3803 = vrot.slane %v3802, 1
      %v3804 = vadd.f32 %v3802, %v3803
      %3805 = vst.msk [vmem:[%s182 + $0x1] sm:$0x1] %vm3702, %v3804
      %3806 = vst.msk [vmem:[%s177] sm:$0xff] %vm3632, %v3600
      %3807 = vst.msk [vmem:[%s177 + $0x8] sm:$0xff] %vm3632, %v3601
      %3808 = vst.msk [vmem:[%s177 + $0x10] sm:$0xff] %vm3632, %v3602
      %3809 = vst.msk [vmem:[%s177 + $0x18] sm:$0xff] %vm3632, %v3603
      %3810 = vst.msk [vmem:[%s177 + $0x20] sm:$0xff] %vm3632, %v3604
      %3811 = vst.msk [vmem:[%s177 + $0x28] sm:$0xff] %vm3632, %v3605
      %3812 = vst.msk [vmem:[%s177 + $0x30] sm:$0xff] %vm3632, %v3606
      %3813 = vst.msk [vmem:[%s177 + $0x38] sm:$0xff] %vm3632, %v3607
      %3814 = vst.msk [vmem:[%s177 + $0x40] sm:$0xff] %vm3632, %v3608
      %3815 = vst.msk [vmem:[%s177 + $0x48] sm:$0xff] %vm3632, %v3609
      %3816 = vst.msk [vmem:[%s177 + $0x50] sm:$0xff] %vm3632, %v3610
      %3817 = vst.msk [vmem:[%s177 + $0x58] sm:$0xff] %vm3632, %v3611
      %3818 = vst.msk [vmem:[%s177 + $0x60] sm:$0xff] %vm3632, %v3612
      %3819 = vst.msk [vmem:[%s177 + $0x68] sm:$0xff] %vm3632, %v3613
      %3820 = vst.msk [vmem:[%s177 + $0x70] sm:$0xff] %vm3632, %v3614
      %3821 = vst.msk [vmem:[%s177 + $0x78] sm:$0xff] %vm3632, %v3615
      %3822 = vst.msk [vmem:[%s177 + $0x80] sm:$0xff] %vm3632, %v3616
      %3823 = vst.msk [vmem:[%s177 + $0x88] sm:$0xff] %vm3632, %v3617
      %3824 = vst.msk [vmem:[%s177 + $0x90] sm:$0xff] %vm3632, %v3618
      %3825 = vst.msk [vmem:[%s177 + $0x98] sm:$0xff] %vm3632, %v3619
      %3826 = vst.msk [vmem:[%s177 + $0xa0] sm:$0xff] %vm3632, %v3620
      %3827 = vst.msk [vmem:[%s177 + $0xa8] sm:$0xff] %vm3632, %v3621
      %3828 = vst.msk [vmem:[%s177 + $0xb0] sm:$0xff] %vm3632, %v3622
      %3829 = vst.msk [vmem:[%s177 + $0xb8] sm:$0xff] %vm3632, %v3623
      %3830 = vst.msk [vmem:[%s177 + $0xc0] sm:$0xff] %vm3632, %v3624
      %3831 = vst.msk [vmem:[%s177 + $0xc8] sm:$0xff] %vm3632, %v3625
      %3832 = vst.msk [vmem:[%s177 + $0xd0] sm:$0xff] %vm3632, %v3626
      %3833 = vst.msk [vmem:[%s177 + $0xd8] sm:$0xff] %vm3632, %v3627
      %3834 = vst.msk [vmem:[%s177 + $0xe0] sm:$0xff] %vm3632, %v3628
      %3835 = vst.msk [vmem:[%s177 + $0xe8] sm:$0xff] %vm3632, %v3629
      %3836 = vst.msk [vmem:[%s177 + $0xf0] sm:$0xff] %vm3632, %v3630
      %3837 = vst.msk [vmem:[%s177 + $0xf8] sm:$0xff] %vm3632, %v3631
      %s3838 = smul.u32 32, %s15
      %p3839 = scmp.lt.s32.totalorder %s3838, 63
      %s3840 = scalar_select %p3839, %s3838, 63
      %s3841 = smul.addr %s3840, 8
      %s3842 = scalar_lea.vmem %s2, %s3841
      %p3843 = scmp.lt.s32.totalorder %s15, 1
      %s3844 = scalar_select %p3843, %s15, 1
      %s3845 = smul.addr %s3844, 2
      %s3846 = scalar_lea.vmem %s3, %s3845
      // Predicated region
      $region29: #{conv_bn2d.2} parent=27 // pred_check
        %p3847 = pneg %p80
      $region30: #{conv_bn2d.2} parent=27 // pred_check_branch
        %3849 = sbr.rel (%p3847) target = $region32
      $region31: #{conv_bn2d.2} parent=27 // pred_region
        %s3850 = smul.u32 32, %s15
      $region32: #{conv_bn2d.2} parent=27 // pred_fallthru
        _
      // Predicated region
      $region33: #{conv_bn2d.2} parent=27 // pred_check
        %p3851 = pneg %p106
      $region34: #{conv_bn2d.2} parent=27 // pred_check_branch
        %3853 = sbr.rel (%p3851) target = $region36
      $region35: #{conv_bn2d.2} parent=27 // pred_region
        _
      $region36: #{conv_bn2d.2} parent=27 // pred_fallthru
        _
    $region28: #{conv_bn2d.2} parent=5 // pred_fallthru
      _
    %p3854 = scmp.le.s32.totalorder 2, %s10
    // Predicated region
    $region37: #{conv_bn2d.2} parent=5 // pred_check
      %p3855 = pneg %p3854
    $region38: #{conv_bn2d.2} parent=5 // pred_check_branch
      %3857 = sbr.rel (%p3855) target = $region40
    $region39: #{conv_bn2d.2} parent=5 // pred_region
      %s3858 = ssub.s32 %s10, 2
      // Predicated region
      $region41: #{conv_bn2d.2} parent=39 // pred_check
        %p3859 = pneg %p86
      $region42: #{conv_bn2d.2} parent=39 // pred_check_branch
        %3861 = sbr.rel (%p3859) target = $region44
      $region43: #{conv_bn2d.2} parent=39 // pred_region
        %s3862 = smul.u32 32, %s16
        %p3863 = scmp.lt.s32.totalorder %s3862, 63
        %s3864 = scalar_select %p3863, %s3862, 63
        %s3865 = smul.addr %s3864, 8
        %s3866 = scalar_lea.vmem %s2, %s3865
      $region44: #{conv_bn2d.2} parent=39 // pred_fallthru
        _
      // Predicated region
      $region45: #{conv_bn2d.2} parent=39 // pred_check
        %p3867 = pneg %p112
      $region46: #{conv_bn2d.2} parent=39 // pred_check_branch
        %3869 = sbr.rel (%p3867) target = $region48
      $region47: #{conv_bn2d.2} parent=39 // pred_region
        %p3870 = scmp.lt.s32.totalorder %s16, 1
        %s3871 = scalar_select %p3870, %s16, 1
        %s3872 = smul.addr %s3871, 2
        %s3873 = scalar_lea.vmem %s3, %s3872
      $region48: #{conv_bn2d.2} parent=39 // pred_fallthru
        _
    $region40: #{conv_bn2d.2} parent=5 // pred_fallthru
      _
  $region6: #{conv_bn2d.2} parent=0 // loop_footer
    %s14 = sadd.s32 1, %s10
  $region7: #{conv_bn2d.2} parent=0 // loop_footer_branch
    %9 = sbr.rel target = $region3
  $region8: #{conv_bn2d.2} parent=0 // loop_exit
    _

</llo_original>
